<compile_context>
chip_gen: v7x
topology: tpu7x:2x2x1
jax: 0.10.0
libtpu: 0.0.40
codegen_flags: <defaults>
</compile_context>

<pallas_src>
import math

import jax
import jax.numpy as jnp
from jax.experimental import pallas as pl
from jax.experimental.pallas import tpu as pltpu

# ---------------- small, module-consistent config ----------------
IMG = 16          # img_size
PATCH = 4         # patch_size
IN_CHANS = 4      # in_chans
EMBED = 32        # embed_dim
DEPTH = 2         # depth
HEADS = 4         # num_heads
MLP_RATIO = 4.0
HEAD_DIM = EMBED // HEADS
HIDDEN = int(EMBED * MLP_RATIO)
NPATCH = (IMG // PATCH) * (IMG // PATCH)
SEQ = NPATCH + 1
SEQ_PAD = 24      # SEQ (=17) rounded up to a multiple of 8 -> aligned row bases
PATCH_K = IN_CHANS * PATCH * PATCH
LN_EPS = 1e-5     # nn.LayerNorm default
NEG_INF = -1e30   # additive mask value (finite; exp underflows to 0 after max-sub)


# ---------------- in-kernel math helpers ----------------
def _gelu(x):
    # tanh-approx GELU: the transcendental goes to the (otherwise idle) EUP slot.
    # TODO(synk): exact erf GELU (nn.GELU() default) differs by up to ~1e-3; use the
    # exact form only if strict parity is required and erf lowering is available.
    c = math.sqrt(2.0 / math.pi)
    return 0.5 * x * (1.0 + jnp.tanh(c * (x + 0.044715 * x * x * x)))


def _layernorm(x, g, b):
    mu = jnp.mean(x, axis=-1, keepdims=True)
    var = jnp.mean(jnp.square(x - mu), axis=-1, keepdims=True)
    return (x - mu) * jax.lax.rsqrt(var + LN_EPS) * g + b


# ---------------- fused forward kernel ----------------
def fused_vit_kernel(patches_ref, wp_ref, add_ref, mask_ref,
                     g1_ref, b1_ref, wqkv_ref, bqkv_ref, wproj_ref, bproj_ref,
                     g2_ref, b2_ref, wfc1_ref, bfc1_ref, wfc2_ref, bfc2_ref,
                     gn_ref, bn_ref, o_ref):
    f32 = jnp.float32
    B = o_ref.shape[0]

    # --- 1. patch embedding + cls/pos assembly: ONE aligned matmul + add ---
    # patches_ref rows: per batch [zero cls slot | 16 patches | 7 zero pad rows],
    # add_ref rows:               [cls+pos[0]    | pos[1:]+bp | zeros          ].
    x = jnp.dot(patches_ref[...], wp_ref[...],
                preferred_element_type=f32) + add_ref[...]          # (B*SEQ_PAD, E)

    mask = mask_ref[...]                                            # (B*SP, B*SP)

    # --- 2. transformer blocks (unrolled; all weights resident in VMEM) ---
    for d in range(DEPTH):
        # ---- attention branch ----
        h = _layernorm(x, g1_ref[d], b1_ref[d])
        # Q slice of wqkv/bqkv is pre-scaled by 1/sqrt(head_dim) at prep time.
        qkv = jnp.dot(h, wqkv_ref[d], preferred_element_type=f32) + bqkv_ref[d]
        heads = []
        for hd in range(HEADS):                                     # 4 iterations
            lo = hd * HEAD_DIM
            q = qkv[:, lo:lo + HEAD_DIM]                            # (B*SP, hd)
            k = qkv[:, EMBED + lo:EMBED + lo + HEAD_DIM]
            v = qkv[:, 2 * EMBED + lo:2 * EMBED + lo + HEAD_DIM]
            # All batches at once; constant mask makes scores block-diagonal per
            # batch and kills padded-key columns.
            s = jax.lax.dot_general(q, k, (((1,), (1,)), ((), ())),
                                    preferred_element_type=f32)     # (B*SP, B*SP)
            s = s + mask
            s = s - jnp.max(s, axis=-1, keepdims=True)
            p = jnp.exp(s)
            p = p * pl.reciprocal(jnp.sum(p, axis=-1, keepdims=True), approx=True)
            heads.append(jnp.dot(p, v, preferred_element_type=f32))  # (B*SP, hd)
        attn = jnp.concatenate(heads, axis=-1)                      # (B*SP, E)
        x = x + jnp.dot(attn, wproj_ref[d],
                        preferred_element_type=f32) + bproj_ref[d]

        # ---- MLP branch ----
        h = _layernorm(x, g2_ref[d], b2_ref[d])
        h = _gelu(jnp.dot(h, wfc1_ref[d], preferred_element_type=f32) + bfc1_ref[d])
        x = x + jnp.dot(h, wfc2_ref[d], preferred_element_type=f32) + bfc2_ref[d]

    # --- 3. final LayerNorm + direct 3-D store (pad rows dropped here) ---
    x = _layernorm(x, gn_ref[...], bn_ref[...])
    for b in range(B):
        o_ref[b] = x[b * SEQ_PAD:b * SEQ_PAD + SEQ, :].astype(o_ref.dtype)


# ---------------- parameter init (deterministic, synthetic) ----------------
def init_params(key):
    keys = iter(jax.random.split(key, 8 + DEPTH * 16))
    std = 0.02

    def nrm(shape):
        return std * jax.random.normal(next(keys), shape, jnp.float32)

    params = {
        # Conv2d(in_chans, embed_dim, k=patch, s=patch, bias=True) weight, torch layout.
        "conv_w": nrm((EMBED, IN_CHANS, PATCH, PATCH)),
        "conv_b": nrm((EMBED,)),
        "cls": nrm((1, 1, EMBED)),
        "pos": nrm((1, SEQ, EMBED)),
        "gn": jnp.ones((1, EMBED), jnp.float32),
        "bn": jnp.zeros((1, EMBED), jnp.float32),
        "blocks": [],
    }
    for _ in range(DEPTH):
        # Linear weights stored pre-transposed as (in, out) so kernels do x @ W.
        blk = dict(
            g1=jnp.ones((1, EMBED), jnp.float32), b1=jnp.zeros((1, EMBED), jnp.float32),
            wqkv=nrm((EMBED, 3 * EMBED)), bqkv=nrm((1, 3 * EMBED)),   # qkv_bias=True
            wproj=nrm((EMBED, EMBED)), bproj=nrm((1, EMBED)),
            g2=jnp.ones((1, EMBED), jnp.float32), b2=jnp.zeros((1, EMBED), jnp.float32),
            wfc1=nrm((EMBED, HIDDEN)), bfc1=nrm((1, HIDDEN)),
            wfc2=nrm((HIDDEN, EMBED)), bfc2=nrm((1, EMBED)),
        )
        params["blocks"].append(blk)
    return params


# ---------------- one-time parameter / constant prep (HOISTED out of jit path) ---
def prepare_params(params, batch):
    """Stack / transpose / scale-fold weights and build the assembly+mask constants.

    Call ONCE; the returned dict is passed to every jitted forward call, so the
    per-call path contains only the patch-extraction reshape and the fused kernel.
    """
    scale = 1.0 / math.sqrt(HEAD_DIM)

    def stack(name):
        return jnp.stack([blk[name] for blk in params["blocks"]])

    wqkv = stack("wqkv")                      # (DEPTH, E, 3E)
    bqkv = stack("bqkv")                      # (DEPTH, 1, 3E)
    # Pre-fold the attention scale into the Q projection (free at prep time).
    wqkv = wqkv.at[:, :, :EMBED].multiply(scale)
    bqkv = bqkv.at[:, :, :EMBED].multiply(scale)

    cls = params["cls"].reshape(1, EMBED)
    pos = params["pos"].reshape(SEQ, EMBED)
    bp = params["conv_b"].reshape(1, EMBED)

    # Additive constant for the token-assembly matmul, per 24-row batch slab:
    #   row 0        -> cls + pos[0]          (cls slot; its patch row is zero)
    #   rows 1..16   -> pos[1:] + conv bias   (patch rows)
    #   rows 17..23  -> 0                     (pad rows stay zero)
    slab = jnp.zeros((SEQ_PAD, EMBED), jnp.float32)
    slab = slab.at[0].set((cls + pos[0:1, :])[0])
    slab = slab.at[1:SEQ].set(pos[1:, :] + bp)
    add_const = jnp.tile(slab, (batch, 1))                    # (B*SEQ_PAD, E)

    # Block-diagonal attention mask over the flattened (B*SEQ_PAD) token axis:
    # 0 where (same batch AND key-token < SEQ), else -1e30.
    idx = jnp.arange(batch * SEQ_PAD)
    row_b = idx // SEQ_PAD
    col_t = idx % SEQ_PAD
    ok = (row_b[:, None] == row_b[None, :]) & (col_t[None, :] < SEQ)
    mask = jnp.where(ok, 0.0, NEG_INF).astype(jnp.float32)    # (B*SP, B*SP)

    return dict(
        wp=params["conv_w"].reshape(EMBED, PATCH_K).T,        # (K, E)
        add=add_const,
        mask=mask,
        g1=stack("g1"), b1=stack("b1"),
        wqkv=wqkv, bqkv=bqkv,
        wproj=stack("wproj"), bproj=stack("bproj"),
        g2=stack("g2"), b2=stack("b2"),
        wfc1=stack("wfc1"), bfc1=stack("bfc1"),
        wfc2=stack("wfc2"), bfc2=stack("bfc2"),
        gn=params["gn"], bn=params["bn"],
    )


# ---------------- forward ----------------
def vit_forward(x_nchw, p):
    # layout: x_nchw is (B, C, H, W) = PyTorch NCHW.
    B, C, H, W = x_nchw.shape
    gh, gw = H // PATCH, W // PATCH

    # Patch extraction (pure reshape/transpose glue). Feature order is (c, kh, kw),
    # matching the flattened conv weight -> exact Conv2d(stride=patch) semantics.
    patches = x_nchw.reshape(B, C, gh, PATCH, gw, PATCH)
    patches = patches.transpose(0, 2, 4, 1, 3, 5).reshape(B, gh * gw, C * PATCH * PATCH)
    # Pad each batch to a 24-row slab: row 0 = cls slot, rows 1..16 = patches,
    # rows 17..23 = pad.  All per-batch row bases inside the kernel are then
    # sublane-aligned (multiples of 8) -> no masked stores in the hot loop.
    patches = jnp.pad(patches, ((0, 0), (1, SEQ_PAD - 1 - NPATCH), (0, 0)))
    patches = patches.reshape(B * SEQ_PAD, PATCH_K)

    # Single fused pallas_call: activations + all weights (<0.25 MB) stay in VMEM,
    # weights are DMA'd exactly once, output comes out directly as (B, SEQ, E).
    out = pl.pallas_call(
        fused_vit_kernel,
        out_shape=jax.ShapeDtypeStruct((B, SEQ, EMBED), jnp.float32),
    )(patches, p["wp"], p["add"], p["mask"],
      p["g1"], p["b1"], p["wqkv"], p["bqkv"], p["wproj"], p["bproj"],
      p["g2"], p["b2"], p["wfc1"], p["bfc1"], p["wfc2"], p["bfc2"],
      p["gn"], p["bn"])
    return out


if __name__ == "__main__":
    key = jax.random.PRNGKey(0)
    kx, kp = jax.random.split(key)
    B = 2
    x = jax.random.normal(kx, (B, IN_CHANS, IMG, IMG), jnp.float32)  # NCHW input
    params = init_params(kp)

    # Hoisted one-time prep (stacking, scale folding, mask/assembly constants).
    prepped = prepare_params(params, B)

    fwd = jax.jit(vit_forward)
    out = fwd(x, prepped)
    out = jax.block_until_ready(out)

    assert out.shape == (B, SEQ, EMBED), out.shape
    assert bool(jnp.all(jnp.isfinite(out)))
    print("KERNEL_OK")
</pallas_src>

<mosaic_0001>
module attributes {stable_mosaic.version = 11 : i64} {
  func.func @fused_vit_kernel(%arg0: memref<48x64xf32, #tpu.memory_space<vmem>>, %arg1: memref<64x32xf32, #tpu.memory_space<vmem>>, %arg2: memref<48x32xf32, #tpu.memory_space<vmem>>, %arg3: memref<48x48xf32, #tpu.memory_space<vmem>>, %arg4: memref<2x1x32xf32, #tpu.memory_space<vmem>>, %arg5: memref<2x1x32xf32, #tpu.memory_space<vmem>>, %arg6: memref<2x32x96xf32, #tpu.memory_space<vmem>>, %arg7: memref<2x1x96xf32, #tpu.memory_space<vmem>>, %arg8: memref<2x32x32xf32, #tpu.memory_space<vmem>>, %arg9: memref<2x1x32xf32, #tpu.memory_space<vmem>>, %arg10: memref<2x1x32xf32, #tpu.memory_space<vmem>>, %arg11: memref<2x1x32xf32, #tpu.memory_space<vmem>>, %arg12: memref<2x32x128xf32, #tpu.memory_space<vmem>>, %arg13: memref<2x1x128xf32, #tpu.memory_space<vmem>>, %arg14: memref<2x128x32xf32, #tpu.memory_space<vmem>>, %arg15: memref<2x1x32xf32, #tpu.memory_space<vmem>>, %arg16: memref<1x32xf32, #tpu.memory_space<vmem>>, %arg17: memref<1x32xf32, #tpu.memory_space<vmem>>, %arg18: memref<2x17x32xf32, #tpu.memory_space<vmem>>) attributes {dimension_semantics = [], scalar_prefetch = 0 : i64, scratch_operands = 0 : i64, tpu.core_type = #tpu.core_type<tc>} {
    %c0 = arith.constant 0 : index
    %c0_0 = arith.constant 0 : index
    %0 = vector.load %arg0[%c0, %c0_0] : memref<48x64xf32, #tpu.memory_space<vmem>>, vector<48x64xf32>
    %c0_1 = arith.constant 0 : index
    %c0_2 = arith.constant 0 : index
    %1 = vector.load %arg1[%c0_1, %c0_2] : memref<64x32xf32, #tpu.memory_space<vmem>>, vector<64x32xf32>
    %cst = arith.constant dense<0.000000e+00> : vector<48x32xf32>
    %2 = tpu.matmul %0, %1, %cst {dimension_numbers = #tpu.dot_dimension_numbers<[1], [0], [0], [1], [0, 0, 1, 1], [], []>} : vector<48x64xf32>, vector<64x32xf32>, vector<48x32xf32> -> vector<48x32xf32>
    %c0_3 = arith.constant 0 : index
    %c0_4 = arith.constant 0 : index
    %3 = vector.load %arg2[%c0_3, %c0_4] : memref<48x32xf32, #tpu.memory_space<vmem>>, vector<48x32xf32>
    %4 = arith.addf %2, %3 : vector<48x32xf32>
    %c0_5 = arith.constant 0 : index
    %c0_6 = arith.constant 0 : index
    %5 = vector.load %arg3[%c0_5, %c0_6] : memref<48x48xf32, #tpu.memory_space<vmem>>, vector<48x48xf32>
    %c0_7 = arith.constant 0 : index
    %c0_8 = arith.constant 0 : index
    %c0_9 = arith.constant 0 : index
    %6 = vector.load %arg4[%c0_7, %c0_8, %c0_9] : memref<2x1x32xf32, #tpu.memory_space<vmem>>, vector<1x1x32xf32>
    %7 = vector.shape_cast %6 : vector<1x1x32xf32> to vector<1x32xf32>
    %c0_10 = arith.constant 0 : index
    %c0_11 = arith.constant 0 : index
    %c0_12 = arith.constant 0 : index
    %8 = vector.load %arg5[%c0_10, %c0_11, %c0_12] : memref<2x1x32xf32, #tpu.memory_space<vmem>>, vector<1x1x32xf32>
    %9 = vector.shape_cast %8 : vector<1x1x32xf32> to vector<1x32xf32>
    %cst_13 = arith.constant dense<0.000000e+00> : vector<48xf32>
    %10 = vector.multi_reduction <add>, %4, %cst_13 [1] : vector<48x32xf32> to vector<48xf32>
    %11 = vector.shape_cast %10 : vector<48xf32> to vector<48x1xf32>
    %cst_14 = arith.constant 3.200000e+01 : f32
    %12 = vector.broadcast %cst_14 : f32 to vector<48x1xf32>
    %13 = arith.divf %11, %12 : vector<48x1xf32>
    %14 = vector.broadcast %13 : vector<48x1xf32> to vector<48x32xf32>
    %15 = arith.subf %4, %14 : vector<48x32xf32>
    %16 = arith.mulf %15, %15 : vector<48x32xf32>
    %cst_15 = arith.constant dense<0.000000e+00> : vector<48xf32>
    %17 = vector.multi_reduction <add>, %16, %cst_15 [1] : vector<48x32xf32> to vector<48xf32>
    %18 = vector.shape_cast %17 : vector<48xf32> to vector<48x1xf32>
    %cst_16 = arith.constant 3.200000e+01 : f32
    %19 = vector.broadcast %cst_16 : f32 to vector<48x1xf32>
    %20 = arith.divf %18, %19 : vector<48x1xf32>
    %21 = vector.broadcast %13 : vector<48x1xf32> to vector<48x32xf32>
    %22 = arith.subf %4, %21 : vector<48x32xf32>
    %cst_17 = arith.constant 9.99999974E-6 : f32
    %23 = vector.broadcast %cst_17 : f32 to vector<48x1xf32>
    %24 = arith.addf %20, %23 : vector<48x1xf32>
    %25 = math.rsqrt %24 : vector<48x1xf32>
    %26 = vector.broadcast %25 : vector<48x1xf32> to vector<48x32xf32>
    %27 = arith.mulf %22, %26 : vector<48x32xf32>
    %28 = vector.broadcast %7 : vector<1x32xf32> to vector<48x32xf32>
    %29 = arith.mulf %27, %28 : vector<48x32xf32>
    %30 = vector.broadcast %9 : vector<1x32xf32> to vector<48x32xf32>
    %31 = arith.addf %29, %30 : vector<48x32xf32>
    %c0_18 = arith.constant 0 : index
    %c0_19 = arith.constant 0 : index
    %c0_20 = arith.constant 0 : index
    %32 = vector.load %arg6[%c0_18, %c0_19, %c0_20] : memref<2x32x96xf32, #tpu.memory_space<vmem>>, vector<1x32x96xf32>
    %33 = vector.shape_cast %32 : vector<1x32x96xf32> to vector<32x96xf32>
    %cst_21 = arith.constant dense<0.000000e+00> : vector<48x96xf32>
    %34 = tpu.matmul %31, %33, %cst_21 {dimension_numbers = #tpu.dot_dimension_numbers<[1], [0], [0], [1], [0, 0, 1, 1], [], []>} : vector<48x32xf32>, vector<32x96xf32>, vector<48x96xf32> -> vector<48x96xf32>
    %c0_22 = arith.constant 0 : index
    %c0_23 = arith.constant 0 : index
    %c0_24 = arith.constant 0 : index
    %35 = vector.load %arg7[%c0_22, %c0_23, %c0_24] : memref<2x1x96xf32, #tpu.memory_space<vmem>>, vector<1x1x96xf32>
    %36 = vector.shape_cast %35 : vector<1x1x96xf32> to vector<1x96xf32>
    %37 = vector.broadcast %36 : vector<1x96xf32> to vector<48x96xf32>
    %38 = arith.addf %34, %37 : vector<48x96xf32>
    %39 = vector.extract_strided_slice %38 {offsets = [0, 0], sizes = [48, 8], strides = [1, 1]} : vector<48x96xf32> to vector<48x8xf32>
    %40 = vector.extract_strided_slice %38 {offsets = [0, 32], sizes = [48, 8], strides = [1, 1]} : vector<48x96xf32> to vector<48x8xf32>
    %41 = vector.extract_strided_slice %38 {offsets = [0, 64], sizes = [48, 8], strides = [1, 1]} : vector<48x96xf32> to vector<48x8xf32>
    %cst_25 = arith.constant dense<0.000000e+00> : vector<48x48xf32>
    %42 = tpu.matmul %39, %40, %cst_25 {dimension_numbers = #tpu.dot_dimension_numbers<[1], [1], [0], [0], [0, 0, 1, 0], [], []>} : vector<48x8xf32>, vector<48x8xf32>, vector<48x48xf32> -> vector<48x48xf32>
    %43 = arith.addf %42, %5 : vector<48x48xf32>
    %cst_26 = arith.constant dense<0xFF800000> : vector<48xf32>
    %44 = vector.multi_reduction <maximumf>, %43, %cst_26 [1] : vector<48x48xf32> to vector<48xf32>
    %45 = vector.shape_cast %44 : vector<48xf32> to vector<48x1xf32>
    %46 = vector.broadcast %45 : vector<48x1xf32> to vector<48x48xf32>
    %47 = arith.subf %43, %46 : vector<48x48xf32>
    %48 = math.exp %47 : vector<48x48xf32>
    %cst_27 = arith.constant dense<0.000000e+00> : vector<48xf32>
    %49 = vector.multi_reduction <add>, %48, %cst_27 [1] : vector<48x48xf32> to vector<48xf32>
    %50 = vector.shape_cast %49 : vector<48xf32> to vector<48x1xf32>
    %51 = tpu.reciprocal %50 {approx = true} : vector<48x1xf32> -> vector<48x1xf32>
    %52 = vector.broadcast %51 : vector<48x1xf32> to vector<48x48xf32>
    %53 = arith.mulf %48, %52 : vector<48x48xf32>
    %cst_28 = arith.constant dense<0.000000e+00> : vector<48x8xf32>
    %54 = tpu.matmul %53, %41, %cst_28 {dimension_numbers = #tpu.dot_dimension_numbers<[1], [0], [0], [1], [0, 0, 1, 1], [], []>} : vector<48x48xf32>, vector<48x8xf32>, vector<48x8xf32> -> vector<48x8xf32>
    %55 = vector.extract_strided_slice %38 {offsets = [0, 8], sizes = [48, 8], strides = [1, 1]} : vector<48x96xf32> to vector<48x8xf32>
    %56 = vector.extract_strided_slice %38 {offsets = [0, 40], sizes = [48, 8], strides = [1, 1]} : vector<48x96xf32> to vector<48x8xf32>
    %57 = vector.extract_strided_slice %38 {offsets = [0, 72], sizes = [48, 8], strides = [1, 1]} : vector<48x96xf32> to vector<48x8xf32>
    %cst_29 = arith.constant dense<0.000000e+00> : vector<48x48xf32>
    %58 = tpu.matmul %55, %56, %cst_29 {dimension_numbers = #tpu.dot_dimension_numbers<[1], [1], [0], [0], [0, 0, 1, 0], [], []>} : vector<48x8xf32>, vector<48x8xf32>, vector<48x48xf32> -> vector<48x48xf32>
    %59 = arith.addf %58, %5 : vector<48x48xf32>
    %cst_30 = arith.constant dense<0xFF800000> : vector<48xf32>
    %60 = vector.multi_reduction <maximumf>, %59, %cst_30 [1] : vector<48x48xf32> to vector<48xf32>
    %61 = vector.shape_cast %60 : vector<48xf32> to vector<48x1xf32>
    %62 = vector.broadcast %61 : vector<48x1xf32> to vector<48x48xf32>
    %63 = arith.subf %59, %62 : vector<48x48xf32>
    %64 = math.exp %63 : vector<48x48xf32>
    %cst_31 = arith.constant dense<0.000000e+00> : vector<48xf32>
    %65 = vector.multi_reduction <add>, %64, %cst_31 [1] : vector<48x48xf32> to vector<48xf32>
    %66 = vector.shape_cast %65 : vector<48xf32> to vector<48x1xf32>
    %67 = tpu.reciprocal %66 {approx = true} : vector<48x1xf32> -> vector<48x1xf32>
    %68 = vector.broadcast %67 : vector<48x1xf32> to vector<48x48xf32>
    %69 = arith.mulf %64, %68 : vector<48x48xf32>
    %cst_32 = arith.constant dense<0.000000e+00> : vector<48x8xf32>
    %70 = tpu.matmul %69, %57, %cst_32 {dimension_numbers = #tpu.dot_dimension_numbers<[1], [0], [0], [1], [0, 0, 1, 1], [], []>} : vector<48x48xf32>, vector<48x8xf32>, vector<48x8xf32> -> vector<48x8xf32>
    %71 = vector.extract_strided_slice %38 {offsets = [0, 16], sizes = [48, 8], strides = [1, 1]} : vector<48x96xf32> to vector<48x8xf32>
    %72 = vector.extract_strided_slice %38 {offsets = [0, 48], sizes = [48, 8], strides = [1, 1]} : vector<48x96xf32> to vector<48x8xf32>
    %73 = vector.extract_strided_slice %38 {offsets = [0, 80], sizes = [48, 8], strides = [1, 1]} : vector<48x96xf32> to vector<48x8xf32>
    %cst_33 = arith.constant dense<0.000000e+00> : vector<48x48xf32>
    %74 = tpu.matmul %71, %72, %cst_33 {dimension_numbers = #tpu.dot_dimension_numbers<[1], [1], [0], [0], [0, 0, 1, 0], [], []>} : vector<48x8xf32>, vector<48x8xf32>, vector<48x48xf32> -> vector<48x48xf32>
    %75 = arith.addf %74, %5 : vector<48x48xf32>
    %cst_34 = arith.constant dense<0xFF800000> : vector<48xf32>
    %76 = vector.multi_reduction <maximumf>, %75, %cst_34 [1] : vector<48x48xf32> to vector<48xf32>
    %77 = vector.shape_cast %76 : vector<48xf32> to vector<48x1xf32>
    %78 = vector.broadcast %77 : vector<48x1xf32> to vector<48x48xf32>
    %79 = arith.subf %75, %78 : vector<48x48xf32>
    %80 = math.exp %79 : vector<48x48xf32>
    %cst_35 = arith.constant dense<0.000000e+00> : vector<48xf32>
    %81 = vector.multi_reduction <add>, %80, %cst_35 [1] : vector<48x48xf32> to vector<48xf32>
    %82 = vector.shape_cast %81 : vector<48xf32> to vector<48x1xf32>
    %83 = tpu.reciprocal %82 {approx = true} : vector<48x1xf32> -> vector<48x1xf32>
    %84 = vector.broadcast %83 : vector<48x1xf32> to vector<48x48xf32>
    %85 = arith.mulf %80, %84 : vector<48x48xf32>
    %cst_36 = arith.constant dense<0.000000e+00> : vector<48x8xf32>
    %86 = tpu.matmul %85, %73, %cst_36 {dimension_numbers = #tpu.dot_dimension_numbers<[1], [0], [0], [1], [0, 0, 1, 1], [], []>} : vector<48x48xf32>, vector<48x8xf32>, vector<48x8xf32> -> vector<48x8xf32>
    %87 = vector.extract_strided_slice %38 {offsets = [0, 24], sizes = [48, 8], strides = [1, 1]} : vector<48x96xf32> to vector<48x8xf32>
    %88 = vector.extract_strided_slice %38 {offsets = [0, 56], sizes = [48, 8], strides = [1, 1]} : vector<48x96xf32> to vector<48x8xf32>
    %89 = vector.extract_strided_slice %38 {offsets = [0, 88], sizes = [48, 8], strides = [1, 1]} : vector<48x96xf32> to vector<48x8xf32>
    %cst_37 = arith.constant dense<0.000000e+00> : vector<48x48xf32>
    %90 = tpu.matmul %87, %88, %cst_37 {dimension_numbers = #tpu.dot_dimension_numbers<[1], [1], [0], [0], [0, 0, 1, 0], [], []>} : vector<48x8xf32>, vector<48x8xf32>, vector<48x48xf32> -> vector<48x48xf32>
    %91 = arith.addf %90, %5 : vector<48x48xf32>
    %cst_38 = arith.constant dense<0xFF800000> : vector<48xf32>
    %92 = vector.multi_reduction <maximumf>, %91, %cst_38 [1] : vector<48x48xf32> to vector<48xf32>
    %93 = vector.shape_cast %92 : vector<48xf32> to vector<48x1xf32>
    %94 = vector.broadcast %93 : vector<48x1xf32> to vector<48x48xf32>
    %95 = arith.subf %91, %94 : vector<48x48xf32>
    %96 = math.exp %95 : vector<48x48xf32>
    %cst_39 = arith.constant dense<0.000000e+00> : vector<48xf32>
    %97 = vector.multi_reduction <add>, %96, %cst_39 [1] : vector<48x48xf32> to vector<48xf32>
    %98 = vector.shape_cast %97 : vector<48xf32> to vector<48x1xf32>
    %99 = tpu.reciprocal %98 {approx = true} : vector<48x1xf32> -> vector<48x1xf32>
    %100 = vector.broadcast %99 : vector<48x1xf32> to vector<48x48xf32>
    %101 = arith.mulf %96, %100 : vector<48x48xf32>
    %cst_40 = arith.constant dense<0.000000e+00> : vector<48x8xf32>
    %102 = tpu.matmul %101, %89, %cst_40 {dimension_numbers = #tpu.dot_dimension_numbers<[1], [0], [0], [1], [0, 0, 1, 1], [], []>} : vector<48x48xf32>, vector<48x8xf32>, vector<48x8xf32> -> vector<48x8xf32>
    %103 = tpu.concatenate %54, %70, %86, %102 in 1 : vector<48x8xf32>, vector<48x8xf32>, vector<48x8xf32>, vector<48x8xf32> -> vector<48x32xf32>
    %c0_41 = arith.constant 0 : index
    %c0_42 = arith.constant 0 : index
    %c0_43 = arith.constant 0 : index
    %104 = vector.load %arg8[%c0_41, %c0_42, %c0_43] : memref<2x32x32xf32, #tpu.memory_space<vmem>>, vector<1x32x32xf32>
    %105 = vector.shape_cast %104 : vector<1x32x32xf32> to vector<32x32xf32>
    %cst_44 = arith.constant dense<0.000000e+00> : vector<48x32xf32>
    %106 = tpu.matmul %103, %105, %cst_44 {dimension_numbers = #tpu.dot_dimension_numbers<[1], [0], [0], [1], [0, 0, 1, 1], [], []>} : vector<48x32xf32>, vector<32x32xf32>, vector<48x32xf32> -> vector<48x32xf32>
    %107 = arith.addf %4, %106 : vector<48x32xf32>
    %c0_45 = arith.constant 0 : index
    %c0_46 = arith.constant 0 : index
    %c0_47 = arith.constant 0 : index
    %108 = vector.load %arg9[%c0_45, %c0_46, %c0_47] : memref<2x1x32xf32, #tpu.memory_space<vmem>>, vector<1x1x32xf32>
    %109 = vector.shape_cast %108 : vector<1x1x32xf32> to vector<1x32xf32>
    %110 = vector.broadcast %109 : vector<1x32xf32> to vector<48x32xf32>
    %111 = arith.addf %107, %110 : vector<48x32xf32>
    %c0_48 = arith.constant 0 : index
    %c0_49 = arith.constant 0 : index
    %c0_50 = arith.constant 0 : index
    %112 = vector.load %arg10[%c0_48, %c0_49, %c0_50] : memref<2x1x32xf32, #tpu.memory_space<vmem>>, vector<1x1x32xf32>
    %113 = vector.shape_cast %112 : vector<1x1x32xf32> to vector<1x32xf32>
    %c0_51 = arith.constant 0 : index
    %c0_52 = arith.constant 0 : index
    %c0_53 = arith.constant 0 : index
    %114 = vector.load %arg11[%c0_51, %c0_52, %c0_53] : memref<2x1x32xf32, #tpu.memory_space<vmem>>, vector<1x1x32xf32>
    %115 = vector.shape_cast %114 : vector<1x1x32xf32> to vector<1x32xf32>
    %cst_54 = arith.constant dense<0.000000e+00> : vector<48xf32>
    %116 = vector.multi_reduction <add>, %111, %cst_54 [1] : vector<48x32xf32> to vector<48xf32>
    %117 = vector.shape_cast %116 : vector<48xf32> to vector<48x1xf32>
    %cst_55 = arith.constant 3.200000e+01 : f32
    %118 = vector.broadcast %cst_55 : f32 to vector<48x1xf32>
    %119 = arith.divf %117, %118 : vector<48x1xf32>
    %120 = vector.broadcast %119 : vector<48x1xf32> to vector<48x32xf32>
    %121 = arith.subf %111, %120 : vector<48x32xf32>
    %122 = arith.mulf %121, %121 : vector<48x32xf32>
    %cst_56 = arith.constant dense<0.000000e+00> : vector<48xf32>
    %123 = vector.multi_reduction <add>, %122, %cst_56 [1] : vector<48x32xf32> to vector<48xf32>
    %124 = vector.shape_cast %123 : vector<48xf32> to vector<48x1xf32>
    %cst_57 = arith.constant 3.200000e+01 : f32
    %125 = vector.broadcast %cst_57 : f32 to vector<48x1xf32>
    %126 = arith.divf %124, %125 : vector<48x1xf32>
    %127 = vector.broadcast %119 : vector<48x1xf32> to vector<48x32xf32>
    %128 = arith.subf %111, %127 : vector<48x32xf32>
    %cst_58 = arith.constant 9.99999974E-6 : f32
    %129 = vector.broadcast %cst_58 : f32 to vector<48x1xf32>
    %130 = arith.addf %126, %129 : vector<48x1xf32>
    %131 = math.rsqrt %130 : vector<48x1xf32>
    %132 = vector.broadcast %131 : vector<48x1xf32> to vector<48x32xf32>
    %133 = arith.mulf %128, %132 : vector<48x32xf32>
    %134 = vector.broadcast %113 : vector<1x32xf32> to vector<48x32xf32>
    %135 = arith.mulf %133, %134 : vector<48x32xf32>
    %136 = vector.broadcast %115 : vector<1x32xf32> to vector<48x32xf32>
    %137 = arith.addf %135, %136 : vector<48x32xf32>
    %c0_59 = arith.constant 0 : index
    %c0_60 = arith.constant 0 : index
    %c0_61 = arith.constant 0 : index
    %138 = vector.load %arg12[%c0_59, %c0_60, %c0_61] : memref<2x32x128xf32, #tpu.memory_space<vmem>>, vector<1x32x128xf32>
    %139 = vector.shape_cast %138 : vector<1x32x128xf32> to vector<32x128xf32>
    %cst_62 = arith.constant dense<0.000000e+00> : vector<48x128xf32>
    %140 = tpu.matmul %137, %139, %cst_62 {dimension_numbers = #tpu.dot_dimension_numbers<[1], [0], [0], [1], [0, 0, 1, 1], [], []>} : vector<48x32xf32>, vector<32x128xf32>, vector<48x128xf32> -> vector<48x128xf32>
    %c0_63 = arith.constant 0 : index
    %c0_64 = arith.constant 0 : index
    %c0_65 = arith.constant 0 : index
    %141 = vector.load %arg13[%c0_63, %c0_64, %c0_65] : memref<2x1x128xf32, #tpu.memory_space<vmem>>, vector<1x1x128xf32>
    %142 = vector.shape_cast %141 : vector<1x1x128xf32> to vector<1x128xf32>
    %143 = vector.broadcast %142 : vector<1x128xf32> to vector<48x128xf32>
    %144 = arith.addf %140, %143 : vector<48x128xf32>
    %cst_66 = arith.constant 5.000000e-01 : f32
    %145 = vector.broadcast %cst_66 : f32 to vector<48x128xf32>
    %146 = arith.mulf %145, %144 : vector<48x128xf32>
    %cst_67 = arith.constant 4.471500e-02 : f32
    %147 = vector.broadcast %cst_67 : f32 to vector<48x128xf32>
    %148 = arith.mulf %147, %144 : vector<48x128xf32>
    %149 = arith.mulf %148, %144 : vector<48x128xf32>
    %150 = arith.mulf %149, %144 : vector<48x128xf32>
    %151 = arith.addf %144, %150 : vector<48x128xf32>
    %cst_68 = arith.constant 0.797884583 : f32
    %152 = vector.broadcast %cst_68 : f32 to vector<48x128xf32>
    %153 = arith.mulf %152, %151 : vector<48x128xf32>
    %154 = math.tanh %153 : vector<48x128xf32>
    %cst_69 = arith.constant 1.000000e+00 : f32
    %155 = vector.broadcast %cst_69 : f32 to vector<48x128xf32>
    %156 = arith.addf %155, %154 : vector<48x128xf32>
    %157 = arith.mulf %146, %156 : vector<48x128xf32>
    %c0_70 = arith.constant 0 : index
    %c0_71 = arith.constant 0 : index
    %c0_72 = arith.constant 0 : index
    %158 = vector.load %arg14[%c0_70, %c0_71, %c0_72] : memref<2x128x32xf32, #tpu.memory_space<vmem>>, vector<1x128x32xf32>
    %159 = vector.shape_cast %158 : vector<1x128x32xf32> to vector<128x32xf32>
    %cst_73 = arith.constant dense<0.000000e+00> : vector<48x32xf32>
    %160 = tpu.matmul %157, %159, %cst_73 {dimension_numbers = #tpu.dot_dimension_numbers<[1], [0], [0], [1], [0, 0, 1, 1], [], []>} : vector<48x128xf32>, vector<128x32xf32>, vector<48x32xf32> -> vector<48x32xf32>
    %161 = arith.addf %111, %160 : vector<48x32xf32>
    %c0_74 = arith.constant 0 : index
    %c0_75 = arith.constant 0 : index
    %c0_76 = arith.constant 0 : index
    %162 = vector.load %arg15[%c0_74, %c0_75, %c0_76] : memref<2x1x32xf32, #tpu.memory_space<vmem>>, vector<1x1x32xf32>
    %163 = vector.shape_cast %162 : vector<1x1x32xf32> to vector<1x32xf32>
    %164 = vector.broadcast %163 : vector<1x32xf32> to vector<48x32xf32>
    %165 = arith.addf %161, %164 : vector<48x32xf32>
    %c1 = arith.constant 1 : index
    %c0_77 = arith.constant 0 : index
    %c0_78 = arith.constant 0 : index
    %166 = vector.load %arg4[%c1, %c0_77, %c0_78] : memref<2x1x32xf32, #tpu.memory_space<vmem>>, vector<1x1x32xf32>
    %167 = vector.shape_cast %166 : vector<1x1x32xf32> to vector<1x32xf32>
    %c1_79 = arith.constant 1 : index
    %c0_80 = arith.constant 0 : index
    %c0_81 = arith.constant 0 : index
    %168 = vector.load %arg5[%c1_79, %c0_80, %c0_81] : memref<2x1x32xf32, #tpu.memory_space<vmem>>, vector<1x1x32xf32>
    %169 = vector.shape_cast %168 : vector<1x1x32xf32> to vector<1x32xf32>
    %cst_82 = arith.constant dense<0.000000e+00> : vector<48xf32>
    %170 = vector.multi_reduction <add>, %165, %cst_82 [1] : vector<48x32xf32> to vector<48xf32>
    %171 = vector.shape_cast %170 : vector<48xf32> to vector<48x1xf32>
    %cst_83 = arith.constant 3.200000e+01 : f32
    %172 = vector.broadcast %cst_83 : f32 to vector<48x1xf32>
    %173 = arith.divf %171, %172 : vector<48x1xf32>
    %174 = vector.broadcast %173 : vector<48x1xf32> to vector<48x32xf32>
    %175 = arith.subf %165, %174 : vector<48x32xf32>
    %176 = arith.mulf %175, %175 : vector<48x32xf32>
    %cst_84 = arith.constant dense<0.000000e+00> : vector<48xf32>
    %177 = vector.multi_reduction <add>, %176, %cst_84 [1] : vector<48x32xf32> to vector<48xf32>
    %178 = vector.shape_cast %177 : vector<48xf32> to vector<48x1xf32>
    %cst_85 = arith.constant 3.200000e+01 : f32
    %179 = vector.broadcast %cst_85 : f32 to vector<48x1xf32>
    %180 = arith.divf %178, %179 : vector<48x1xf32>
    %181 = vector.broadcast %173 : vector<48x1xf32> to vector<48x32xf32>
    %182 = arith.subf %165, %181 : vector<48x32xf32>
    %cst_86 = arith.constant 9.99999974E-6 : f32
    %183 = vector.broadcast %cst_86 : f32 to vector<48x1xf32>
    %184 = arith.addf %180, %183 : vector<48x1xf32>
    %185 = math.rsqrt %184 : vector<48x1xf32>
    %186 = vector.broadcast %185 : vector<48x1xf32> to vector<48x32xf32>
    %187 = arith.mulf %182, %186 : vector<48x32xf32>
    %188 = vector.broadcast %167 : vector<1x32xf32> to vector<48x32xf32>
    %189 = arith.mulf %187, %188 : vector<48x32xf32>
    %190 = vector.broadcast %169 : vector<1x32xf32> to vector<48x32xf32>
    %191 = arith.addf %189, %190 : vector<48x32xf32>
    %c1_87 = arith.constant 1 : index
    %c0_88 = arith.constant 0 : index
    %c0_89 = arith.constant 0 : index
    %192 = vector.load %arg6[%c1_87, %c0_88, %c0_89] : memref<2x32x96xf32, #tpu.memory_space<vmem>>, vector<1x32x96xf32>
    %193 = vector.shape_cast %192 : vector<1x32x96xf32> to vector<32x96xf32>
    %cst_90 = arith.constant dense<0.000000e+00> : vector<48x96xf32>
    %194 = tpu.matmul %191, %193, %cst_90 {dimension_numbers = #tpu.dot_dimension_numbers<[1], [0], [0], [1], [0, 0, 1, 1], [], []>} : vector<48x32xf32>, vector<32x96xf32>, vector<48x96xf32> -> vector<48x96xf32>
    %c1_91 = arith.constant 1 : index
    %c0_92 = arith.constant 0 : index
    %c0_93 = arith.constant 0 : index
    %195 = vector.load %arg7[%c1_91, %c0_92, %c0_93] : memref<2x1x96xf32, #tpu.memory_space<vmem>>, vector<1x1x96xf32>
    %196 = vector.shape_cast %195 : vector<1x1x96xf32> to vector<1x96xf32>
    %197 = vector.broadcast %196 : vector<1x96xf32> to vector<48x96xf32>
    %198 = arith.addf %194, %197 : vector<48x96xf32>
    %199 = vector.extract_strided_slice %198 {offsets = [0, 0], sizes = [48, 8], strides = [1, 1]} : vector<48x96xf32> to vector<48x8xf32>
    %200 = vector.extract_strided_slice %198 {offsets = [0, 32], sizes = [48, 8], strides = [1, 1]} : vector<48x96xf32> to vector<48x8xf32>
    %201 = vector.extract_strided_slice %198 {offsets = [0, 64], sizes = [48, 8], strides = [1, 1]} : vector<48x96xf32> to vector<48x8xf32>
    %cst_94 = arith.constant dense<0.000000e+00> : vector<48x48xf32>
    %202 = tpu.matmul %199, %200, %cst_94 {dimension_numbers = #tpu.dot_dimension_numbers<[1], [1], [0], [0], [0, 0, 1, 0], [], []>} : vector<48x8xf32>, vector<48x8xf32>, vector<48x48xf32> -> vector<48x48xf32>
    %203 = arith.addf %202, %5 : vector<48x48xf32>
    %cst_95 = arith.constant dense<0xFF800000> : vector<48xf32>
    %204 = vector.multi_reduction <maximumf>, %203, %cst_95 [1] : vector<48x48xf32> to vector<48xf32>
    %205 = vector.shape_cast %204 : vector<48xf32> to vector<48x1xf32>
    %206 = vector.broadcast %205 : vector<48x1xf32> to vector<48x48xf32>
    %207 = arith.subf %203, %206 : vector<48x48xf32>
    %208 = math.exp %207 : vector<48x48xf32>
    %cst_96 = arith.constant dense<0.000000e+00> : vector<48xf32>
    %209 = vector.multi_reduction <add>, %208, %cst_96 [1] : vector<48x48xf32> to vector<48xf32>
    %210 = vector.shape_cast %209 : vector<48xf32> to vector<48x1xf32>
    %211 = tpu.reciprocal %210 {approx = true} : vector<48x1xf32> -> vector<48x1xf32>
    %212 = vector.broadcast %211 : vector<48x1xf32> to vector<48x48xf32>
    %213 = arith.mulf %208, %212 : vector<48x48xf32>
    %cst_97 = arith.constant dense<0.000000e+00> : vector<48x8xf32>
    %214 = tpu.matmul %213, %201, %cst_97 {dimension_numbers = #tpu.dot_dimension_numbers<[1], [0], [0], [1], [0, 0, 1, 1], [], []>} : vector<48x48xf32>, vector<48x8xf32>, vector<48x8xf32> -> vector<48x8xf32>
    %215 = vector.extract_strided_slice %198 {offsets = [0, 8], sizes = [48, 8], strides = [1, 1]} : vector<48x96xf32> to vector<48x8xf32>
    %216 = vector.extract_strided_slice %198 {offsets = [0, 40], sizes = [48, 8], strides = [1, 1]} : vector<48x96xf32> to vector<48x8xf32>
    %217 = vector.extract_strided_slice %198 {offsets = [0, 72], sizes = [48, 8], strides = [1, 1]} : vector<48x96xf32> to vector<48x8xf32>
    %cst_98 = arith.constant dense<0.000000e+00> : vector<48x48xf32>
    %218 = tpu.matmul %215, %216, %cst_98 {dimension_numbers = #tpu.dot_dimension_numbers<[1], [1], [0], [0], [0, 0, 1, 0], [], []>} : vector<48x8xf32>, vector<48x8xf32>, vector<48x48xf32> -> vector<48x48xf32>
    %219 = arith.addf %218, %5 : vector<48x48xf32>
    %cst_99 = arith.constant dense<0xFF800000> : vector<48xf32>
    %220 = vector.multi_reduction <maximumf>, %219, %cst_99 [1] : vector<48x48xf32> to vector<48xf32>
    %221 = vector.shape_cast %220 : vector<48xf32> to vector<48x1xf32>
    %222 = vector.broadcast %221 : vector<48x1xf32> to vector<48x48xf32>
    %223 = arith.subf %219, %222 : vector<48x48xf32>
    %224 = math.exp %223 : vector<48x48xf32>
    %cst_100 = arith.constant dense<0.000000e+00> : vector<48xf32>
    %225 = vector.multi_reduction <add>, %224, %cst_100 [1] : vector<48x48xf32> to vector<48xf32>
    %226 = vector.shape_cast %225 : vector<48xf32> to vector<48x1xf32>
    %227 = tpu.reciprocal %226 {approx = true} : vector<48x1xf32> -> vector<48x1xf32>
    %228 = vector.broadcast %227 : vector<48x1xf32> to vector<48x48xf32>
    %229 = arith.mulf %224, %228 : vector<48x48xf32>
    %cst_101 = arith.constant dense<0.000000e+00> : vector<48x8xf32>
    %230 = tpu.matmul %229, %217, %cst_101 {dimension_numbers = #tpu.dot_dimension_numbers<[1], [0], [0], [1], [0, 0, 1, 1], [], []>} : vector<48x48xf32>, vector<48x8xf32>, vector<48x8xf32> -> vector<48x8xf32>
    %231 = vector.extract_strided_slice %198 {offsets = [0, 16], sizes = [48, 8], strides = [1, 1]} : vector<48x96xf32> to vector<48x8xf32>
    %232 = vector.extract_strided_slice %198 {offsets = [0, 48], sizes = [48, 8], strides = [1, 1]} : vector<48x96xf32> to vector<48x8xf32>
    %233 = vector.extract_strided_slice %198 {offsets = [0, 80], sizes = [48, 8], strides = [1, 1]} : vector<48x96xf32> to vector<48x8xf32>
    %cst_102 = arith.constant dense<0.000000e+00> : vector<48x48xf32>
    %234 = tpu.matmul %231, %232, %cst_102 {dimension_numbers = #tpu.dot_dimension_numbers<[1], [1], [0], [0], [0, 0, 1, 0], [], []>} : vector<48x8xf32>, vector<48x8xf32>, vector<48x48xf32> -> vector<48x48xf32>
    %235 = arith.addf %234, %5 : vector<48x48xf32>
    %cst_103 = arith.constant dense<0xFF800000> : vector<48xf32>
    %236 = vector.multi_reduction <maximumf>, %235, %cst_103 [1] : vector<48x48xf32> to vector<48xf32>
    %237 = vector.shape_cast %236 : vector<48xf32> to vector<48x1xf32>
    %238 = vector.broadcast %237 : vector<48x1xf32> to vector<48x48xf32>
    %239 = arith.subf %235, %238 : vector<48x48xf32>
    %240 = math.exp %239 : vector<48x48xf32>
    %cst_104 = arith.constant dense<0.000000e+00> : vector<48xf32>
    %241 = vector.multi_reduction <add>, %240, %cst_104 [1] : vector<48x48xf32> to vector<48xf32>
    %242 = vector.shape_cast %241 : vector<48xf32> to vector<48x1xf32>
    %243 = tpu.reciprocal %242 {approx = true} : vector<48x1xf32> -> vector<48x1xf32>
    %244 = vector.broadcast %243 : vector<48x1xf32> to vector<48x48xf32>
    %245 = arith.mulf %240, %244 : vector<48x48xf32>
    %cst_105 = arith.constant dense<0.000000e+00> : vector<48x8xf32>
    %246 = tpu.matmul %245, %233, %cst_105 {dimension_numbers = #tpu.dot_dimension_numbers<[1], [0], [0], [1], [0, 0, 1, 1], [], []>} : vector<48x48xf32>, vector<48x8xf32>, vector<48x8xf32> -> vector<48x8xf32>
    %247 = vector.extract_strided_slice %198 {offsets = [0, 24], sizes = [48, 8], strides = [1, 1]} : vector<48x96xf32> to vector<48x8xf32>
    %248 = vector.extract_strided_slice %198 {offsets = [0, 56], sizes = [48, 8], strides = [1, 1]} : vector<48x96xf32> to vector<48x8xf32>
    %249 = vector.extract_strided_slice %198 {offsets = [0, 88], sizes = [48, 8], strides = [1, 1]} : vector<48x96xf32> to vector<48x8xf32>
    %cst_106 = arith.constant dense<0.000000e+00> : vector<48x48xf32>
    %250 = tpu.matmul %247, %248, %cst_106 {dimension_numbers = #tpu.dot_dimension_numbers<[1], [1], [0], [0], [0, 0, 1, 0], [], []>} : vector<48x8xf32>, vector<48x8xf32>, vector<48x48xf32> -> vector<48x48xf32>
    %251 = arith.addf %250, %5 : vector<48x48xf32>
    %cst_107 = arith.constant dense<0xFF800000> : vector<48xf32>
    %252 = vector.multi_reduction <maximumf>, %251, %cst_107 [1] : vector<48x48xf32> to vector<48xf32>
    %253 = vector.shape_cast %252 : vector<48xf32> to vector<48x1xf32>
    %254 = vector.broadcast %253 : vector<48x1xf32> to vector<48x48xf32>
    %255 = arith.subf %251, %254 : vector<48x48xf32>
    %256 = math.exp %255 : vector<48x48xf32>
    %cst_108 = arith.constant dense<0.000000e+00> : vector<48xf32>
    %257 = vector.multi_reduction <add>, %256, %cst_108 [1] : vector<48x48xf32> to vector<48xf32>
    %258 = vector.shape_cast %257 : vector<48xf32> to vector<48x1xf32>
    %259 = tpu.reciprocal %258 {approx = true} : vector<48x1xf32> -> vector<48x1xf32>
    %260 = vector.broadcast %259 : vector<48x1xf32> to vector<48x48xf32>
    %261 = arith.mulf %256, %260 : vector<48x48xf32>
    %cst_109 = arith.constant dense<0.000000e+00> : vector<48x8xf32>
    %262 = tpu.matmul %261, %249, %cst_109 {dimension_numbers = #tpu.dot_dimension_numbers<[1], [0], [0], [1], [0, 0, 1, 1], [], []>} : vector<48x48xf32>, vector<48x8xf32>, vector<48x8xf32> -> vector<48x8xf32>
    %263 = tpu.concatenate %214, %230, %246, %262 in 1 : vector<48x8xf32>, vector<48x8xf32>, vector<48x8xf32>, vector<48x8xf32> -> vector<48x32xf32>
    %c1_110 = arith.constant 1 : index
    %c0_111 = arith.constant 0 : index
    %c0_112 = arith.constant 0 : index
    %264 = vector.load %arg8[%c1_110, %c0_111, %c0_112] : memref<2x32x32xf32, #tpu.memory_space<vmem>>, vector<1x32x32xf32>
    %265 = vector.shape_cast %264 : vector<1x32x32xf32> to vector<32x32xf32>
    %cst_113 = arith.constant dense<0.000000e+00> : vector<48x32xf32>
    %266 = tpu.matmul %263, %265, %cst_113 {dimension_numbers = #tpu.dot_dimension_numbers<[1], [0], [0], [1], [0, 0, 1, 1], [], []>} : vector<48x32xf32>, vector<32x32xf32>, vector<48x32xf32> -> vector<48x32xf32>
    %267 = arith.addf %165, %266 : vector<48x32xf32>
    %c1_114 = arith.constant 1 : index
    %c0_115 = arith.constant 0 : index
    %c0_116 = arith.constant 0 : index
    %268 = vector.load %arg9[%c1_114, %c0_115, %c0_116] : memref<2x1x32xf32, #tpu.memory_space<vmem>>, vector<1x1x32xf32>
    %269 = vector.shape_cast %268 : vector<1x1x32xf32> to vector<1x32xf32>
    %270 = vector.broadcast %269 : vector<1x32xf32> to vector<48x32xf32>
    %271 = arith.addf %267, %270 : vector<48x32xf32>
    %c1_117 = arith.constant 1 : index
    %c0_118 = arith.constant 0 : index
    %c0_119 = arith.constant 0 : index
    %272 = vector.load %arg10[%c1_117, %c0_118, %c0_119] : memref<2x1x32xf32, #tpu.memory_space<vmem>>, vector<1x1x32xf32>
    %273 = vector.shape_cast %272 : vector<1x1x32xf32> to vector<1x32xf32>
    %c1_120 = arith.constant 1 : index
    %c0_121 = arith.constant 0 : index
    %c0_122 = arith.constant 0 : index
    %274 = vector.load %arg11[%c1_120, %c0_121, %c0_122] : memref<2x1x32xf32, #tpu.memory_space<vmem>>, vector<1x1x32xf32>
    %275 = vector.shape_cast %274 : vector<1x1x32xf32> to vector<1x32xf32>
    %cst_123 = arith.constant dense<0.000000e+00> : vector<48xf32>
    %276 = vector.multi_reduction <add>, %271, %cst_123 [1] : vector<48x32xf32> to vector<48xf32>
    %277 = vector.shape_cast %276 : vector<48xf32> to vector<48x1xf32>
    %cst_124 = arith.constant 3.200000e+01 : f32
    %278 = vector.broadcast %cst_124 : f32 to vector<48x1xf32>
    %279 = arith.divf %277, %278 : vector<48x1xf32>
    %280 = vector.broadcast %279 : vector<48x1xf32> to vector<48x32xf32>
    %281 = arith.subf %271, %280 : vector<48x32xf32>
    %282 = arith.mulf %281, %281 : vector<48x32xf32>
    %cst_125 = arith.constant dense<0.000000e+00> : vector<48xf32>
    %283 = vector.multi_reduction <add>, %282, %cst_125 [1] : vector<48x32xf32> to vector<48xf32>
    %284 = vector.shape_cast %283 : vector<48xf32> to vector<48x1xf32>
    %cst_126 = arith.constant 3.200000e+01 : f32
    %285 = vector.broadcast %cst_126 : f32 to vector<48x1xf32>
    %286 = arith.divf %284, %285 : vector<48x1xf32>
    %287 = vector.broadcast %279 : vector<48x1xf32> to vector<48x32xf32>
    %288 = arith.subf %271, %287 : vector<48x32xf32>
    %cst_127 = arith.constant 9.99999974E-6 : f32
    %289 = vector.broadcast %cst_127 : f32 to vector<48x1xf32>
    %290 = arith.addf %286, %289 : vector<48x1xf32>
    %291 = math.rsqrt %290 : vector<48x1xf32>
    %292 = vector.broadcast %291 : vector<48x1xf32> to vector<48x32xf32>
    %293 = arith.mulf %288, %292 : vector<48x32xf32>
    %294 = vector.broadcast %273 : vector<1x32xf32> to vector<48x32xf32>
    %295 = arith.mulf %293, %294 : vector<48x32xf32>
    %296 = vector.broadcast %275 : vector<1x32xf32> to vector<48x32xf32>
    %297 = arith.addf %295, %296 : vector<48x32xf32>
    %c1_128 = arith.constant 1 : index
    %c0_129 = arith.constant 0 : index
    %c0_130 = arith.constant 0 : index
    %298 = vector.load %arg12[%c1_128, %c0_129, %c0_130] : memref<2x32x128xf32, #tpu.memory_space<vmem>>, vector<1x32x128xf32>
    %299 = vector.shape_cast %298 : vector<1x32x128xf32> to vector<32x128xf32>
    %cst_131 = arith.constant dense<0.000000e+00> : vector<48x128xf32>
    %300 = tpu.matmul %297, %299, %cst_131 {dimension_numbers = #tpu.dot_dimension_numbers<[1], [0], [0], [1], [0, 0, 1, 1], [], []>} : vector<48x32xf32>, vector<32x128xf32>, vector<48x128xf32> -> vector<48x128xf32>
    %c1_132 = arith.constant 1 : index
    %c0_133 = arith.constant 0 : index
    %c0_134 = arith.constant 0 : index
    %301 = vector.load %arg13[%c1_132, %c0_133, %c0_134] : memref<2x1x128xf32, #tpu.memory_space<vmem>>, vector<1x1x128xf32>
    %302 = vector.shape_cast %301 : vector<1x1x128xf32> to vector<1x128xf32>
    %303 = vector.broadcast %302 : vector<1x128xf32> to vector<48x128xf32>
    %304 = arith.addf %300, %303 : vector<48x128xf32>
    %cst_135 = arith.constant 5.000000e-01 : f32
    %305 = vector.broadcast %cst_135 : f32 to vector<48x128xf32>
    %306 = arith.mulf %305, %304 : vector<48x128xf32>
    %cst_136 = arith.constant 4.471500e-02 : f32
    %307 = vector.broadcast %cst_136 : f32 to vector<48x128xf32>
    %308 = arith.mulf %307, %304 : vector<48x128xf32>
    %309 = arith.mulf %308, %304 : vector<48x128xf32>
    %310 = arith.mulf %309, %304 : vector<48x128xf32>
    %311 = arith.addf %304, %310 : vector<48x128xf32>
    %cst_137 = arith.constant 0.797884583 : f32
    %312 = vector.broadcast %cst_137 : f32 to vector<48x128xf32>
    %313 = arith.mulf %312, %311 : vector<48x128xf32>
    %314 = math.tanh %313 : vector<48x128xf32>
    %cst_138 = arith.constant 1.000000e+00 : f32
    %315 = vector.broadcast %cst_138 : f32 to vector<48x128xf32>
    %316 = arith.addf %315, %314 : vector<48x128xf32>
    %317 = arith.mulf %306, %316 : vector<48x128xf32>
    %c1_139 = arith.constant 1 : index
    %c0_140 = arith.constant 0 : index
    %c0_141 = arith.constant 0 : index
    %318 = vector.load %arg14[%c1_139, %c0_140, %c0_141] : memref<2x128x32xf32, #tpu.memory_space<vmem>>, vector<1x128x32xf32>
    %319 = vector.shape_cast %318 : vector<1x128x32xf32> to vector<128x32xf32>
    %cst_142 = arith.constant dense<0.000000e+00> : vector<48x32xf32>
    %320 = tpu.matmul %317, %319, %cst_142 {dimension_numbers = #tpu.dot_dimension_numbers<[1], [0], [0], [1], [0, 0, 1, 1], [], []>} : vector<48x128xf32>, vector<128x32xf32>, vector<48x32xf32> -> vector<48x32xf32>
    %321 = arith.addf %271, %320 : vector<48x32xf32>
    %c1_143 = arith.constant 1 : index
    %c0_144 = arith.constant 0 : index
    %c0_145 = arith.constant 0 : index
    %322 = vector.load %arg15[%c1_143, %c0_144, %c0_145] : memref<2x1x32xf32, #tpu.memory_space<vmem>>, vector<1x1x32xf32>
    %323 = vector.shape_cast %322 : vector<1x1x32xf32> to vector<1x32xf32>
    %324 = vector.broadcast %323 : vector<1x32xf32> to vector<48x32xf32>
    %325 = arith.addf %321, %324 : vector<48x32xf32>
    %c0_146 = arith.constant 0 : index
    %c0_147 = arith.constant 0 : index
    %326 = vector.load %arg16[%c0_146, %c0_147] : memref<1x32xf32, #tpu.memory_space<vmem>>, vector<1x32xf32>
    %c0_148 = arith.constant 0 : index
    %c0_149 = arith.constant 0 : index
    %327 = vector.load %arg17[%c0_148, %c0_149] : memref<1x32xf32, #tpu.memory_space<vmem>>, vector<1x32xf32>
    %cst_150 = arith.constant dense<0.000000e+00> : vector<48xf32>
    %328 = vector.multi_reduction <add>, %325, %cst_150 [1] : vector<48x32xf32> to vector<48xf32>
    %329 = vector.shape_cast %328 : vector<48xf32> to vector<48x1xf32>
    %cst_151 = arith.constant 3.200000e+01 : f32
    %330 = vector.broadcast %cst_151 : f32 to vector<48x1xf32>
    %331 = arith.divf %329, %330 : vector<48x1xf32>
    %332 = vector.broadcast %331 : vector<48x1xf32> to vector<48x32xf32>
    %333 = arith.subf %325, %332 : vector<48x32xf32>
    %334 = arith.mulf %333, %333 : vector<48x32xf32>
    %cst_152 = arith.constant dense<0.000000e+00> : vector<48xf32>
    %335 = vector.multi_reduction <add>, %334, %cst_152 [1] : vector<48x32xf32> to vector<48xf32>
    %336 = vector.shape_cast %335 : vector<48xf32> to vector<48x1xf32>
    %cst_153 = arith.constant 3.200000e+01 : f32
    %337 = vector.broadcast %cst_153 : f32 to vector<48x1xf32>
    %338 = arith.divf %336, %337 : vector<48x1xf32>
    %339 = vector.broadcast %331 : vector<48x1xf32> to vector<48x32xf32>
    %340 = arith.subf %325, %339 : vector<48x32xf32>
    %cst_154 = arith.constant 9.99999974E-6 : f32
    %341 = vector.broadcast %cst_154 : f32 to vector<48x1xf32>
    %342 = arith.addf %338, %341 : vector<48x1xf32>
    %343 = math.rsqrt %342 : vector<48x1xf32>
    %344 = vector.broadcast %343 : vector<48x1xf32> to vector<48x32xf32>
    %345 = arith.mulf %340, %344 : vector<48x32xf32>
    %346 = vector.broadcast %326 : vector<1x32xf32> to vector<48x32xf32>
    %347 = arith.mulf %345, %346 : vector<48x32xf32>
    %348 = vector.broadcast %327 : vector<1x32xf32> to vector<48x32xf32>
    %349 = arith.addf %347, %348 : vector<48x32xf32>
    %350 = vector.extract_strided_slice %349 {offsets = [0, 0], sizes = [17, 32], strides = [1, 1]} : vector<48x32xf32> to vector<17x32xf32>
    %c0_155 = arith.constant 0 : index
    %c0_156 = arith.constant 0 : index
    %c0_157 = arith.constant 0 : index
    %351 = vector.load %arg18[%c0_155, %c0_156, %c0_157] : memref<2x17x32xf32, #tpu.memory_space<vmem>>, vector<1x17x32xf32>
    %352 = vector.shape_cast %351 : vector<1x17x32xf32> to vector<17x32xf32>
    %353 = vector.shape_cast %350 : vector<17x32xf32> to vector<1x17x32xf32>
    tpu.vector_store %arg18[%c0_155, %c0_156, %c0_157], %353 {strides = array<i32>} : memref<2x17x32xf32, #tpu.memory_space<vmem>>, vector<1x17x32xf32>,
    %354 = vector.extract_strided_slice %349 {offsets = [24, 0], sizes = [17, 32], strides = [1, 1]} : vector<48x32xf32> to vector<17x32xf32>
    %c1_158 = arith.constant 1 : index
    %c0_159 = arith.constant 0 : index
    %c0_160 = arith.constant 0 : index
    %355 = vector.load %arg18[%c1_158, %c0_159, %c0_160] : memref<2x17x32xf32, #tpu.memory_space<vmem>>, vector<1x17x32xf32>
    %356 = vector.shape_cast %355 : vector<1x17x32xf32> to vector<17x32xf32>
    %357 = vector.shape_cast %354 : vector<17x32xf32> to vector<1x17x32xf32>
    tpu.vector_store %arg18[%c1_158, %c0_159, %c0_160], %357 {strides = array<i32>} : memref<2x17x32xf32, #tpu.memory_space<vmem>>, vector<1x17x32xf32>,
    return
  }
}

</mosaic_0001>

<llo_original>
// kernel: vit_forward.1
$region0: #{vit_forward.1}
  #allocation0 [shape = 'u32[]', space=smem, size = 0x4, offset = 0x4, fixed_abs, tag = 'smem constant byte address 0x4 - core index']
  #allocation1 [shape = 'u32[144,128]{1,0:T(1,128)}', space=vmem, size = 0x12000, scoped, tag = 'internal scratch']
  %s0 = inlined_call_operand.vmem [shape: f32[48,64], index: 0, kind: input, shape index: {}]
  %s1 = inlined_call_operand.vmem [shape: f32[64,32], index: 1, kind: input, shape index: {}]
  %s2 = inlined_call_operand.vmem [shape: f32[48,32], index: 2, kind: input, shape index: {}]
  %s3 = inlined_call_operand.vmem [shape: f32[48,48], index: 3, kind: input, shape index: {}]
  %s4 = inlined_call_operand.vmem [shape: f32[2,1,32], index: 4, kind: input, shape index: {}]
  %s5 = inlined_call_operand.vmem [shape: f32[2,1,32], index: 5, kind: input, shape index: {}]
  %s6 = inlined_call_operand.vmem [shape: f32[2,32,96], index: 6, kind: input, shape index: {}]
  %s7 = inlined_call_operand.vmem [shape: f32[2,1,96], index: 7, kind: input, shape index: {}]
  %s8 = inlined_call_operand.vmem [shape: f32[2,32,32], index: 8, kind: input, shape index: {}]
  %s9 = inlined_call_operand.vmem [shape: f32[2,1,32], index: 9, kind: input, shape index: {}]
  %s10 = inlined_call_operand.vmem [shape: f32[2,1,32], index: 10, kind: input, shape index: {}]
  %s11 = inlined_call_operand.vmem [shape: f32[2,1,32], index: 11, kind: input, shape index: {}]
  %s12 = inlined_call_operand.vmem [shape: f32[2,32,128], index: 12, kind: input, shape index: {}]
  %s13 = inlined_call_operand.vmem [shape: f32[2,1,128], index: 13, kind: input, shape index: {}]
  %s14 = inlined_call_operand.vmem [shape: f32[2,128,32], index: 14, kind: input, shape index: {}]
  %s15 = inlined_call_operand.vmem [shape: f32[2,1,32], index: 15, kind: input, shape index: {}]
  %s16 = inlined_call_operand.vmem [shape: f32[1,32], index: 16, kind: input, shape index: {}]
  %s17 = inlined_call_operand.vmem [shape: f32[1,32], index: 17, kind: input, shape index: {}]
  %s18 = inlined_call_operand.vmem [shape: f32[2,17,32], index: 18, kind: output, shape index: {}]
  %s19 = sld [smem:[#allocation0]]
  $region82: #{vit_forward.1} parent=0
    _
  %s21 = ssub.s32 1, %s19
  %s22 = scalar_select 0, %s21, %s19
  // Predicated region
  $region2: #{vit_forward.1} parent=0 // pred_check
    _
  $region3: #{vit_forward.1} parent=0 // pred_check_branch
    %24 = sbr.rel (0) target = $region5
  $region4: #{vit_forward.1} parent=0 // pred_region
    _
  $region5: #{vit_forward.1} parent=0 // pred_fallthru
    _
  // Predicated region
  $region6: #{vit_forward.1} parent=0 // pred_check
    _
  $region7: #{vit_forward.1} parent=0 // pred_check_branch
    %26 = sbr.rel (0) target = $region9
  $region8: #{vit_forward.1} parent=0 // pred_region
    _
  $region9: #{vit_forward.1} parent=0 // pred_fallthru
    _
  // Predicated region
  $region10: #{vit_forward.1} parent=0 // pred_check
    _
  $region11: #{vit_forward.1} parent=0 // pred_check_branch
    %28 = sbr.rel (0) target = $region13
  $region12: #{vit_forward.1} parent=0 // pred_region
    _
  $region13: #{vit_forward.1} parent=0 // pred_fallthru
    _
  // Predicated region
  $region14: #{vit_forward.1} parent=0 // pred_check
    _
  $region15: #{vit_forward.1} parent=0 // pred_check_branch
    %30 = sbr.rel (0) target = $region17
  $region16: #{vit_forward.1} parent=0 // pred_region
    _
  $region17: #{vit_forward.1} parent=0 // pred_fallthru
    _
  // Predicated region
  $region18: #{vit_forward.1} parent=0 // pred_check
    _
  $region19: #{vit_forward.1} parent=0 // pred_check_branch
    %32 = sbr.rel (0) target = $region21
  $region20: #{vit_forward.1} parent=0 // pred_region
    _
  $region21: #{vit_forward.1} parent=0 // pred_fallthru
    _
  // Predicated region
  $region22: #{vit_forward.1} parent=0 // pred_check
    _
  $region23: #{vit_forward.1} parent=0 // pred_check_branch
    %34 = sbr.rel (0) target = $region25
  $region24: #{vit_forward.1} parent=0 // pred_region
    _
  $region25: #{vit_forward.1} parent=0 // pred_fallthru
    _
  // Predicated region
  $region26: #{vit_forward.1} parent=0 // pred_check
    _
  $region27: #{vit_forward.1} parent=0 // pred_check_branch
    %36 = sbr.rel (0) target = $region29
  $region28: #{vit_forward.1} parent=0 // pred_region
    _
  $region29: #{vit_forward.1} parent=0 // pred_fallthru
    _
  // Predicated region
  $region30: #{vit_forward.1} parent=0 // pred_check
    _
  $region31: #{vit_forward.1} parent=0 // pred_check_branch
    %38 = sbr.rel (0) target = $region33
  $region32: #{vit_forward.1} parent=0 // pred_region
    _
  $region33: #{vit_forward.1} parent=0 // pred_fallthru
    _
  // Predicated region
  $region34: #{vit_forward.1} parent=0 // pred_check
    _
  $region35: #{vit_forward.1} parent=0 // pred_check_branch
    %40 = sbr.rel (0) target = $region37
  $region36: #{vit_forward.1} parent=0 // pred_region
    _
  $region37: #{vit_forward.1} parent=0 // pred_fallthru
    _
  // Predicated region
  $region38: #{vit_forward.1} parent=0 // pred_check
    _
  $region39: #{vit_forward.1} parent=0 // pred_check_branch
    %42 = sbr.rel (0) target = $region41
  $region40: #{vit_forward.1} parent=0 // pred_region
    _
  $region41: #{vit_forward.1} parent=0 // pred_fallthru
    _
  // Predicated region
  $region42: #{vit_forward.1} parent=0 // pred_check
    _
  $region43: #{vit_forward.1} parent=0 // pred_check_branch
    %44 = sbr.rel (0) target = $region45
  $region44: #{vit_forward.1} parent=0 // pred_region
    _
  $region45: #{vit_forward.1} parent=0 // pred_fallthru
    _
  // Predicated region
  $region46: #{vit_forward.1} parent=0 // pred_check
    _
  $region47: #{vit_forward.1} parent=0 // pred_check_branch
    %46 = sbr.rel (0) target = $region49
  $region48: #{vit_forward.1} parent=0 // pred_region
    _
  $region49: #{vit_forward.1} parent=0 // pred_fallthru
    _
  // Predicated region
  $region50: #{vit_forward.1} parent=0 // pred_check
    _
  $region51: #{vit_forward.1} parent=0 // pred_check_branch
    %48 = sbr.rel (0) target = $region53
  $region52: #{vit_forward.1} parent=0 // pred_region
    _
  $region53: #{vit_forward.1} parent=0 // pred_fallthru
    _
  // Predicated region
  $region54: #{vit_forward.1} parent=0 // pred_check
    _
  $region55: #{vit_forward.1} parent=0 // pred_check_branch
    %50 = sbr.rel (0) target = $region57
  $region56: #{vit_forward.1} parent=0 // pred_region
    _
  $region57: #{vit_forward.1} parent=0 // pred_fallthru
    _
  // Predicated region
  $region58: #{vit_forward.1} parent=0 // pred_check
    _
  $region59: #{vit_forward.1} parent=0 // pred_check_branch
    %52 = sbr.rel (0) target = $region61
  $region60: #{vit_forward.1} parent=0 // pred_region
    _
  $region61: #{vit_forward.1} parent=0 // pred_fallthru
    _
  // Predicated region
  $region62: #{vit_forward.1} parent=0 // pred_check
    _
  $region63: #{vit_forward.1} parent=0 // pred_check_branch
    %54 = sbr.rel (0) target = $region65
  $region64: #{vit_forward.1} parent=0 // pred_region
    _
  $region65: #{vit_forward.1} parent=0 // pred_fallthru
    _
  // Predicated region
  $region66: #{vit_forward.1} parent=0 // pred_check
    _
  $region67: #{vit_forward.1} parent=0 // pred_check_branch
    %56 = sbr.rel (0) target = $region69
  $region68: #{vit_forward.1} parent=0 // pred_region
    _
  $region69: #{vit_forward.1} parent=0 // pred_fallthru
    _
  // Predicated region
  $region70: #{vit_forward.1} parent=0 // pred_check
    _
  $region71: #{vit_forward.1} parent=0 // pred_check_branch
    %58 = sbr.rel (0) target = $region73
  $region72: #{vit_forward.1} parent=0 // pred_region
    _
  $region73: #{vit_forward.1} parent=0 // pred_fallthru
    _
  %v59 = vld [vmem:[%s0] sm:$0xff]
  %v60 = vld [vmem:[%s0 + $0x8] sm:$0xff]
  %v61 = vld [vmem:[%s0 + $0x10] sm:$0xff]
  %v62 = vld [vmem:[%s0 + $0x18] sm:$0xff]
  %v63 = vld [vmem:[%s0 + $0x20] sm:$0xff]
  %v64 = vld [vmem:[%s0 + $0x28] sm:$0xff]
  %v65 = vld [vmem:[%s1] sm:$0xff]
  %v66 = vld [vmem:[%s1 + $0x8] sm:$0xff]
  %v67 = vld [vmem:[%s1 + $0x10] sm:$0xff]
  %v68 = vld [vmem:[%s1 + $0x18] sm:$0xff]
  %v69 = vld [vmem:[%s1 + $0x20] sm:$0xff]
  %v70 = vld [vmem:[%s1 + $0x28] sm:$0xff]
  %v71 = vld [vmem:[%s1 + $0x30] sm:$0xff]
  %v72 = vld [vmem:[%s1 + $0x38] sm:$0xff]
  %v73 = vld [vmem:[%s2] sm:$0xff]
  %v74 = vld [vmem:[%s2 + $0x8] sm:$0xff]
  %v75 = vld [vmem:[%s2 + $0x10] sm:$0xff]
  %v76 = vld [vmem:[%s2 + $0x18] sm:$0xff]
  %v77 = vld [vmem:[%s2 + $0x20] sm:$0xff]
  %v78 = vld [vmem:[%s2 + $0x28] sm:$0xff]
  %vm79 = vcmask 523264
  %v81 = vsel %vm79, %v59, 0
  %v84 = vsel %vm79, %v60, 0
  %v87 = vsel %vm79, %v61, 0
  %v90 = vsel %vm79, %v62, 0
  %v93 = vsel %vm79, %v63, 0
  %v96 = vsel %vm79, %v64, 0
  %98 = vmatprep.subr.mxu0 0.0
  %99 = vmatpush1.msra.mxu0 %v65
  %100 = vmatprep.subr.mxu0 0.0
  %101 = vmatpush1.msra.mxu0 %v66
  %102 = vmatprep.subr.mxu0 0.0
  %103 = vmatpush1.msra.mxu0 %v67
  %104 = vmatprep.subr.mxu0 0.0
  %105 = vmatpush1.msra.mxu0 %v68
  %106 = vmatprep.subr.mxu0 0.0
  %107 = vmatpush1.msra.mxu0 %v69
  %108 = vmatprep.subr.mxu0 0.0
  %109 = vmatpush1.msra.mxu0 %v70
  %110 = vmatprep.subr.mxu0 0.0
  %111 = vmatpush1.msra.mxu0 %v71
  %112 = vmatprep.subr.mxu0 0.0
  %113 = vmatpush1.msra.mxu0 %v72
  %114 = vmatprep.subr.mxu0 0.0
  %115 = vmatpush1.msra.mxu0 0.0
  %116 = vmatprep.subr.mxu0 0.0
  %117 = vmatpush1.msra.mxu0 0.0
  %118 = vmatprep.subr.mxu0 0.0
  %119 = vmatpush1.msra.mxu0 0.0
  %120 = vmatprep.subr.mxu0 0.0
  %121 = vmatpush1.msra.mxu0 0.0
  %122 = vmatprep.subr.mxu0 0.0
  %123 = vmatpush1.msra.mxu0 0.0
  %124 = vmatprep.subr.mxu0 0.0
  %125 = vmatpush1.msra.mxu0 0.0
  %126 = vmatprep.subr.mxu0 0.0
  %127 = vmatpush1.msra.mxu0 0.0
  %128 = vmatprep.subr.mxu0 0.0
  %129 = vmatpush1.msra.mxu0 0.0
  %130 = vmatprep.subr.mxu0 0.0
  %131 = vmatpush1.msra.mxu0 0.0
  %132 = vmatprep.subr.mxu0 0.0
  %133 = vmatpush1.msra.mxu0 0.0
  %134 = vmatprep.subr.mxu0 0.0
  %135 = vmatpush1.msra.mxu0 0.0
  %136 = vmatprep.subr.mxu0 0.0
  %137 = vmatpush1.msra.mxu0 0.0
  %138 = vmatprep.subr.mxu0 0.0
  %139 = vmatpush1.msra.mxu0 0.0
  %140 = vmatprep.subr.mxu0 0.0
  %141 = vmatpush1.msra.mxu0 0.0
  %142 = vmatprep.subr.mxu0 0.0
  %143 = vmatpush1.msra.mxu0 0.0
  %144 = vmatprep.subr.mxu0 0.0
  %145 = vmatpush1.msra.mxu0 0.0
  %146 = vmatprep.subr.mxu0 0.0
  %147 = vmatpush1.msra.mxu0 0.0
  %148 = vmatprep.subr.mxu0 0.0
  %149 = vmatpush1.msra.mxu0 0.0
  %150 = vmatprep.subr.mxu0 0.0
  %151 = vmatpush1.msra.mxu0 0.0
  %152 = vmatprep.subr.mxu0 0.0
  %153 = vmatpush1.msra.mxu0 0.0
  %154 = vmatprep.subr.mxu0 0.0
  %155 = vmatpush1.msra.mxu0 0.0
  %156 = vmatprep.subr.mxu0 0.0
  %157 = vmatpush1.msra.mxu0 0.0
  %158 = vmatprep.subr.mxu0 0.0
  %159 = vmatpush1.msra.mxu0 0.0
  %160 = vmatprep.subr.mxu0 0.0
  %161 = vmatpush1.msra.mxu0 0.0
  %162 = vmatprep.mubr.f32.mxu0 0.0
  %163 = vmatmul.mubr.f32.gmra.mrb[0].mxu0 %v81
  %v164 = vpop.f32.mrb[0].mxu0
  %v165 = vadd.f32 %v73, %v164
  %v166 = vpop.f32.mrb[0].mxu0
  %167 = vmatprep.mubr.f32.mxu0 0.0
  %168 = vmatmul.mubr.f32.gmra.mrb[0].mxu0 %v84
  %v169 = vpop.f32.mrb[0].mxu0
  %v170 = vadd.f32 %v74, %v169
  %v171 = vpop.f32.mrb[0].mxu0
  %172 = vmatprep.mubr.f32.mxu0 0.0
  %173 = vmatmul.mubr.f32.gmra.mrb[0].mxu0 %v87
  %v174 = vpop.f32.mrb[0].mxu0
  %v175 = vadd.f32 %v75, %v174
  %v176 = vpop.f32.mrb[0].mxu0
  %177 = vmatprep.mubr.f32.mxu0 0.0
  %178 = vmatmul.mubr.f32.gmra.mrb[0].mxu0 %v90
  %v179 = vpop.f32.mrb[0].mxu0
  %v180 = vadd.f32 %v76, %v179
  %v181 = vpop.f32.mrb[0].mxu0
  %182 = vmatprep.mubr.f32.mxu0 0.0
  %183 = vmatmul.mubr.f32.gmra.mrb[0].mxu0 %v93
  %v184 = vpop.f32.mrb[0].mxu0
  %v185 = vadd.f32 %v77, %v184
  %v186 = vpop.f32.mrb[0].mxu0
  %187 = vmatprep.mubr.f32.mxu0 0.0
  %188 = vmatmul.mubr.f32.gmra.mrb[0].mxu0 %v96
  %v189 = vpop.f32.mrb[0].mxu0
  %v190 = vadd.f32 %v78, %v189
  %v191 = vpop.f32.mrb[0].mxu0
  %192 = vdwg.mxu0
  %v193 = vld [vmem:[%s3] sm:$0xff]
  %v194 = vld [vmem:[%s3 + $0x8] sm:$0xff]
  %v195 = vld [vmem:[%s3 + $0x10] sm:$0xff]
  %v196 = vld [vmem:[%s3 + $0x18] sm:$0xff]
  %v197 = vld [vmem:[%s3 + $0x20] sm:$0xff]
  %v198 = vld [vmem:[%s3 + $0x28] sm:$0xff]
  %v199 = vld [vmem:[%s4] sm:$0x1]
  %v200 = vld [vmem:[%s5] sm:$0x1]
  %vm201 = vcmask 261120
  %v202 = vsel %vm201, %v165, 0.0
  %203 = vadd.xlane.f32.xlu0 %v202
  %v204 = vpop.xlane.xlu0 %203
  %v205 = vsel %vm201, %v170, 0.0
  %206 = vadd.xlane.f32.xlu0 %v205
  %v207 = vpop.xlane.xlu0 %206
  %v208 = vsel %vm201, %v175, 0.0
  %209 = vadd.xlane.f32.xlu0 %v208
  %v210 = vpop.xlane.xlu0 %209
  %v211 = vsel %vm201, %v180, 0.0
  %212 = vadd.xlane.f32.xlu0 %v211
  %v213 = vpop.xlane.xlu0 %212
  %v214 = vsel %vm201, %v185, 0.0
  %215 = vadd.xlane.f32.xlu0 %v214
  %v216 = vpop.xlane.xlu0 %215
  %v217 = vsel %vm201, %v190, 0.0
  %218 = vadd.xlane.f32.xlu0 %v217
  %v219 = vpop.xlane.xlu0 %218
  %v220 = vrcp.pop 32.0
  %v221 = vmul.f32 %v204, %v220
  %v222 = vmul.f32 %v207, %v220
  %v223 = vmul.f32 %v210, %v220
  %v224 = vmul.f32 %v213, %v220
  %v225 = vmul.f32 %v216, %v220
  %v226 = vmul.f32 %v219, %v220
  %v227 = vsub.f32 %v165, %v221
  %v228 = vsub.f32 %v170, %v222
  %v229 = vsub.f32 %v175, %v223
  %v230 = vsub.f32 %v180, %v224
  %v231 = vsub.f32 %v185, %v225
  %v232 = vsub.f32 %v190, %v226
  %v233 = vmul.f32 %v227, %v227
  %v234 = vmul.f32 %v228, %v228
  %v235 = vmul.f32 %v229, %v229
  %v236 = vmul.f32 %v230, %v230
  %v237 = vmul.f32 %v231, %v231
  %v238 = vmul.f32 %v232, %v232
  %v239 = vsel %vm201, %v233, 0.0
  %240 = vadd.xlane.f32.xlu0 %v239
  %v241 = vpop.xlane.xlu0 %240
  %v242 = vsel %vm201, %v234, 0.0
  %243 = vadd.xlane.f32.xlu0 %v242
  %v244 = vpop.xlane.xlu0 %243
  %v245 = vsel %vm201, %v235, 0.0
  %246 = vadd.xlane.f32.xlu0 %v245
  %v247 = vpop.xlane.xlu0 %246
  %v248 = vsel %vm201, %v236, 0.0
  %249 = vadd.xlane.f32.xlu0 %v248
  %v250 = vpop.xlane.xlu0 %249
  %v251 = vsel %vm201, %v237, 0.0
  %252 = vadd.xlane.f32.xlu0 %v251
  %v253 = vpop.xlane.xlu0 %252
  %v254 = vsel %vm201, %v238, 0.0
  %255 = vadd.xlane.f32.xlu0 %v254
  %v256 = vpop.xlane.xlu0 %255
  %v257 = vmul.f32 %v241, %v220
  %v258 = vmul.f32 %v244, %v220
  %v259 = vmul.f32 %v247, %v220
  %v260 = vmul.f32 %v250, %v220
  %v261 = vmul.f32 %v253, %v220
  %v262 = vmul.f32 %v256, %v220
  %v263 = vadd.f32 %v257, 1e-05
  %v264 = vadd.f32 %v258, 1e-05
  %v265 = vadd.f32 %v259, 1e-05
  %v266 = vadd.f32 %v260, 1e-05
  %v267 = vadd.f32 %v261, 1e-05
  %v268 = vadd.f32 %v262, 1e-05
  %v269 = vrsqrt.pop %v263
  %v270 = vrsqrt.pop %v264
  %v271 = vrsqrt.pop %v265
  %v272 = vrsqrt.pop %v266
  %v273 = vrsqrt.pop %v267
  %v274 = vrsqrt.pop %v268
  %v275 = vmul.f32 %v227, %v269
  %v276 = vmul.f32 %v228, %v270
  %v277 = vmul.f32 %v229, %v271
  %v278 = vmul.f32 %v230, %v272
  %v279 = vmul.f32 %v231, %v273
  %v280 = vmul.f32 %v232, %v274
  %v282 = vlaneseq
  %v283 = vshrl.u32 %v282, 7
  %v284 = vsub.s32 0, %v283
  %v285 = vrot.slane %v199, %v284
  %v287 = vmul.f32 %v275, %v285
  %v288 = vmul.f32 %v276, %v285
  %v289 = vmul.f32 %v277, %v285
  %v290 = vmul.f32 %v278, %v285
  %v291 = vmul.f32 %v279, %v285
  %v292 = vmul.f32 %v280, %v285
  %v294 = vlaneseq
  %v295 = vshrl.u32 %v294, 7
  %v296 = vsub.s32 0, %v295
  %v297 = vrot.slane %v200, %v296
  %v299 = vadd.f32 %v287, %v297
  %v300 = vadd.f32 %v288, %v297
  %v301 = vadd.f32 %v289, %v297
  %v302 = vadd.f32 %v290, %v297
  %v303 = vadd.f32 %v291, %v297
  %v304 = vadd.f32 %v292, %v297
  %v305 = vld [vmem:[%s6] sm:$0xff]
  %v306 = vld [vmem:[%s6 + $0x8] sm:$0xff]
  %v307 = vld [vmem:[%s6 + $0x10] sm:$0xff]
  %v308 = vld [vmem:[%s6 + $0x18] sm:$0xff]
  %v309 = vld [vmem:[%s7] sm:$0x1]
  %v311 = vlaneseq
  %v312 = vshrl.u32 %v311, 7
  %v313 = vsub.s32 0, %v312
  %v314 = vrot.slane %v309, %v313
  %v317 = vsel %vm201, %v299, 0
  %v320 = vsel %vm201, %v300, 0
  %v323 = vsel %vm201, %v301, 0
  %v326 = vsel %vm201, %v302, 0
  %v329 = vsel %vm201, %v303, 0
  %v332 = vsel %vm201, %v304, 0
  %334 = vmatprep.subr.mxu0 0.0
  %335 = vmatpush1.msra.mxu0 %v305
  %336 = vmatprep.subr.mxu0 0.0
  %337 = vmatpush1.msra.mxu0 %v306
  %338 = vmatprep.subr.mxu0 0.0
  %339 = vmatpush1.msra.mxu0 %v307
  %340 = vmatprep.subr.mxu0 0.0
  %341 = vmatpush1.msra.mxu0 %v308
  %342 = vmatprep.subr.mxu0 0.0
  %343 = vmatpush1.msra.mxu0 0.0
  %344 = vmatprep.subr.mxu0 0.0
  %345 = vmatpush1.msra.mxu0 0.0
  %346 = vmatprep.subr.mxu0 0.0
  %347 = vmatpush1.msra.mxu0 0.0
  %348 = vmatprep.subr.mxu0 0.0
  %349 = vmatpush1.msra.mxu0 0.0
  %350 = vmatprep.subr.mxu0 0.0
  %351 = vmatpush1.msra.mxu0 0.0
  %352 = vmatprep.subr.mxu0 0.0
  %353 = vmatpush1.msra.mxu0 0.0
  %354 = vmatprep.subr.mxu0 0.0
  %355 = vmatpush1.msra.mxu0 0.0
  %356 = vmatprep.subr.mxu0 0.0
  %357 = vmatpush1.msra.mxu0 0.0
  %358 = vmatprep.subr.mxu0 0.0
  %359 = vmatpush1.msra.mxu0 0.0
  %360 = vmatprep.subr.mxu0 0.0
  %361 = vmatpush1.msra.mxu0 0.0
  %362 = vmatprep.subr.mxu0 0.0
  %363 = vmatpush1.msra.mxu0 0.0
  %364 = vmatprep.subr.mxu0 0.0
  %365 = vmatpush1.msra.mxu0 0.0
  %366 = vmatprep.subr.mxu0 0.0
  %367 = vmatpush1.msra.mxu0 0.0
  %368 = vmatprep.subr.mxu0 0.0
  %369 = vmatpush1.msra.mxu0 0.0
  %370 = vmatprep.subr.mxu0 0.0
  %371 = vmatpush1.msra.mxu0 0.0
  %372 = vmatprep.subr.mxu0 0.0
  %373 = vmatpush1.msra.mxu0 0.0
  %374 = vmatprep.subr.mxu0 0.0
  %375 = vmatpush1.msra.mxu0 0.0
  %376 = vmatprep.subr.mxu0 0.0
  %377 = vmatpush1.msra.mxu0 0.0
  %378 = vmatprep.subr.mxu0 0.0
  %379 = vmatpush1.msra.mxu0 0.0
  %380 = vmatprep.subr.mxu0 0.0
  %381 = vmatpush1.msra.mxu0 0.0
  %382 = vmatprep.subr.mxu0 0.0
  %383 = vmatpush1.msra.mxu0 0.0
  %384 = vmatprep.subr.mxu0 0.0
  %385 = vmatpush1.msra.mxu0 0.0
  %386 = vmatprep.subr.mxu0 0.0
  %387 = vmatpush1.msra.mxu0 0.0
  %388 = vmatprep.subr.mxu0 0.0
  %389 = vmatpush1.msra.mxu0 0.0
  %390 = vmatprep.subr.mxu0 0.0
  %391 = vmatpush1.msra.mxu0 0.0
  %392 = vmatprep.subr.mxu0 0.0
  %393 = vmatpush1.msra.mxu0 0.0
  %394 = vmatprep.subr.mxu0 0.0
  %395 = vmatpush1.msra.mxu0 0.0
  %396 = vmatprep.subr.mxu0 0.0
  %397 = vmatpush1.msra.mxu0 0.0
  %398 = vmatprep.mubr.f32.mxu0 0.0
  %399 = vmatmul.mubr.f32.gmra.mrb[0].mxu0 %v317
  %v400 = vpop.f32.mrb[0].mxu0
  %v401 = vadd.f32 %v314, %v400
  %v402 = vpop.f32.mrb[0].mxu0
  %403 = vmatprep.mubr.f32.mxu0 0.0
  %404 = vmatmul.mubr.f32.gmra.mrb[0].mxu0 %v320
  %v405 = vpop.f32.mrb[0].mxu0
  %v406 = vadd.f32 %v314, %v405
  %v407 = vpop.f32.mrb[0].mxu0
  %408 = vmatprep.mubr.f32.mxu0 0.0
  %409 = vmatmul.mubr.f32.gmra.mrb[0].mxu0 %v323
  %v410 = vpop.f32.mrb[0].mxu0
  %v411 = vadd.f32 %v314, %v410
  %v412 = vpop.f32.mrb[0].mxu0
  %413 = vmatprep.mubr.f32.mxu0 0.0
  %414 = vmatmul.mubr.f32.gmra.mrb[0].mxu0 %v326
  %v415 = vpop.f32.mrb[0].mxu0
  %v416 = vadd.f32 %v314, %v415
  %v417 = vpop.f32.mrb[0].mxu0
  %418 = vmatprep.mubr.f32.mxu0 0.0
  %419 = vmatmul.mubr.f32.gmra.mrb[0].mxu0 %v329
  %v420 = vpop.f32.mrb[0].mxu0
  %v421 = vadd.f32 %v314, %v420
  %v422 = vpop.f32.mrb[0].mxu0
  %423 = vmatprep.mubr.f32.mxu0 0.0
  %424 = vmatmul.mubr.f32.gmra.mrb[0].mxu0 %v332
  %v425 = vpop.f32.mrb[0].mxu0
  %v426 = vadd.f32 %v314, %v425
  %v427 = vpop.f32.mrb[0].mxu0
  %428 = vdwg.mxu0
  %435 = vrot.lane.b32.xlu0 %v401, 96
  %v436 = vpop.permute.xlu0 %435
  %437 = vrot.lane.b32.xlu0 %v406, 96
  %v438 = vpop.permute.xlu0 %437
  %439 = vrot.lane.b32.xlu0 %v411, 96
  %v440 = vpop.permute.xlu0 %439
  %441 = vrot.lane.b32.xlu0 %v416, 96
  %v442 = vpop.permute.xlu0 %441
  %443 = vrot.lane.b32.xlu0 %v421, 96
  %v444 = vpop.permute.xlu0 %443
  %445 = vrot.lane.b32.xlu0 %v426, 96
  %v446 = vpop.permute.xlu0 %445
  %vm447 = vcmask 64512
  %v448 = vsel %vm447, %v401, 0
  %v450 = vsel %vm447, %v406, 0
  %v452 = vsel %vm447, %v411, 0
  %v454 = vsel %vm447, %v416, 0
  %v456 = vsel %vm447, %v421, 0
  %v458 = vsel %vm447, %v426, 0
  %v460 = vsel %vm447, %v436, 0
  %v462 = vsel %vm447, %v438, 0
  %v464 = vsel %vm447, %v440, 0
  %v466 = vsel %vm447, %v442, 0
  %v468 = vsel %vm447, %v444, 0
  %v470 = vsel %vm447, %v446, 0
  %472 = vmatprep.subr.mxu0 0.0
  %473 = vmatpush1.xpose.msra.mxu0 %v460
  %474 = vmatprep.subr.mxu0 0.0
  %475 = vmatpush1.xpose.msra.mxu0 %v462
  %476 = vmatprep.subr.mxu0 0.0
  %477 = vmatpush1.xpose.msra.mxu0 %v464
  %478 = vmatprep.subr.mxu0 0.0
  %479 = vmatpush1.xpose.msra.mxu0 %v466
  %480 = vmatprep.subr.mxu0 0.0
  %481 = vmatpush1.xpose.msra.mxu0 %v468
  %482 = vmatprep.subr.mxu0 0.0
  %483 = vmatpush1.xpose.msra.mxu0 %v470
  %484 = vmatprep.subr.mxu0 0.0
  %485 = vmatpush1.xpose.msra.mxu0 0.0
  %486 = vmatprep.subr.mxu0 0.0
  %487 = vmatpush1.xpose.msra.mxu0 0.0
  %488 = vmatprep.subr.mxu0 0.0
  %489 = vmatpush1.xpose.msra.mxu0 0.0
  %490 = vmatprep.subr.mxu0 0.0
  %491 = vmatpush1.xpose.msra.mxu0 0.0
  %492 = vmatprep.subr.mxu0 0.0
  %493 = vmatpush1.xpose.msra.mxu0 0.0
  %494 = vmatprep.subr.mxu0 0.0
  %495 = vmatpush1.xpose.msra.mxu0 0.0
  %496 = vmatprep.subr.mxu0 0.0
  %497 = vmatpush1.xpose.msra.mxu0 0.0
  %498 = vmatprep.subr.mxu0 0.0
  %499 = vmatpush1.xpose.msra.mxu0 0.0
  %500 = vmatprep.subr.mxu0 0.0
  %501 = vmatpush1.xpose.msra.mxu0 0.0
  %502 = vmatprep.subr.mxu0 0.0
  %503 = vmatpush1.xpose.msra.mxu0 0.0
  %504 = vmatprep.subr.mxu0 0.0
  %505 = vmatpush1.xpose.msra.mxu0 0.0
  %506 = vmatprep.subr.mxu0 0.0
  %507 = vmatpush1.xpose.msra.mxu0 0.0
  %508 = vmatprep.subr.mxu0 0.0
  %509 = vmatpush1.xpose.msra.mxu0 0.0
  %510 = vmatprep.subr.mxu0 0.0
  %511 = vmatpush1.xpose.msra.mxu0 0.0
  %512 = vmatprep.subr.mxu0 0.0
  %513 = vmatpush1.xpose.msra.mxu0 0.0
  %514 = vmatprep.subr.mxu0 0.0
  %515 = vmatpush1.xpose.msra.mxu0 0.0
  %516 = vmatprep.subr.mxu0 0.0
  %517 = vmatpush1.xpose.msra.mxu0 0.0
  %518 = vmatprep.subr.mxu0 0.0
  %519 = vmatpush1.xpose.msra.mxu0 0.0
  %520 = vmatprep.subr.mxu0 0.0
  %521 = vmatpush1.xpose.msra.mxu0 0.0
  %522 = vmatprep.subr.mxu0 0.0
  %523 = vmatpush1.xpose.msra.mxu0 0.0
  %524 = vmatprep.subr.mxu0 0.0
  %525 = vmatpush1.xpose.msra.mxu0 0.0
  %526 = vmatprep.subr.mxu0 0.0
  %527 = vmatpush1.xpose.msra.mxu0 0.0
  %528 = vmatprep.subr.mxu0 0.0
  %529 = vmatpush1.xpose.msra.mxu0 0.0
  %530 = vmatprep.subr.mxu0 0.0
  %531 = vmatpush1.xpose.msra.mxu0 0.0
  %532 = vmatprep.subr.mxu0 0.0
  %533 = vmatpush1.xpose.msra.mxu0 0.0
  %534 = vmatprep.subr.mxu0 0.0
  %535 = vmatpush1.xpose.msra.mxu0 0.0
  %536 = vmatprep.mubr.f32.mxu0 0.0
  %537 = vmatmul.mubr.f32.gmra.mrb[0].mxu0 %v448
  %v538 = vpop.f32.mrb[0].mxu0
  %v539 = vadd.f32 %v193, %v538
  %v540 = vpop.f32.mrb[0].mxu0
  %541 = vmatprep.mubr.f32.mxu0 0.0
  %542 = vmatmul.mubr.f32.gmra.mrb[0].mxu0 %v450
  %v543 = vpop.f32.mrb[0].mxu0
  %v544 = vadd.f32 %v194, %v543
  %v545 = vpop.f32.mrb[0].mxu0
  %546 = vmatprep.mubr.f32.mxu0 0.0
  %547 = vmatmul.mubr.f32.gmra.mrb[0].mxu0 %v452
  %v548 = vpop.f32.mrb[0].mxu0
  %v549 = vadd.f32 %v195, %v548
  %v550 = vpop.f32.mrb[0].mxu0
  %551 = vmatprep.mubr.f32.mxu0 0.0
  %552 = vmatmul.mubr.f32.gmra.mrb[0].mxu0 %v454
  %v553 = vpop.f32.mrb[0].mxu0
  %v554 = vadd.f32 %v196, %v553
  %v555 = vpop.f32.mrb[0].mxu0
  %556 = vmatprep.mubr.f32.mxu0 0.0
  %557 = vmatmul.mubr.f32.gmra.mrb[0].mxu0 %v456
  %v558 = vpop.f32.mrb[0].mxu0
  %v559 = vadd.f32 %v197, %v558
  %v560 = vpop.f32.mrb[0].mxu0
  %561 = vmatprep.mubr.f32.mxu0 0.0
  %562 = vmatmul.mubr.f32.gmra.mrb[0].mxu0 %v458
  %v563 = vpop.f32.mrb[0].mxu0
  %v564 = vadd.f32 %v198, %v563
  %v565 = vpop.f32.mrb[0].mxu0
  %566 = vdwg.mxu0
  %vm567 = vcmask 392192
  %v568 = vsel %vm567, %v539, -inf
  %569 = vmax.xlane.f32.xlu0 %v568
  %v570 = vpop.xlane.xlu0 %569
  %v571 = vsel %vm567, %v544, -inf
  %572 = vmax.xlane.f32.xlu0 %v571
  %v573 = vpop.xlane.xlu0 %572
  %v574 = vsel %vm567, %v549, -inf
  %575 = vmax.xlane.f32.xlu0 %v574
  %v576 = vpop.xlane.xlu0 %575
  %v577 = vsel %vm567, %v554, -inf
  %578 = vmax.xlane.f32.xlu0 %v577
  %v579 = vpop.xlane.xlu0 %578
  %v580 = vsel %vm567, %v559, -inf
  %581 = vmax.xlane.f32.xlu0 %v580
  %v582 = vpop.xlane.xlu0 %581
  %v583 = vsel %vm567, %v564, -inf
  %584 = vmax.xlane.f32.xlu0 %v583
  %v585 = vpop.xlane.xlu0 %584
  %v586 = vsub.f32 %v539, %v570
  %v587 = vsub.f32 %v544, %v573
  %v588 = vsub.f32 %v549, %v576
  %v589 = vsub.f32 %v554, %v579
  %v590 = vsub.f32 %v559, %v582
  %v591 = vsub.f32 %v564, %v585
  %v592 = vmul.f32 %v586, 1.442695
  %v593 = vpow.pop %v592
  %v594 = vmul.f32 %v587, 1.442695
  %v595 = vpow.pop %v594
  %v596 = vmul.f32 %v588, 1.442695
  %v597 = vpow.pop %v596
  %v598 = vmul.f32 %v589, 1.442695
  %v599 = vpow.pop %v598
  %v600 = vmul.f32 %v590, 1.442695
  %v601 = vpow.pop %v600
  %v602 = vmul.f32 %v591, 1.442695
  %v603 = vpow.pop %v602
  %v604 = vsel %vm567, %v593, 0.0
  %605 = vadd.xlane.f32.xlu0 %v604
  %v606 = vpop.xlane.xlu0 %605
  %v607 = vsel %vm567, %v595, 0.0
  %608 = vadd.xlane.f32.xlu0 %v607
  %v609 = vpop.xlane.xlu0 %608
  %v610 = vsel %vm567, %v597, 0.0
  %611 = vadd.xlane.f32.xlu0 %v610
  %v612 = vpop.xlane.xlu0 %611
  %v613 = vsel %vm567, %v599, 0.0
  %614 = vadd.xlane.f32.xlu0 %v613
  %v615 = vpop.xlane.xlu0 %614
  %v616 = vsel %vm567, %v601, 0.0
  %617 = vadd.xlane.f32.xlu0 %v616
  %v618 = vpop.xlane.xlu0 %617
  %v619 = vsel %vm567, %v603, 0.0
  %620 = vadd.xlane.f32.xlu0 %v619
  %v621 = vpop.xlane.xlu0 %620
  %v622 = vrcp.pop %v606
  %v623 = vrcp.pop %v609
  %v624 = vrcp.pop %v612
  %v625 = vrcp.pop %v615
  %v626 = vrcp.pop %v618
  %v627 = vrcp.pop %v621
  %v628 = vmul.f32 %v593, %v622
  %v629 = vmul.f32 %v595, %v623
  %v630 = vmul.f32 %v597, %v624
  %v631 = vmul.f32 %v599, %v625
  %v632 = vmul.f32 %v601, %v626
  %v633 = vmul.f32 %v603, %v627
  %634 = vrot.lane.b32.xlu0 %v401, 64
  %v635 = vpop.permute.xlu0 %634
  %636 = vrot.lane.b32.xlu0 %v406, 64
  %v637 = vpop.permute.xlu0 %636
  %638 = vrot.lane.b32.xlu0 %v411, 64
  %v639 = vpop.permute.xlu0 %638
  %640 = vrot.lane.b32.xlu0 %v416, 64
  %v641 = vpop.permute.xlu0 %640
  %642 = vrot.lane.b32.xlu0 %v421, 64
  %v643 = vpop.permute.xlu0 %642
  %644 = vrot.lane.b32.xlu0 %v426, 64
  %v645 = vpop.permute.xlu0 %644
  %v653 = vsel %vm567, %v628, 0
  %v656 = vsel %vm567, %v629, 0
  %v659 = vsel %vm567, %v630, 0
  %v662 = vsel %vm567, %v631, 0
  %v665 = vsel %vm567, %v632, 0
  %v668 = vsel %vm567, %v633, 0
  %670 = vmatprep.subr.mxu0 0.0
  %671 = vmatpush1.msra.mxu0 %v635
  %672 = vmatprep.subr.mxu0 0.0
  %673 = vmatpush1.msra.mxu0 %v637
  %674 = vmatprep.subr.mxu0 0.0
  %675 = vmatpush1.msra.mxu0 %v639
  %676 = vmatprep.subr.mxu0 0.0
  %677 = vmatpush1.msra.mxu0 %v641
  %678 = vmatprep.subr.mxu0 0.0
  %679 = vmatpush1.msra.mxu0 %v643
  %680 = vmatprep.subr.mxu0 0.0
  %681 = vmatpush1.msra.mxu0 %v645
  %682 = vmatprep.subr.mxu0 0.0
  %683 = vmatpush1.msra.mxu0 0.0
  %684 = vmatprep.subr.mxu0 0.0
  %685 = vmatpush1.msra.mxu0 0.0
  %686 = vmatprep.subr.mxu0 0.0
  %687 = vmatpush1.msra.mxu0 0.0
  %688 = vmatprep.subr.mxu0 0.0
  %689 = vmatpush1.msra.mxu0 0.0
  %690 = vmatprep.subr.mxu0 0.0
  %691 = vmatpush1.msra.mxu0 0.0
  %692 = vmatprep.subr.mxu0 0.0
  %693 = vmatpush1.msra.mxu0 0.0
  %694 = vmatprep.subr.mxu0 0.0
  %695 = vmatpush1.msra.mxu0 0.0
  %696 = vmatprep.subr.mxu0 0.0
  %697 = vmatpush1.msra.mxu0 0.0
  %698 = vmatprep.subr.mxu0 0.0
  %699 = vmatpush1.msra.mxu0 0.0
  %700 = vmatprep.subr.mxu0 0.0
  %701 = vmatpush1.msra.mxu0 0.0
  %702 = vmatprep.subr.mxu0 0.0
  %703 = vmatpush1.msra.mxu0 0.0
  %704 = vmatprep.subr.mxu0 0.0
  %705 = vmatpush1.msra.mxu0 0.0
  %706 = vmatprep.subr.mxu0 0.0
  %707 = vmatpush1.msra.mxu0 0.0
  %708 = vmatprep.subr.mxu0 0.0
  %709 = vmatpush1.msra.mxu0 0.0
  %710 = vmatprep.subr.mxu0 0.0
  %711 = vmatpush1.msra.mxu0 0.0
  %712 = vmatprep.subr.mxu0 0.0
  %713 = vmatpush1.msra.mxu0 0.0
  %714 = vmatprep.subr.mxu0 0.0
  %715 = vmatpush1.msra.mxu0 0.0
  %716 = vmatprep.subr.mxu0 0.0
  %717 = vmatpush1.msra.mxu0 0.0
  %718 = vmatprep.subr.mxu0 0.0
  %719 = vmatpush1.msra.mxu0 0.0
  %720 = vmatprep.subr.mxu0 0.0
  %721 = vmatpush1.msra.mxu0 0.0
  %722 = vmatprep.subr.mxu0 0.0
  %723 = vmatpush1.msra.mxu0 0.0
  %724 = vmatprep.subr.mxu0 0.0
  %725 = vmatpush1.msra.mxu0 0.0
  %726 = vmatprep.subr.mxu0 0.0
  %727 = vmatpush1.msra.mxu0 0.0
  %728 = vmatprep.subr.mxu0 0.0
  %729 = vmatpush1.msra.mxu0 0.0
  %730 = vmatprep.subr.mxu0 0.0
  %731 = vmatpush1.msra.mxu0 0.0
  %732 = vmatprep.subr.mxu0 0.0
  %733 = vmatpush1.msra.mxu0 0.0
  %734 = vmatprep.mubr.f32.mxu0 0.0
  %735 = vmatmul.mubr.f32.gmra.mrb[0].mxu0 %v653
  %v736 = vpop.f32.mrb[0].mxu0
  %v737 = vadd.f32 0.0, %v736
  %v738 = vpop.f32.mrb[0].mxu0
  %739 = vmatprep.mubr.f32.mxu0 0.0
  %740 = vmatmul.mubr.f32.gmra.mrb[0].mxu0 %v656
  %v741 = vpop.f32.mrb[0].mxu0
  %v742 = vadd.f32 0.0, %v741
  %v743 = vpop.f32.mrb[0].mxu0
  %744 = vmatprep.mubr.f32.mxu0 0.0
  %745 = vmatmul.mubr.f32.gmra.mrb[0].mxu0 %v659
  %v746 = vpop.f32.mrb[0].mxu0
  %v747 = vadd.f32 0.0, %v746
  %v748 = vpop.f32.mrb[0].mxu0
  %749 = vmatprep.mubr.f32.mxu0 0.0
  %750 = vmatmul.mubr.f32.gmra.mrb[0].mxu0 %v662
  %v751 = vpop.f32.mrb[0].mxu0
  %v752 = vadd.f32 0.0, %v751
  %v753 = vpop.f32.mrb[0].mxu0
  %754 = vmatprep.mubr.f32.mxu0 0.0
  %755 = vmatmul.mubr.f32.gmra.mrb[0].mxu0 %v665
  %v756 = vpop.f32.mrb[0].mxu0
  %v757 = vadd.f32 0.0, %v756
  %v758 = vpop.f32.mrb[0].mxu0
  %759 = vmatprep.mubr.f32.mxu0 0.0
  %760 = vmatmul.mubr.f32.gmra.mrb[0].mxu0 %v668
  %v761 = vpop.f32.mrb[0].mxu0
  %v762 = vadd.f32 0.0, %v761
  %v763 = vpop.f32.mrb[0].mxu0
  %764 = vdwg.mxu0
  %765 = vrot.lane.b32.xlu0 %v401, 120
  %v766 = vpop.permute.xlu0 %765
  %767 = vrot.lane.b32.xlu0 %v406, 120
  %v768 = vpop.permute.xlu0 %767
  %769 = vrot.lane.b32.xlu0 %v411, 120
  %v770 = vpop.permute.xlu0 %769
  %771 = vrot.lane.b32.xlu0 %v416, 120
  %v772 = vpop.permute.xlu0 %771
  %773 = vrot.lane.b32.xlu0 %v421, 120
  %v774 = vpop.permute.xlu0 %773
  %775 = vrot.lane.b32.xlu0 %v426, 120
  %v776 = vpop.permute.xlu0 %775
  %777 = vrot.lane.b32.xlu0 %v401, 88
  %v778 = vpop.permute.xlu0 %777
  %779 = vrot.lane.b32.xlu0 %v406, 88
  %v780 = vpop.permute.xlu0 %779
  %781 = vrot.lane.b32.xlu0 %v411, 88
  %v782 = vpop.permute.xlu0 %781
  %783 = vrot.lane.b32.xlu0 %v416, 88
  %v784 = vpop.permute.xlu0 %783
  %785 = vrot.lane.b32.xlu0 %v421, 88
  %v786 = vpop.permute.xlu0 %785
  %787 = vrot.lane.b32.xlu0 %v426, 88
  %v788 = vpop.permute.xlu0 %787
  %v789 = vsel %vm447, %v766, 0
  %v791 = vsel %vm447, %v768, 0
  %v793 = vsel %vm447, %v770, 0
  %v795 = vsel %vm447, %v772, 0
  %v797 = vsel %vm447, %v774, 0
  %v799 = vsel %vm447, %v776, 0
  %v801 = vsel %vm447, %v778, 0
  %v803 = vsel %vm447, %v780, 0
  %v805 = vsel %vm447, %v782, 0
  %v807 = vsel %vm447, %v784, 0
  %v809 = vsel %vm447, %v786, 0
  %v811 = vsel %vm447, %v788, 0
  %813 = vmatprep.subr.mxu0 0.0
  %814 = vmatpush1.xpose.msra.mxu0 %v801
  %815 = vmatprep.subr.mxu0 0.0
  %816 = vmatpush1.xpose.msra.mxu0 %v803
  %817 = vmatprep.subr.mxu0 0.0
  %818 = vmatpush1.xpose.msra.mxu0 %v805
  %819 = vmatprep.subr.mxu0 0.0
  %820 = vmatpush1.xpose.msra.mxu0 %v807
  %821 = vmatprep.subr.mxu0 0.0
  %822 = vmatpush1.xpose.msra.mxu0 %v809
  %823 = vmatprep.subr.mxu0 0.0
  %824 = vmatpush1.xpose.msra.mxu0 %v811
  %825 = vmatprep.subr.mxu0 0.0
  %826 = vmatpush1.xpose.msra.mxu0 0.0
  %827 = vmatprep.subr.mxu0 0.0
  %828 = vmatpush1.xpose.msra.mxu0 0.0
  %829 = vmatprep.subr.mxu0 0.0
  %830 = vmatpush1.xpose.msra.mxu0 0.0
  %831 = vmatprep.subr.mxu0 0.0
  %832 = vmatpush1.xpose.msra.mxu0 0.0
  %833 = vmatprep.subr.mxu0 0.0
  %834 = vmatpush1.xpose.msra.mxu0 0.0
  %835 = vmatprep.subr.mxu0 0.0
  %836 = vmatpush1.xpose.msra.mxu0 0.0
  %837 = vmatprep.subr.mxu0 0.0
  %838 = vmatpush1.xpose.msra.mxu0 0.0
  %839 = vmatprep.subr.mxu0 0.0
  %840 = vmatpush1.xpose.msra.mxu0 0.0
  %841 = vmatprep.subr.mxu0 0.0
  %842 = vmatpush1.xpose.msra.mxu0 0.0
  %843 = vmatprep.subr.mxu0 0.0
  %844 = vmatpush1.xpose.msra.mxu0 0.0
  %845 = vmatprep.subr.mxu0 0.0
  %846 = vmatpush1.xpose.msra.mxu0 0.0
  %847 = vmatprep.subr.mxu0 0.0
  %848 = vmatpush1.xpose.msra.mxu0 0.0
  %849 = vmatprep.subr.mxu0 0.0
  %850 = vmatpush1.xpose.msra.mxu0 0.0
  %851 = vmatprep.subr.mxu0 0.0
  %852 = vmatpush1.xpose.msra.mxu0 0.0
  %853 = vmatprep.subr.mxu0 0.0
  %854 = vmatpush1.xpose.msra.mxu0 0.0
  %855 = vmatprep.subr.mxu0 0.0
  %856 = vmatpush1.xpose.msra.mxu0 0.0
  %857 = vmatprep.subr.mxu0 0.0
  %858 = vmatpush1.xpose.msra.mxu0 0.0
  %859 = vmatprep.subr.mxu0 0.0
  %860 = vmatpush1.xpose.msra.mxu0 0.0
  %861 = vmatprep.subr.mxu0 0.0
  %862 = vmatpush1.xpose.msra.mxu0 0.0
  %863 = vmatprep.subr.mxu0 0.0
  %864 = vmatpush1.xpose.msra.mxu0 0.0
  %865 = vmatprep.subr.mxu0 0.0
  %866 = vmatpush1.xpose.msra.mxu0 0.0
  %867 = vmatprep.subr.mxu0 0.0
  %868 = vmatpush1.xpose.msra.mxu0 0.0
  %869 = vmatprep.subr.mxu0 0.0
  %870 = vmatpush1.xpose.msra.mxu0 0.0
  %871 = vmatprep.subr.mxu0 0.0
  %872 = vmatpush1.xpose.msra.mxu0 0.0
  %873 = vmatprep.subr.mxu0 0.0
  %874 = vmatpush1.xpose.msra.mxu0 0.0
  %875 = vmatprep.subr.mxu0 0.0
  %876 = vmatpush1.xpose.msra.mxu0 0.0
  %877 = vmatprep.mubr.f32.mxu0 0.0
  %878 = vmatmul.mubr.f32.gmra.mrb[0].mxu0 %v789
  %v879 = vpop.f32.mrb[0].mxu0
  %v880 = vadd.f32 %v193, %v879
  %v881 = vpop.f32.mrb[0].mxu0
  %882 = vmatprep.mubr.f32.mxu0 0.0
  %883 = vmatmul.mubr.f32.gmra.mrb[0].mxu0 %v791
  %v884 = vpop.f32.mrb[0].mxu0
  %v885 = vadd.f32 %v194, %v884
  %v886 = vpop.f32.mrb[0].mxu0
  %887 = vmatprep.mubr.f32.mxu0 0.0
  %888 = vmatmul.mubr.f32.gmra.mrb[0].mxu0 %v793
  %v889 = vpop.f32.mrb[0].mxu0
  %v890 = vadd.f32 %v195, %v889
  %v891 = vpop.f32.mrb[0].mxu0
  %892 = vmatprep.mubr.f32.mxu0 0.0
  %893 = vmatmul.mubr.f32.gmra.mrb[0].mxu0 %v795
  %v894 = vpop.f32.mrb[0].mxu0
  %v895 = vadd.f32 %v196, %v894
  %v896 = vpop.f32.mrb[0].mxu0
  %897 = vmatprep.mubr.f32.mxu0 0.0
  %898 = vmatmul.mubr.f32.gmra.mrb[0].mxu0 %v797
  %v899 = vpop.f32.mrb[0].mxu0
  %v900 = vadd.f32 %v197, %v899
  %v901 = vpop.f32.mrb[0].mxu0
  %902 = vmatprep.mubr.f32.mxu0 0.0
  %903 = vmatmul.mubr.f32.gmra.mrb[0].mxu0 %v799
  %v904 = vpop.f32.mrb[0].mxu0
  %v905 = vadd.f32 %v198, %v904
  %v906 = vpop.f32.mrb[0].mxu0
  %907 = vdwg.mxu0
  %v908 = vsel %vm567, %v880, -inf
  %909 = vmax.xlane.f32.xlu0 %v908
  %v910 = vpop.xlane.xlu0 %909
  %v911 = vsel %vm567, %v885, -inf
  %912 = vmax.xlane.f32.xlu0 %v911
  %v913 = vpop.xlane.xlu0 %912
  %v914 = vsel %vm567, %v890, -inf
  %915 = vmax.xlane.f32.xlu0 %v914
  %v916 = vpop.xlane.xlu0 %915
  %v917 = vsel %vm567, %v895, -inf
  %918 = vmax.xlane.f32.xlu0 %v917
  %v919 = vpop.xlane.xlu0 %918
  %v920 = vsel %vm567, %v900, -inf
  %921 = vmax.xlane.f32.xlu0 %v920
  %v922 = vpop.xlane.xlu0 %921
  %v923 = vsel %vm567, %v905, -inf
  %924 = vmax.xlane.f32.xlu0 %v923
  %v925 = vpop.xlane.xlu0 %924
  %v926 = vsub.f32 %v880, %v910
  %v927 = vsub.f32 %v885, %v913
  %v928 = vsub.f32 %v890, %v916
  %v929 = vsub.f32 %v895, %v919
  %v930 = vsub.f32 %v900, %v922
  %v931 = vsub.f32 %v905, %v925
  %v932 = vmul.f32 %v926, 1.442695
  %v933 = vpow.pop %v932
  %v934 = vmul.f32 %v927, 1.442695
  %v935 = vpow.pop %v934
  %v936 = vmul.f32 %v928, 1.442695
  %v937 = vpow.pop %v936
  %v938 = vmul.f32 %v929, 1.442695
  %v939 = vpow.pop %v938
  %v940 = vmul.f32 %v930, 1.442695
  %v941 = vpow.pop %v940
  %v942 = vmul.f32 %v931, 1.442695
  %v943 = vpow.pop %v942
  %v944 = vsel %vm567, %v933, 0.0
  %945 = vadd.xlane.f32.xlu0 %v944
  %v946 = vpop.xlane.xlu0 %945
  %v947 = vsel %vm567, %v935, 0.0
  %948 = vadd.xlane.f32.xlu0 %v947
  %v949 = vpop.xlane.xlu0 %948
  %v950 = vsel %vm567, %v937, 0.0
  %951 = vadd.xlane.f32.xlu0 %v950
  %v952 = vpop.xlane.xlu0 %951
  %v953 = vsel %vm567, %v939, 0.0
  %954 = vadd.xlane.f32.xlu0 %v953
  %v955 = vpop.xlane.xlu0 %954
  %v956 = vsel %vm567, %v941, 0.0
  %957 = vadd.xlane.f32.xlu0 %v956
  %v958 = vpop.xlane.xlu0 %957
  %v959 = vsel %vm567, %v943, 0.0
  %960 = vadd.xlane.f32.xlu0 %v959
  %v961 = vpop.xlane.xlu0 %960
  %v962 = vrcp.pop %v946
  %v963 = vrcp.pop %v949
  %v964 = vrcp.pop %v952
  %v965 = vrcp.pop %v955
  %v966 = vrcp.pop %v958
  %v967 = vrcp.pop %v961
  %v968 = vmul.f32 %v933, %v962
  %v969 = vmul.f32 %v935, %v963
  %v970 = vmul.f32 %v937, %v964
  %v971 = vmul.f32 %v939, %v965
  %v972 = vmul.f32 %v941, %v966
  %v973 = vmul.f32 %v943, %v967
  %974 = vrot.lane.b32.xlu0 %v401, 56
  %v975 = vpop.permute.xlu0 %974
  %976 = vrot.lane.b32.xlu0 %v406, 56
  %v977 = vpop.permute.xlu0 %976
  %978 = vrot.lane.b32.xlu0 %v411, 56
  %v979 = vpop.permute.xlu0 %978
  %980 = vrot.lane.b32.xlu0 %v416, 56
  %v981 = vpop.permute.xlu0 %980
  %982 = vrot.lane.b32.xlu0 %v421, 56
  %v983 = vpop.permute.xlu0 %982
  %984 = vrot.lane.b32.xlu0 %v426, 56
  %v985 = vpop.permute.xlu0 %984
  %v993 = vsel %vm567, %v968, 0
  %v996 = vsel %vm567, %v969, 0
  %v999 = vsel %vm567, %v970, 0
  %v1002 = vsel %vm567, %v971, 0
  %v1005 = vsel %vm567, %v972, 0
  %v1008 = vsel %vm567, %v973, 0
  %1010 = vmatprep.subr.mxu0 0.0
  %1011 = vmatpush1.msra.mxu0 %v975
  %1012 = vmatprep.subr.mxu0 0.0
  %1013 = vmatpush1.msra.mxu0 %v977
  %1014 = vmatprep.subr.mxu0 0.0
  %1015 = vmatpush1.msra.mxu0 %v979
  %1016 = vmatprep.subr.mxu0 0.0
  %1017 = vmatpush1.msra.mxu0 %v981
  %1018 = vmatprep.subr.mxu0 0.0
  %1019 = vmatpush1.msra.mxu0 %v983
  %1020 = vmatprep.subr.mxu0 0.0
  %1021 = vmatpush1.msra.mxu0 %v985
  %1022 = vmatprep.subr.mxu0 0.0
  %1023 = vmatpush1.msra.mxu0 0.0
  %1024 = vmatprep.subr.mxu0 0.0
  %1025 = vmatpush1.msra.mxu0 0.0
  %1026 = vmatprep.subr.mxu0 0.0
  %1027 = vmatpush1.msra.mxu0 0.0
  %1028 = vmatprep.subr.mxu0 0.0
  %1029 = vmatpush1.msra.mxu0 0.0
  %1030 = vmatprep.subr.mxu0 0.0
  %1031 = vmatpush1.msra.mxu0 0.0
  %1032 = vmatprep.subr.mxu0 0.0
  %1033 = vmatpush1.msra.mxu0 0.0
  %1034 = vmatprep.subr.mxu0 0.0
  %1035 = vmatpush1.msra.mxu0 0.0
  %1036 = vmatprep.subr.mxu0 0.0
  %1037 = vmatpush1.msra.mxu0 0.0
  %1038 = vmatprep.subr.mxu0 0.0
  %1039 = vmatpush1.msra.mxu0 0.0
  %1040 = vmatprep.subr.mxu0 0.0
  %1041 = vmatpush1.msra.mxu0 0.0
  %1042 = vmatprep.subr.mxu0 0.0
  %1043 = vmatpush1.msra.mxu0 0.0
  %1044 = vmatprep.subr.mxu0 0.0
  %1045 = vmatpush1.msra.mxu0 0.0
  %1046 = vmatprep.subr.mxu0 0.0
  %1047 = vmatpush1.msra.mxu0 0.0
  %1048 = vmatprep.subr.mxu0 0.0
  %1049 = vmatpush1.msra.mxu0 0.0
  %1050 = vmatprep.subr.mxu0 0.0
  %1051 = vmatpush1.msra.mxu0 0.0
  %1052 = vmatprep.subr.mxu0 0.0
  %1053 = vmatpush1.msra.mxu0 0.0
  %1054 = vmatprep.subr.mxu0 0.0
  %1055 = vmatpush1.msra.mxu0 0.0
  %1056 = vmatprep.subr.mxu0 0.0
  %1057 = vmatpush1.msra.mxu0 0.0
  %1058 = vmatprep.subr.mxu0 0.0
  %1059 = vmatpush1.msra.mxu0 0.0
  %1060 = vmatprep.subr.mxu0 0.0
  %1061 = vmatpush1.msra.mxu0 0.0
  %1062 = vmatprep.subr.mxu0 0.0
  %1063 = vmatpush1.msra.mxu0 0.0
  %1064 = vmatprep.subr.mxu0 0.0
  %1065 = vmatpush1.msra.mxu0 0.0
  %1066 = vmatprep.subr.mxu0 0.0
  %1067 = vmatpush1.msra.mxu0 0.0
  %1068 = vmatprep.subr.mxu0 0.0
  %1069 = vmatpush1.msra.mxu0 0.0
  %1070 = vmatprep.subr.mxu0 0.0
  %1071 = vmatpush1.msra.mxu0 0.0
  %1072 = vmatprep.subr.mxu0 0.0
  %1073 = vmatpush1.msra.mxu0 0.0
  %1074 = vmatprep.mubr.f32.mxu0 0.0
  %1075 = vmatmul.mubr.f32.gmra.mrb[0].mxu0 %v993
  %v1076 = vpop.f32.mrb[0].mxu0
  %v1077 = vadd.f32 0.0, %v1076
  %v1078 = vpop.f32.mrb[0].mxu0
  %1079 = vmatprep.mubr.f32.mxu0 0.0
  %1080 = vmatmul.mubr.f32.gmra.mrb[0].mxu0 %v996
  %v1081 = vpop.f32.mrb[0].mxu0
  %v1082 = vadd.f32 0.0, %v1081
  %v1083 = vpop.f32.mrb[0].mxu0
  %1084 = vmatprep.mubr.f32.mxu0 0.0
  %1085 = vmatmul.mubr.f32.gmra.mrb[0].mxu0 %v999
  %v1086 = vpop.f32.mrb[0].mxu0
  %v1087 = vadd.f32 0.0, %v1086
  %v1088 = vpop.f32.mrb[0].mxu0
  %1089 = vmatprep.mubr.f32.mxu0 0.0
  %1090 = vmatmul.mubr.f32.gmra.mrb[0].mxu0 %v1002
  %v1091 = vpop.f32.mrb[0].mxu0
  %v1092 = vadd.f32 0.0, %v1091
  %v1093 = vpop.f32.mrb[0].mxu0
  %1094 = vmatprep.mubr.f32.mxu0 0.0
  %1095 = vmatmul.mubr.f32.gmra.mrb[0].mxu0 %v1005
  %v1096 = vpop.f32.mrb[0].mxu0
  %v1097 = vadd.f32 0.0, %v1096
  %v1098 = vpop.f32.mrb[0].mxu0
  %1099 = vmatprep.mubr.f32.mxu0 0.0
  %1100 = vmatmul.mubr.f32.gmra.mrb[0].mxu0 %v1008
  %v1101 = vpop.f32.mrb[0].mxu0
  %v1102 = vadd.f32 0.0, %v1101
  %v1103 = vpop.f32.mrb[0].mxu0
  %1104 = vdwg.mxu0
  %1105 = vrot.lane.b32.xlu0 %v401, 112
  %v1106 = vpop.permute.xlu0 %1105
  %1107 = vrot.lane.b32.xlu0 %v406, 112
  %v1108 = vpop.permute.xlu0 %1107
  %1109 = vrot.lane.b32.xlu0 %v411, 112
  %v1110 = vpop.permute.xlu0 %1109
  %1111 = vrot.lane.b32.xlu0 %v416, 112
  %v1112 = vpop.permute.xlu0 %1111
  %1113 = vrot.lane.b32.xlu0 %v421, 112
  %v1114 = vpop.permute.xlu0 %1113
  %1115 = vrot.lane.b32.xlu0 %v426, 112
  %v1116 = vpop.permute.xlu0 %1115
  %1117 = vrot.lane.b32.xlu0 %v401, 80
  %v1118 = vpop.permute.xlu0 %1117
  %1119 = vrot.lane.b32.xlu0 %v406, 80
  %v1120 = vpop.permute.xlu0 %1119
  %1121 = vrot.lane.b32.xlu0 %v411, 80
  %v1122 = vpop.permute.xlu0 %1121
  %1123 = vrot.lane.b32.xlu0 %v416, 80
  %v1124 = vpop.permute.xlu0 %1123
  %1125 = vrot.lane.b32.xlu0 %v421, 80
  %v1126 = vpop.permute.xlu0 %1125
  %1127 = vrot.lane.b32.xlu0 %v426, 80
  %v1128 = vpop.permute.xlu0 %1127
  %v1129 = vsel %vm447, %v1106, 0
  %v1131 = vsel %vm447, %v1108, 0
  %v1133 = vsel %vm447, %v1110, 0
  %v1135 = vsel %vm447, %v1112, 0
  %v1137 = vsel %vm447, %v1114, 0
  %v1139 = vsel %vm447, %v1116, 0
  %v1141 = vsel %vm447, %v1118, 0
  %v1143 = vsel %vm447, %v1120, 0
  %v1145 = vsel %vm447, %v1122, 0
  %v1147 = vsel %vm447, %v1124, 0
  %v1149 = vsel %vm447, %v1126, 0
  %v1151 = vsel %vm447, %v1128, 0
  %1153 = vmatprep.subr.mxu0 0.0
  %1154 = vmatpush1.xpose.msra.mxu0 %v1141
  %1155 = vmatprep.subr.mxu0 0.0
  %1156 = vmatpush1.xpose.msra.mxu0 %v1143
  %1157 = vmatprep.subr.mxu0 0.0
  %1158 = vmatpush1.xpose.msra.mxu0 %v1145
  %1159 = vmatprep.subr.mxu0 0.0
  %1160 = vmatpush1.xpose.msra.mxu0 %v1147
  %1161 = vmatprep.subr.mxu0 0.0
  %1162 = vmatpush1.xpose.msra.mxu0 %v1149
  %1163 = vmatprep.subr.mxu0 0.0
  %1164 = vmatpush1.xpose.msra.mxu0 %v1151
  %1165 = vmatprep.subr.mxu0 0.0
  %1166 = vmatpush1.xpose.msra.mxu0 0.0
  %1167 = vmatprep.subr.mxu0 0.0
  %1168 = vmatpush1.xpose.msra.mxu0 0.0
  %1169 = vmatprep.subr.mxu0 0.0
  %1170 = vmatpush1.xpose.msra.mxu0 0.0
  %1171 = vmatprep.subr.mxu0 0.0
  %1172 = vmatpush1.xpose.msra.mxu0 0.0
  %1173 = vmatprep.subr.mxu0 0.0
  %1174 = vmatpush1.xpose.msra.mxu0 0.0
  %1175 = vmatprep.subr.mxu0 0.0
  %1176 = vmatpush1.xpose.msra.mxu0 0.0
  %1177 = vmatprep.subr.mxu0 0.0
  %1178 = vmatpush1.xpose.msra.mxu0 0.0
  %1179 = vmatprep.subr.mxu0 0.0
  %1180 = vmatpush1.xpose.msra.mxu0 0.0
  %1181 = vmatprep.subr.mxu0 0.0
  %1182 = vmatpush1.xpose.msra.mxu0 0.0
  %1183 = vmatprep.subr.mxu0 0.0
  %1184 = vmatpush1.xpose.msra.mxu0 0.0
  %1185 = vmatprep.subr.mxu0 0.0
  %1186 = vmatpush1.xpose.msra.mxu0 0.0
  %1187 = vmatprep.subr.mxu0 0.0
  %1188 = vmatpush1.xpose.msra.mxu0 0.0
  %1189 = vmatprep.subr.mxu0 0.0
  %1190 = vmatpush1.xpose.msra.mxu0 0.0
  %1191 = vmatprep.subr.mxu0 0.0
  %1192 = vmatpush1.xpose.msra.mxu0 0.0
  %1193 = vmatprep.subr.mxu0 0.0
  %1194 = vmatpush1.xpose.msra.mxu0 0.0
  %1195 = vmatprep.subr.mxu0 0.0
  %1196 = vmatpush1.xpose.msra.mxu0 0.0
  %1197 = vmatprep.subr.mxu0 0.0
  %1198 = vmatpush1.xpose.msra.mxu0 0.0
  %1199 = vmatprep.subr.mxu0 0.0
  %1200 = vmatpush1.xpose.msra.mxu0 0.0
  %1201 = vmatprep.subr.mxu0 0.0
  %1202 = vmatpush1.xpose.msra.mxu0 0.0
  %1203 = vmatprep.subr.mxu0 0.0
  %1204 = vmatpush1.xpose.msra.mxu0 0.0
  %1205 = vmatprep.subr.mxu0 0.0
  %1206 = vmatpush1.xpose.msra.mxu0 0.0
  %1207 = vmatprep.subr.mxu0 0.0
  %1208 = vmatpush1.xpose.msra.mxu0 0.0
  %1209 = vmatprep.subr.mxu0 0.0
  %1210 = vmatpush1.xpose.msra.mxu0 0.0
  %1211 = vmatprep.subr.mxu0 0.0
  %1212 = vmatpush1.xpose.msra.mxu0 0.0
  %1213 = vmatprep.subr.mxu0 0.0
  %1214 = vmatpush1.xpose.msra.mxu0 0.0
  %1215 = vmatprep.subr.mxu0 0.0
  %1216 = vmatpush1.xpose.msra.mxu0 0.0
  %1217 = vmatprep.mubr.f32.mxu0 0.0
  %1218 = vmatmul.mubr.f32.gmra.mrb[0].mxu0 %v1129
  %v1219 = vpop.f32.mrb[0].mxu0
  %v1220 = vadd.f32 %v193, %v1219
  %v1221 = vpop.f32.mrb[0].mxu0
  %1222 = vmatprep.mubr.f32.mxu0 0.0
  %1223 = vmatmul.mubr.f32.gmra.mrb[0].mxu0 %v1131
  %v1224 = vpop.f32.mrb[0].mxu0
  %v1225 = vadd.f32 %v194, %v1224
  %v1226 = vpop.f32.mrb[0].mxu0
  %1227 = vmatprep.mubr.f32.mxu0 0.0
  %1228 = vmatmul.mubr.f32.gmra.mrb[0].mxu0 %v1133
  %v1229 = vpop.f32.mrb[0].mxu0
  %v1230 = vadd.f32 %v195, %v1229
  %v1231 = vpop.f32.mrb[0].mxu0
  %1232 = vmatprep.mubr.f32.mxu0 0.0
  %1233 = vmatmul.mubr.f32.gmra.mrb[0].mxu0 %v1135
  %v1234 = vpop.f32.mrb[0].mxu0
  %v1235 = vadd.f32 %v196, %v1234
  %v1236 = vpop.f32.mrb[0].mxu0
  %1237 = vmatprep.mubr.f32.mxu0 0.0
  %1238 = vmatmul.mubr.f32.gmra.mrb[0].mxu0 %v1137
  %v1239 = vpop.f32.mrb[0].mxu0
  %v1240 = vadd.f32 %v197, %v1239
  %v1241 = vpop.f32.mrb[0].mxu0
  %1242 = vmatprep.mubr.f32.mxu0 0.0
  %1243 = vmatmul.mubr.f32.gmra.mrb[0].mxu0 %v1139
  %v1244 = vpop.f32.mrb[0].mxu0
  %v1245 = vadd.f32 %v198, %v1244
  %v1246 = vpop.f32.mrb[0].mxu0
  %1247 = vdwg.mxu0
  %v1248 = vsel %vm567, %v1220, -inf
  %1249 = vmax.xlane.f32.xlu0 %v1248
  %v1250 = vpop.xlane.xlu0 %1249
  %v1251 = vsel %vm567, %v1225, -inf
  %1252 = vmax.xlane.f32.xlu0 %v1251
  %v1253 = vpop.xlane.xlu0 %1252
  %v1254 = vsel %vm567, %v1230, -inf
  %1255 = vmax.xlane.f32.xlu0 %v1254
  %v1256 = vpop.xlane.xlu0 %1255
  %v1257 = vsel %vm567, %v1235, -inf
  %1258 = vmax.xlane.f32.xlu0 %v1257
  %v1259 = vpop.xlane.xlu0 %1258
  %v1260 = vsel %vm567, %v1240, -inf
  %1261 = vmax.xlane.f32.xlu0 %v1260
  %v1262 = vpop.xlane.xlu0 %1261
  %v1263 = vsel %vm567, %v1245, -inf
  %1264 = vmax.xlane.f32.xlu0 %v1263
  %v1265 = vpop.xlane.xlu0 %1264
  %v1266 = vsub.f32 %v1220, %v1250
  %v1267 = vsub.f32 %v1225, %v1253
  %v1268 = vsub.f32 %v1230, %v1256
  %v1269 = vsub.f32 %v1235, %v1259
  %v1270 = vsub.f32 %v1240, %v1262
  %v1271 = vsub.f32 %v1245, %v1265
  %v1272 = vmul.f32 %v1266, 1.442695
  %v1273 = vpow.pop %v1272
  %v1274 = vmul.f32 %v1267, 1.442695
  %v1275 = vpow.pop %v1274
  %v1276 = vmul.f32 %v1268, 1.442695
  %v1277 = vpow.pop %v1276
  %v1278 = vmul.f32 %v1269, 1.442695
  %v1279 = vpow.pop %v1278
  %v1280 = vmul.f32 %v1270, 1.442695
  %v1281 = vpow.pop %v1280
  %v1282 = vmul.f32 %v1271, 1.442695
  %v1283 = vpow.pop %v1282
  %v1284 = vsel %vm567, %v1273, 0.0
  %1285 = vadd.xlane.f32.xlu0 %v1284
  %v1286 = vpop.xlane.xlu0 %1285
  %v1287 = vsel %vm567, %v1275, 0.0
  %1288 = vadd.xlane.f32.xlu0 %v1287
  %v1289 = vpop.xlane.xlu0 %1288
  %v1290 = vsel %vm567, %v1277, 0.0
  %1291 = vadd.xlane.f32.xlu0 %v1290
  %v1292 = vpop.xlane.xlu0 %1291
  %v1293 = vsel %vm567, %v1279, 0.0
  %1294 = vadd.xlane.f32.xlu0 %v1293
  %v1295 = vpop.xlane.xlu0 %1294
  %v1296 = vsel %vm567, %v1281, 0.0
  %1297 = vadd.xlane.f32.xlu0 %v1296
  %v1298 = vpop.xlane.xlu0 %1297
  %v1299 = vsel %vm567, %v1283, 0.0
  %1300 = vadd.xlane.f32.xlu0 %v1299
  %v1301 = vpop.xlane.xlu0 %1300
  %v1302 = vrcp.pop %v1286
  %v1303 = vrcp.pop %v1289
  %v1304 = vrcp.pop %v1292
  %v1305 = vrcp.pop %v1295
  %v1306 = vrcp.pop %v1298
  %v1307 = vrcp.pop %v1301
  %v1308 = vmul.f32 %v1273, %v1302
  %v1309 = vmul.f32 %v1275, %v1303
  %v1310 = vmul.f32 %v1277, %v1304
  %v1311 = vmul.f32 %v1279, %v1305
  %v1312 = vmul.f32 %v1281, %v1306
  %v1313 = vmul.f32 %v1283, %v1307
  %1314 = vrot.lane.b32.xlu0 %v401, 48
  %v1315 = vpop.permute.xlu0 %1314
  %1316 = vrot.lane.b32.xlu0 %v406, 48
  %v1317 = vpop.permute.xlu0 %1316
  %1318 = vrot.lane.b32.xlu0 %v411, 48
  %v1319 = vpop.permute.xlu0 %1318
  %1320 = vrot.lane.b32.xlu0 %v416, 48
  %v1321 = vpop.permute.xlu0 %1320
  %1322 = vrot.lane.b32.xlu0 %v421, 48
  %v1323 = vpop.permute.xlu0 %1322
  %1324 = vrot.lane.b32.xlu0 %v426, 48
  %v1325 = vpop.permute.xlu0 %1324
  %v1333 = vsel %vm567, %v1308, 0
  %v1336 = vsel %vm567, %v1309, 0
  %v1339 = vsel %vm567, %v1310, 0
  %v1342 = vsel %vm567, %v1311, 0
  %v1345 = vsel %vm567, %v1312, 0
  %v1348 = vsel %vm567, %v1313, 0
  %1350 = vmatprep.subr.mxu0 0.0
  %1351 = vmatpush1.msra.mxu0 %v1315
  %1352 = vmatprep.subr.mxu0 0.0
  %1353 = vmatpush1.msra.mxu0 %v1317
  %1354 = vmatprep.subr.mxu0 0.0
  %1355 = vmatpush1.msra.mxu0 %v1319
  %1356 = vmatprep.subr.mxu0 0.0
  %1357 = vmatpush1.msra.mxu0 %v1321
  %1358 = vmatprep.subr.mxu0 0.0
  %1359 = vmatpush1.msra.mxu0 %v1323
  %1360 = vmatprep.subr.mxu0 0.0
  %1361 = vmatpush1.msra.mxu0 %v1325
  %1362 = vmatprep.subr.mxu0 0.0
  %1363 = vmatpush1.msra.mxu0 0.0
  %1364 = vmatprep.subr.mxu0 0.0
  %1365 = vmatpush1.msra.mxu0 0.0
  %1366 = vmatprep.subr.mxu0 0.0
  %1367 = vmatpush1.msra.mxu0 0.0
  %1368 = vmatprep.subr.mxu0 0.0
  %1369 = vmatpush1.msra.mxu0 0.0
  %1370 = vmatprep.subr.mxu0 0.0
  %1371 = vmatpush1.msra.mxu0 0.0
  %1372 = vmatprep.subr.mxu0 0.0
  %1373 = vmatpush1.msra.mxu0 0.0
  %1374 = vmatprep.subr.mxu0 0.0
  %1375 = vmatpush1.msra.mxu0 0.0
  %1376 = vmatprep.subr.mxu0 0.0
  %1377 = vmatpush1.msra.mxu0 0.0
  %1378 = vmatprep.subr.mxu0 0.0
  %1379 = vmatpush1.msra.mxu0 0.0
  %1380 = vmatprep.subr.mxu0 0.0
  %1381 = vmatpush1.msra.mxu0 0.0
  %1382 = vmatprep.subr.mxu0 0.0
  %1383 = vmatpush1.msra.mxu0 0.0
  %1384 = vmatprep.subr.mxu0 0.0
  %1385 = vmatpush1.msra.mxu0 0.0
  %1386 = vmatprep.subr.mxu0 0.0
  %1387 = vmatpush1.msra.mxu0 0.0
  %1388 = vmatprep.subr.mxu0 0.0
  %1389 = vmatpush1.msra.mxu0 0.0
  %1390 = vmatprep.subr.mxu0 0.0
  %1391 = vmatpush1.msra.mxu0 0.0
  %1392 = vmatprep.subr.mxu0 0.0
  %1393 = vmatpush1.msra.mxu0 0.0
  %1394 = vmatprep.subr.mxu0 0.0
  %1395 = vmatpush1.msra.mxu0 0.0
  %1396 = vmatprep.subr.mxu0 0.0
  %1397 = vmatpush1.msra.mxu0 0.0
  %1398 = vmatprep.subr.mxu0 0.0
  %1399 = vmatpush1.msra.mxu0 0.0
  %1400 = vmatprep.subr.mxu0 0.0
  %1401 = vmatpush1.msra.mxu0 0.0
  %1402 = vmatprep.subr.mxu0 0.0
  %1403 = vmatpush1.msra.mxu0 0.0
  %1404 = vmatprep.subr.mxu0 0.0
  %1405 = vmatpush1.msra.mxu0 0.0
  %1406 = vmatprep.subr.mxu0 0.0
  %1407 = vmatpush1.msra.mxu0 0.0
  %1408 = vmatprep.subr.mxu0 0.0
  %1409 = vmatpush1.msra.mxu0 0.0
  %1410 = vmatprep.subr.mxu0 0.0
  %1411 = vmatpush1.msra.mxu0 0.0
  %1412 = vmatprep.subr.mxu0 0.0
  %1413 = vmatpush1.msra.mxu0 0.0
  %1414 = vmatprep.mubr.f32.mxu0 0.0
  %1415 = vmatmul.mubr.f32.gmra.mrb[0].mxu0 %v1333
  %v1416 = vpop.f32.mrb[0].mxu0
  %v1417 = vadd.f32 0.0, %v1416
  %v1418 = vpop.f32.mrb[0].mxu0
  %1419 = vmatprep.mubr.f32.mxu0 0.0
  %1420 = vmatmul.mubr.f32.gmra.mrb[0].mxu0 %v1336
  %v1421 = vpop.f32.mrb[0].mxu0
  %v1422 = vadd.f32 0.0, %v1421
  %v1423 = vpop.f32.mrb[0].mxu0
  %1424 = vmatprep.mubr.f32.mxu0 0.0
  %1425 = vmatmul.mubr.f32.gmra.mrb[0].mxu0 %v1339
  %v1426 = vpop.f32.mrb[0].mxu0
  %v1427 = vadd.f32 0.0, %v1426
  %v1428 = vpop.f32.mrb[0].mxu0
  %1429 = vmatprep.mubr.f32.mxu0 0.0
  %1430 = vmatmul.mubr.f32.gmra.mrb[0].mxu0 %v1342
  %v1431 = vpop.f32.mrb[0].mxu0
  %v1432 = vadd.f32 0.0, %v1431
  %v1433 = vpop.f32.mrb[0].mxu0
  %1434 = vmatprep.mubr.f32.mxu0 0.0
  %1435 = vmatmul.mubr.f32.gmra.mrb[0].mxu0 %v1345
  %v1436 = vpop.f32.mrb[0].mxu0
  %v1437 = vadd.f32 0.0, %v1436
  %v1438 = vpop.f32.mrb[0].mxu0
  %1439 = vmatprep.mubr.f32.mxu0 0.0
  %1440 = vmatmul.mubr.f32.gmra.mrb[0].mxu0 %v1348
  %v1441 = vpop.f32.mrb[0].mxu0
  %v1442 = vadd.f32 0.0, %v1441
  %v1443 = vpop.f32.mrb[0].mxu0
  %1444 = vdwg.mxu0
  %1445 = vrot.lane.b32.xlu0 %v401, 104
  %v1446 = vpop.permute.xlu0 %1445
  %1447 = vrot.lane.b32.xlu0 %v406, 104
  %v1448 = vpop.permute.xlu0 %1447
  %1449 = vrot.lane.b32.xlu0 %v411, 104
  %v1450 = vpop.permute.xlu0 %1449
  %1451 = vrot.lane.b32.xlu0 %v416, 104
  %v1452 = vpop.permute.xlu0 %1451
  %1453 = vrot.lane.b32.xlu0 %v421, 104
  %v1454 = vpop.permute.xlu0 %1453
  %1455 = vrot.lane.b32.xlu0 %v426, 104
  %v1456 = vpop.permute.xlu0 %1455
  %1457 = vrot.lane.b32.xlu0 %v401, 72
  %v1458 = vpop.permute.xlu0 %1457
  %1459 = vrot.lane.b32.xlu0 %v406, 72
  %v1460 = vpop.permute.xlu0 %1459
  %1461 = vrot.lane.b32.xlu0 %v411, 72
  %v1462 = vpop.permute.xlu0 %1461
  %1463 = vrot.lane.b32.xlu0 %v416, 72
  %v1464 = vpop.permute.xlu0 %1463
  %1465 = vrot.lane.b32.xlu0 %v421, 72
  %v1466 = vpop.permute.xlu0 %1465
  %1467 = vrot.lane.b32.xlu0 %v426, 72
  %v1468 = vpop.permute.xlu0 %1467
  %v1469 = vsel %vm447, %v1446, 0
  %v1471 = vsel %vm447, %v1448, 0
  %v1473 = vsel %vm447, %v1450, 0
  %v1475 = vsel %vm447, %v1452, 0
  %v1477 = vsel %vm447, %v1454, 0
  %v1479 = vsel %vm447, %v1456, 0
  %v1481 = vsel %vm447, %v1458, 0
  %v1483 = vsel %vm447, %v1460, 0
  %v1485 = vsel %vm447, %v1462, 0
  %v1487 = vsel %vm447, %v1464, 0
  %v1489 = vsel %vm447, %v1466, 0
  %v1491 = vsel %vm447, %v1468, 0
  %1493 = vmatprep.subr.mxu0 0.0
  %1494 = vmatpush1.xpose.msra.mxu0 %v1481
  %1495 = vmatprep.subr.mxu0 0.0
  %1496 = vmatpush1.xpose.msra.mxu0 %v1483
  %1497 = vmatprep.subr.mxu0 0.0
  %1498 = vmatpush1.xpose.msra.mxu0 %v1485
  %1499 = vmatprep.subr.mxu0 0.0
  %1500 = vmatpush1.xpose.msra.mxu0 %v1487
  %1501 = vmatprep.subr.mxu0 0.0
  %1502 = vmatpush1.xpose.msra.mxu0 %v1489
  %1503 = vmatprep.subr.mxu0 0.0
  %1504 = vmatpush1.xpose.msra.mxu0 %v1491
  %1505 = vmatprep.subr.mxu0 0.0
  %1506 = vmatpush1.xpose.msra.mxu0 0.0
  %1507 = vmatprep.subr.mxu0 0.0
  %1508 = vmatpush1.xpose.msra.mxu0 0.0
  %1509 = vmatprep.subr.mxu0 0.0
  %1510 = vmatpush1.xpose.msra.mxu0 0.0
  %1511 = vmatprep.subr.mxu0 0.0
  %1512 = vmatpush1.xpose.msra.mxu0 0.0
  %1513 = vmatprep.subr.mxu0 0.0
  %1514 = vmatpush1.xpose.msra.mxu0 0.0
  %1515 = vmatprep.subr.mxu0 0.0
  %1516 = vmatpush1.xpose.msra.mxu0 0.0
  %1517 = vmatprep.subr.mxu0 0.0
  %1518 = vmatpush1.xpose.msra.mxu0 0.0
  %1519 = vmatprep.subr.mxu0 0.0
  %1520 = vmatpush1.xpose.msra.mxu0 0.0
  %1521 = vmatprep.subr.mxu0 0.0
  %1522 = vmatpush1.xpose.msra.mxu0 0.0
  %1523 = vmatprep.subr.mxu0 0.0
  %1524 = vmatpush1.xpose.msra.mxu0 0.0
  %1525 = vmatprep.subr.mxu0 0.0
  %1526 = vmatpush1.xpose.msra.mxu0 0.0
  %1527 = vmatprep.subr.mxu0 0.0
  %1528 = vmatpush1.xpose.msra.mxu0 0.0
  %1529 = vmatprep.subr.mxu0 0.0
  %1530 = vmatpush1.xpose.msra.mxu0 0.0
  %1531 = vmatprep.subr.mxu0 0.0
  %1532 = vmatpush1.xpose.msra.mxu0 0.0
  %1533 = vmatprep.subr.mxu0 0.0
  %1534 = vmatpush1.xpose.msra.mxu0 0.0
  %1535 = vmatprep.subr.mxu0 0.0
  %1536 = vmatpush1.xpose.msra.mxu0 0.0
  %1537 = vmatprep.subr.mxu0 0.0
  %1538 = vmatpush1.xpose.msra.mxu0 0.0
  %1539 = vmatprep.subr.mxu0 0.0
  %1540 = vmatpush1.xpose.msra.mxu0 0.0
  %1541 = vmatprep.subr.mxu0 0.0
  %1542 = vmatpush1.xpose.msra.mxu0 0.0
  %1543 = vmatprep.subr.mxu0 0.0
  %1544 = vmatpush1.xpose.msra.mxu0 0.0
  %1545 = vmatprep.subr.mxu0 0.0
  %1546 = vmatpush1.xpose.msra.mxu0 0.0
  %1547 = vmatprep.subr.mxu0 0.0
  %1548 = vmatpush1.xpose.msra.mxu0 0.0
  %1549 = vmatprep.subr.mxu0 0.0
  %1550 = vmatpush1.xpose.msra.mxu0 0.0
  %1551 = vmatprep.subr.mxu0 0.0
  %1552 = vmatpush1.xpose.msra.mxu0 0.0
  %1553 = vmatprep.subr.mxu0 0.0
  %1554 = vmatpush1.xpose.msra.mxu0 0.0
  %1555 = vmatprep.subr.mxu0 0.0
  %1556 = vmatpush1.xpose.msra.mxu0 0.0
  %1557 = vmatprep.mubr.f32.mxu0 0.0
  %1558 = vmatmul.mubr.f32.gmra.mrb[0].mxu0 %v1469
  %v1559 = vpop.f32.mrb[0].mxu0
  %v1560 = vadd.f32 %v193, %v1559
  %v1561 = vpop.f32.mrb[0].mxu0
  %1562 = vmatprep.mubr.f32.mxu0 0.0
  %1563 = vmatmul.mubr.f32.gmra.mrb[0].mxu0 %v1471
  %v1564 = vpop.f32.mrb[0].mxu0
  %v1565 = vadd.f32 %v194, %v1564
  %v1566 = vpop.f32.mrb[0].mxu0
  %1567 = vmatprep.mubr.f32.mxu0 0.0
  %1568 = vmatmul.mubr.f32.gmra.mrb[0].mxu0 %v1473
  %v1569 = vpop.f32.mrb[0].mxu0
  %v1570 = vadd.f32 %v195, %v1569
  %v1571 = vpop.f32.mrb[0].mxu0
  %1572 = vmatprep.mubr.f32.mxu0 0.0
  %1573 = vmatmul.mubr.f32.gmra.mrb[0].mxu0 %v1475
  %v1574 = vpop.f32.mrb[0].mxu0
  %v1575 = vadd.f32 %v196, %v1574
  %v1576 = vpop.f32.mrb[0].mxu0
  %1577 = vmatprep.mubr.f32.mxu0 0.0
  %1578 = vmatmul.mubr.f32.gmra.mrb[0].mxu0 %v1477
  %v1579 = vpop.f32.mrb[0].mxu0
  %v1580 = vadd.f32 %v197, %v1579
  %v1581 = vpop.f32.mrb[0].mxu0
  %1582 = vmatprep.mubr.f32.mxu0 0.0
  %1583 = vmatmul.mubr.f32.gmra.mrb[0].mxu0 %v1479
  %v1584 = vpop.f32.mrb[0].mxu0
  %v1585 = vadd.f32 %v198, %v1584
  %v1586 = vpop.f32.mrb[0].mxu0
  %1587 = vdwg.mxu0
  %v1588 = vsel %vm567, %v1560, -inf
  %1589 = vmax.xlane.f32.xlu0 %v1588
  %v1590 = vpop.xlane.xlu0 %1589
  %v1591 = vsel %vm567, %v1565, -inf
  %1592 = vmax.xlane.f32.xlu0 %v1591
  %v1593 = vpop.xlane.xlu0 %1592
  %v1594 = vsel %vm567, %v1570, -inf
  %1595 = vmax.xlane.f32.xlu0 %v1594
  %v1596 = vpop.xlane.xlu0 %1595
  %v1597 = vsel %vm567, %v1575, -inf
  %1598 = vmax.xlane.f32.xlu0 %v1597
  %v1599 = vpop.xlane.xlu0 %1598
  %v1600 = vsel %vm567, %v1580, -inf
  %1601 = vmax.xlane.f32.xlu0 %v1600
  %v1602 = vpop.xlane.xlu0 %1601
  %v1603 = vsel %vm567, %v1585, -inf
  %1604 = vmax.xlane.f32.xlu0 %v1603
  %v1605 = vpop.xlane.xlu0 %1604
  %v1606 = vsub.f32 %v1560, %v1590
  %v1607 = vsub.f32 %v1565, %v1593
  %v1608 = vsub.f32 %v1570, %v1596
  %v1609 = vsub.f32 %v1575, %v1599
  %v1610 = vsub.f32 %v1580, %v1602
  %v1611 = vsub.f32 %v1585, %v1605
  %v1612 = vmul.f32 %v1606, 1.442695
  %v1613 = vpow.pop %v1612
  %v1614 = vmul.f32 %v1607, 1.442695
  %v1615 = vpow.pop %v1614
  %v1616 = vmul.f32 %v1608, 1.442695
  %v1617 = vpow.pop %v1616
  %v1618 = vmul.f32 %v1609, 1.442695
  %v1619 = vpow.pop %v1618
  %v1620 = vmul.f32 %v1610, 1.442695
  %v1621 = vpow.pop %v1620
  %v1622 = vmul.f32 %v1611, 1.442695
  %v1623 = vpow.pop %v1622
  %v1624 = vsel %vm567, %v1613, 0.0
  %1625 = vadd.xlane.f32.xlu0 %v1624
  %v1626 = vpop.xlane.xlu0 %1625
  %v1627 = vsel %vm567, %v1615, 0.0
  %1628 = vadd.xlane.f32.xlu0 %v1627
  %v1629 = vpop.xlane.xlu0 %1628
  %v1630 = vsel %vm567, %v1617, 0.0
  %1631 = vadd.xlane.f32.xlu0 %v1630
  %v1632 = vpop.xlane.xlu0 %1631
  %v1633 = vsel %vm567, %v1619, 0.0
  %1634 = vadd.xlane.f32.xlu0 %v1633
  %v1635 = vpop.xlane.xlu0 %1634
  %v1636 = vsel %vm567, %v1621, 0.0
  %1637 = vadd.xlane.f32.xlu0 %v1636
  %v1638 = vpop.xlane.xlu0 %1637
  %v1639 = vsel %vm567, %v1623, 0.0
  %1640 = vadd.xlane.f32.xlu0 %v1639
  %v1641 = vpop.xlane.xlu0 %1640
  %v1642 = vrcp.pop %v1626
  %v1643 = vrcp.pop %v1629
  %v1644 = vrcp.pop %v1632
  %v1645 = vrcp.pop %v1635
  %v1646 = vrcp.pop %v1638
  %v1647 = vrcp.pop %v1641
  %v1648 = vmul.f32 %v1613, %v1642
  %v1649 = vmul.f32 %v1615, %v1643
  %v1650 = vmul.f32 %v1617, %v1644
  %v1651 = vmul.f32 %v1619, %v1645
  %v1652 = vmul.f32 %v1621, %v1646
  %v1653 = vmul.f32 %v1623, %v1647
  %1654 = vrot.lane.b32.xlu0 %v401, 40
  %v1655 = vpop.permute.xlu0 %1654
  %1656 = vrot.lane.b32.xlu0 %v406, 40
  %v1657 = vpop.permute.xlu0 %1656
  %1658 = vrot.lane.b32.xlu0 %v411, 40
  %v1659 = vpop.permute.xlu0 %1658
  %1660 = vrot.lane.b32.xlu0 %v416, 40
  %v1661 = vpop.permute.xlu0 %1660
  %1662 = vrot.lane.b32.xlu0 %v421, 40
  %v1663 = vpop.permute.xlu0 %1662
  %1664 = vrot.lane.b32.xlu0 %v426, 40
  %v1665 = vpop.permute.xlu0 %1664
  %v1673 = vsel %vm567, %v1648, 0
  %v1676 = vsel %vm567, %v1649, 0
  %v1679 = vsel %vm567, %v1650, 0
  %v1682 = vsel %vm567, %v1651, 0
  %v1685 = vsel %vm567, %v1652, 0
  %v1688 = vsel %vm567, %v1653, 0
  %1690 = vmatprep.subr.mxu0 0.0
  %1691 = vmatpush1.msra.mxu0 %v1655
  %1692 = vmatprep.subr.mxu0 0.0
  %1693 = vmatpush1.msra.mxu0 %v1657
  %1694 = vmatprep.subr.mxu0 0.0
  %1695 = vmatpush1.msra.mxu0 %v1659
  %1696 = vmatprep.subr.mxu0 0.0
  %1697 = vmatpush1.msra.mxu0 %v1661
  %1698 = vmatprep.subr.mxu0 0.0
  %1699 = vmatpush1.msra.mxu0 %v1663
  %1700 = vmatprep.subr.mxu0 0.0
  %1701 = vmatpush1.msra.mxu0 %v1665
  %1702 = vmatprep.subr.mxu0 0.0
  %1703 = vmatpush1.msra.mxu0 0.0
  %1704 = vmatprep.subr.mxu0 0.0
  %1705 = vmatpush1.msra.mxu0 0.0
  %1706 = vmatprep.subr.mxu0 0.0
  %1707 = vmatpush1.msra.mxu0 0.0
  %1708 = vmatprep.subr.mxu0 0.0
  %1709 = vmatpush1.msra.mxu0 0.0
  %1710 = vmatprep.subr.mxu0 0.0
  %1711 = vmatpush1.msra.mxu0 0.0
  %1712 = vmatprep.subr.mxu0 0.0
  %1713 = vmatpush1.msra.mxu0 0.0
  %1714 = vmatprep.subr.mxu0 0.0
  %1715 = vmatpush1.msra.mxu0 0.0
  %1716 = vmatprep.subr.mxu0 0.0
  %1717 = vmatpush1.msra.mxu0 0.0
  %1718 = vmatprep.subr.mxu0 0.0
  %1719 = vmatpush1.msra.mxu0 0.0
  %1720 = vmatprep.subr.mxu0 0.0
  %1721 = vmatpush1.msra.mxu0 0.0
  %1722 = vmatprep.subr.mxu0 0.0
  %1723 = vmatpush1.msra.mxu0 0.0
  %1724 = vmatprep.subr.mxu0 0.0
  %1725 = vmatpush1.msra.mxu0 0.0
  %1726 = vmatprep.subr.mxu0 0.0
  %1727 = vmatpush1.msra.mxu0 0.0
  %1728 = vmatprep.subr.mxu0 0.0
  %1729 = vmatpush1.msra.mxu0 0.0
  %1730 = vmatprep.subr.mxu0 0.0
  %1731 = vmatpush1.msra.mxu0 0.0
  %1732 = vmatprep.subr.mxu0 0.0
  %1733 = vmatpush1.msra.mxu0 0.0
  %1734 = vmatprep.subr.mxu0 0.0
  %1735 = vmatpush1.msra.mxu0 0.0
  %1736 = vmatprep.subr.mxu0 0.0
  %1737 = vmatpush1.msra.mxu0 0.0
  %1738 = vmatprep.subr.mxu0 0.0
  %1739 = vmatpush1.msra.mxu0 0.0
  %1740 = vmatprep.subr.mxu0 0.0
  %1741 = vmatpush1.msra.mxu0 0.0
  %1742 = vmatprep.subr.mxu0 0.0
  %1743 = vmatpush1.msra.mxu0 0.0
  %1744 = vmatprep.subr.mxu0 0.0
  %1745 = vmatpush1.msra.mxu0 0.0
  %1746 = vmatprep.subr.mxu0 0.0
  %1747 = vmatpush1.msra.mxu0 0.0
  %1748 = vmatprep.subr.mxu0 0.0
  %1749 = vmatpush1.msra.mxu0 0.0
  %1750 = vmatprep.subr.mxu0 0.0
  %1751 = vmatpush1.msra.mxu0 0.0
  %1752 = vmatprep.subr.mxu0 0.0
  %1753 = vmatpush1.msra.mxu0 0.0
  %1754 = vmatprep.mubr.f32.mxu0 0.0
  %1755 = vmatmul.mubr.f32.gmra.mrb[0].mxu0 %v1673
  %v1756 = vpop.f32.mrb[0].mxu0
  %v1757 = vadd.f32 0.0, %v1756
  %v1758 = vpop.f32.mrb[0].mxu0
  %1759 = vmatprep.mubr.f32.mxu0 0.0
  %1760 = vmatmul.mubr.f32.gmra.mrb[0].mxu0 %v1676
  %v1761 = vpop.f32.mrb[0].mxu0
  %v1762 = vadd.f32 0.0, %v1761
  %v1763 = vpop.f32.mrb[0].mxu0
  %1764 = vmatprep.mubr.f32.mxu0 0.0
  %1765 = vmatmul.mubr.f32.gmra.mrb[0].mxu0 %v1679
  %v1766 = vpop.f32.mrb[0].mxu0
  %v1767 = vadd.f32 0.0, %v1766
  %v1768 = vpop.f32.mrb[0].mxu0
  %1769 = vmatprep.mubr.f32.mxu0 0.0
  %1770 = vmatmul.mubr.f32.gmra.mrb[0].mxu0 %v1682
  %v1771 = vpop.f32.mrb[0].mxu0
  %v1772 = vadd.f32 0.0, %v1771
  %v1773 = vpop.f32.mrb[0].mxu0
  %1774 = vmatprep.mubr.f32.mxu0 0.0
  %1775 = vmatmul.mubr.f32.gmra.mrb[0].mxu0 %v1685
  %v1776 = vpop.f32.mrb[0].mxu0
  %v1777 = vadd.f32 0.0, %v1776
  %v1778 = vpop.f32.mrb[0].mxu0
  %1779 = vmatprep.mubr.f32.mxu0 0.0
  %1780 = vmatmul.mubr.f32.gmra.mrb[0].mxu0 %v1688
  %v1781 = vpop.f32.mrb[0].mxu0
  %v1782 = vadd.f32 0.0, %v1781
  %v1783 = vpop.f32.mrb[0].mxu0
  %1784 = vdwg.mxu0
  %1791 = vrot.lane.b32.xlu0 %v1077, 8
  %v1792 = vpop.permute.xlu0 %1791
  %1793 = vrot.lane.b32.xlu0 %v1082, 8
  %v1794 = vpop.permute.xlu0 %1793
  %1795 = vrot.lane.b32.xlu0 %v1087, 8
  %v1796 = vpop.permute.xlu0 %1795
  %1797 = vrot.lane.b32.xlu0 %v1092, 8
  %v1798 = vpop.permute.xlu0 %1797
  %1799 = vrot.lane.b32.xlu0 %v1097, 8
  %v1800 = vpop.permute.xlu0 %1799
  %1801 = vrot.lane.b32.xlu0 %v1102, 8
  %v1802 = vpop.permute.xlu0 %1801
  %1815 = vrot.lane.b32.xlu0 %v1417, 16
  %v1816 = vpop.permute.xlu0 %1815
  %1817 = vrot.lane.b32.xlu0 %v1422, 16
  %v1818 = vpop.permute.xlu0 %1817
  %1819 = vrot.lane.b32.xlu0 %v1427, 16
  %v1820 = vpop.permute.xlu0 %1819
  %1821 = vrot.lane.b32.xlu0 %v1432, 16
  %v1822 = vpop.permute.xlu0 %1821
  %1823 = vrot.lane.b32.xlu0 %v1437, 16
  %v1824 = vpop.permute.xlu0 %1823
  %1825 = vrot.lane.b32.xlu0 %v1442, 16
  %v1826 = vpop.permute.xlu0 %1825
  %1839 = vrot.lane.b32.xlu0 %v1757, 24
  %v1840 = vpop.permute.xlu0 %1839
  %1841 = vrot.lane.b32.xlu0 %v1762, 24
  %v1842 = vpop.permute.xlu0 %1841
  %1843 = vrot.lane.b32.xlu0 %v1767, 24
  %v1844 = vpop.permute.xlu0 %1843
  %1845 = vrot.lane.b32.xlu0 %v1772, 24
  %v1846 = vpop.permute.xlu0 %1845
  %1847 = vrot.lane.b32.xlu0 %v1777, 24
  %v1848 = vpop.permute.xlu0 %1847
  %1849 = vrot.lane.b32.xlu0 %v1782, 24
  %v1850 = vpop.permute.xlu0 %1849
  %v1857 = vsel %vm447, %v737, %v1792
  %v1858 = vsel %vm447, %v742, %v1794
  %v1859 = vsel %vm447, %v747, %v1796
  %v1860 = vsel %vm447, %v752, %v1798
  %v1861 = vsel %vm447, %v757, %v1800
  %v1862 = vsel %vm447, %v762, %v1802
  %vm1863 = vcmask 130048
  %v1864 = vsel %vm1863, %v1857, %v1816
  %v1865 = vsel %vm1863, %v1858, %v1818
  %v1866 = vsel %vm1863, %v1859, %v1820
  %v1867 = vsel %vm1863, %v1860, %v1822
  %v1868 = vsel %vm1863, %v1861, %v1824
  %v1869 = vsel %vm1863, %v1862, %v1826
  %vm1870 = vcmask 195584
  %v1871 = vsel %vm1870, %v1864, %v1840
  %v1872 = vsel %vm1870, %v1865, %v1842
  %v1873 = vsel %vm1870, %v1866, %v1844
  %v1874 = vsel %vm1870, %v1867, %v1846
  %v1875 = vsel %vm1870, %v1868, %v1848
  %v1876 = vsel %vm1870, %v1869, %v1850
  %v1877 = vld [vmem:[%s8] sm:$0xff]
  %v1878 = vld [vmem:[%s8 + $0x8] sm:$0xff]
  %v1879 = vld [vmem:[%s8 + $0x10] sm:$0xff]
  %v1880 = vld [vmem:[%s8 + $0x18] sm:$0xff]
  %v1882 = vsel %vm201, %v1871, 0
  %v1885 = vsel %vm201, %v1872, 0
  %v1888 = vsel %vm201, %v1873, 0
  %v1891 = vsel %vm201, %v1874, 0
  %v1894 = vsel %vm201, %v1875, 0
  %v1897 = vsel %vm201, %v1876, 0
  %1899 = vmatprep.subr.mxu0 0.0
  %1900 = vmatpush1.msra.mxu0 %v1877
  %1901 = vmatprep.subr.mxu0 0.0
  %1902 = vmatpush1.msra.mxu0 %v1878
  %1903 = vmatprep.subr.mxu0 0.0
  %1904 = vmatpush1.msra.mxu0 %v1879
  %1905 = vmatprep.subr.mxu0 0.0
  %1906 = vmatpush1.msra.mxu0 %v1880
  %1907 = vmatprep.subr.mxu0 0.0
  %1908 = vmatpush1.msra.mxu0 0.0
  %1909 = vmatprep.subr.mxu0 0.0
  %1910 = vmatpush1.msra.mxu0 0.0
  %1911 = vmatprep.subr.mxu0 0.0
  %1912 = vmatpush1.msra.mxu0 0.0
  %1913 = vmatprep.subr.mxu0 0.0
  %1914 = vmatpush1.msra.mxu0 0.0
  %1915 = vmatprep.subr.mxu0 0.0
  %1916 = vmatpush1.msra.mxu0 0.0
  %1917 = vmatprep.subr.mxu0 0.0
  %1918 = vmatpush1.msra.mxu0 0.0
  %1919 = vmatprep.subr.mxu0 0.0
  %1920 = vmatpush1.msra.mxu0 0.0
  %1921 = vmatprep.subr.mxu0 0.0
  %1922 = vmatpush1.msra.mxu0 0.0
  %1923 = vmatprep.subr.mxu0 0.0
  %1924 = vmatpush1.msra.mxu0 0.0
  %1925 = vmatprep.subr.mxu0 0.0
  %1926 = vmatpush1.msra.mxu0 0.0
  %1927 = vmatprep.subr.mxu0 0.0
  %1928 = vmatpush1.msra.mxu0 0.0
  %1929 = vmatprep.subr.mxu0 0.0
  %1930 = vmatpush1.msra.mxu0 0.0
  %1931 = vmatprep.subr.mxu0 0.0
  %1932 = vmatpush1.msra.mxu0 0.0
  %1933 = vmatprep.subr.mxu0 0.0
  %1934 = vmatpush1.msra.mxu0 0.0
  %1935 = vmatprep.subr.mxu0 0.0
  %1936 = vmatpush1.msra.mxu0 0.0
  %1937 = vmatprep.subr.mxu0 0.0
  %1938 = vmatpush1.msra.mxu0 0.0
  %1939 = vmatprep.subr.mxu0 0.0
  %1940 = vmatpush1.msra.mxu0 0.0
  %1941 = vmatprep.subr.mxu0 0.0
  %1942 = vmatpush1.msra.mxu0 0.0
  %1943 = vmatprep.subr.mxu0 0.0
  %1944 = vmatpush1.msra.mxu0 0.0
  %1945 = vmatprep.subr.mxu0 0.0
  %1946 = vmatpush1.msra.mxu0 0.0
  %1947 = vmatprep.subr.mxu0 0.0
  %1948 = vmatpush1.msra.mxu0 0.0
  %1949 = vmatprep.subr.mxu0 0.0
  %1950 = vmatpush1.msra.mxu0 0.0
  %1951 = vmatprep.subr.mxu0 0.0
  %1952 = vmatpush1.msra.mxu0 0.0
  %1953 = vmatprep.subr.mxu0 0.0
  %1954 = vmatpush1.msra.mxu0 0.0
  %1955 = vmatprep.subr.mxu0 0.0
  %1956 = vmatpush1.msra.mxu0 0.0
  %1957 = vmatprep.subr.mxu0 0.0
  %1958 = vmatpush1.msra.mxu0 0.0
  %1959 = vmatprep.subr.mxu0 0.0
  %1960 = vmatpush1.msra.mxu0 0.0
  %1961 = vmatprep.subr.mxu0 0.0
  %1962 = vmatpush1.msra.mxu0 0.0
  %1963 = vmatprep.mubr.f32.mxu0 0.0
  %1964 = vmatmul.mubr.f32.gmra.mrb[0].mxu0 %v1882
  %v1965 = vpop.f32.mrb[0].mxu0
  %v1966 = vadd.f32 0.0, %v1965
  %v1967 = vpop.f32.mrb[0].mxu0
  %1968 = vmatprep.mubr.f32.mxu0 0.0
  %1969 = vmatmul.mubr.f32.gmra.mrb[0].mxu0 %v1885
  %v1970 = vpop.f32.mrb[0].mxu0
  %v1971 = vadd.f32 0.0, %v1970
  %v1972 = vpop.f32.mrb[0].mxu0
  %1973 = vmatprep.mubr.f32.mxu0 0.0
  %1974 = vmatmul.mubr.f32.gmra.mrb[0].mxu0 %v1888
  %v1975 = vpop.f32.mrb[0].mxu0
  %v1976 = vadd.f32 0.0, %v1975
  %v1977 = vpop.f32.mrb[0].mxu0
  %1978 = vmatprep.mubr.f32.mxu0 0.0
  %1979 = vmatmul.mubr.f32.gmra.mrb[0].mxu0 %v1891
  %v1980 = vpop.f32.mrb[0].mxu0
  %v1981 = vadd.f32 0.0, %v1980
  %v1982 = vpop.f32.mrb[0].mxu0
  %1983 = vmatprep.mubr.f32.mxu0 0.0
  %1984 = vmatmul.mubr.f32.gmra.mrb[0].mxu0 %v1894
  %v1985 = vpop.f32.mrb[0].mxu0
  %v1986 = vadd.f32 0.0, %v1985
  %v1987 = vpop.f32.mrb[0].mxu0
  %1988 = vmatprep.mubr.f32.mxu0 0.0
  %1989 = vmatmul.mubr.f32.gmra.mrb[0].mxu0 %v1897
  %v1990 = vpop.f32.mrb[0].mxu0
  %v1991 = vadd.f32 0.0, %v1990
  %v1992 = vpop.f32.mrb[0].mxu0
  %1993 = vdwg.mxu0
  %v1994 = vadd.f32 %v165, %v1966
  %v1995 = vadd.f32 %v170, %v1971
  %v1996 = vadd.f32 %v175, %v1976
  %v1997 = vadd.f32 %v180, %v1981
  %v1998 = vadd.f32 %v185, %v1986
  %v1999 = vadd.f32 %v190, %v1991
  %v2000 = vld [vmem:[%s9] sm:$0x1]
  %v2002 = vlaneseq
  %v2003 = vshrl.u32 %v2002, 7
  %v2004 = vsub.s32 0, %v2003
  %v2005 = vrot.slane %v2000, %v2004
  %v2007 = vadd.f32 %v1994, %v2005
  %v2008 = vadd.f32 %v1995, %v2005
  %v2009 = vadd.f32 %v1996, %v2005
  %v2010 = vadd.f32 %v1997, %v2005
  %v2011 = vadd.f32 %v1998, %v2005
  %v2012 = vadd.f32 %v1999, %v2005
  %v2013 = vld [vmem:[%s10] sm:$0x1]
  %v2014 = vld [vmem:[%s11] sm:$0x1]
  %v2015 = vsel %vm201, %v2007, 0.0
  %2016 = vadd.xlane.f32.xlu0 %v2015
  %v2017 = vpop.xlane.xlu0 %2016
  %v2018 = vsel %vm201, %v2008, 0.0
  %2019 = vadd.xlane.f32.xlu0 %v2018
  %v2020 = vpop.xlane.xlu0 %2019
  %v2021 = vsel %vm201, %v2009, 0.0
  %2022 = vadd.xlane.f32.xlu0 %v2021
  %v2023 = vpop.xlane.xlu0 %2022
  %v2024 = vsel %vm201, %v2010, 0.0
  %2025 = vadd.xlane.f32.xlu0 %v2024
  %v2026 = vpop.xlane.xlu0 %2025
  %v2027 = vsel %vm201, %v2011, 0.0
  %2028 = vadd.xlane.f32.xlu0 %v2027
  %v2029 = vpop.xlane.xlu0 %2028
  %v2030 = vsel %vm201, %v2012, 0.0
  %2031 = vadd.xlane.f32.xlu0 %v2030
  %v2032 = vpop.xlane.xlu0 %2031
  %v2033 = vmul.f32 %v2017, %v220
  %v2034 = vmul.f32 %v2020, %v220
  %v2035 = vmul.f32 %v2023, %v220
  %v2036 = vmul.f32 %v2026, %v220
  %v2037 = vmul.f32 %v2029, %v220
  %v2038 = vmul.f32 %v2032, %v220
  %v2039 = vsub.f32 %v2007, %v2033
  %v2040 = vsub.f32 %v2008, %v2034
  %v2041 = vsub.f32 %v2009, %v2035
  %v2042 = vsub.f32 %v2010, %v2036
  %v2043 = vsub.f32 %v2011, %v2037
  %v2044 = vsub.f32 %v2012, %v2038
  %v2045 = vmul.f32 %v2039, %v2039
  %v2046 = vmul.f32 %v2040, %v2040
  %v2047 = vmul.f32 %v2041, %v2041
  %v2048 = vmul.f32 %v2042, %v2042
  %v2049 = vmul.f32 %v2043, %v2043
  %v2050 = vmul.f32 %v2044, %v2044
  %v2051 = vsel %vm201, %v2045, 0.0
  %2052 = vadd.xlane.f32.xlu0 %v2051
  %v2053 = vpop.xlane.xlu0 %2052
  %v2054 = vsel %vm201, %v2046, 0.0
  %2055 = vadd.xlane.f32.xlu0 %v2054
  %v2056 = vpop.xlane.xlu0 %2055
  %v2057 = vsel %vm201, %v2047, 0.0
  %2058 = vadd.xlane.f32.xlu0 %v2057
  %v2059 = vpop.xlane.xlu0 %2058
  %v2060 = vsel %vm201, %v2048, 0.0
  %2061 = vadd.xlane.f32.xlu0 %v2060
  %v2062 = vpop.xlane.xlu0 %2061
  %v2063 = vsel %vm201, %v2049, 0.0
  %2064 = vadd.xlane.f32.xlu0 %v2063
  %v2065 = vpop.xlane.xlu0 %2064
  %v2066 = vsel %vm201, %v2050, 0.0
  %2067 = vadd.xlane.f32.xlu0 %v2066
  %v2068 = vpop.xlane.xlu0 %2067
  %v2069 = vmul.f32 %v2053, %v220
  %v2070 = vmul.f32 %v2056, %v220
  %v2071 = vmul.f32 %v2059, %v220
  %v2072 = vmul.f32 %v2062, %v220
  %v2073 = vmul.f32 %v2065, %v220
  %v2074 = vmul.f32 %v2068, %v220
  %v2075 = vadd.f32 %v2069, 1e-05
  %v2076 = vadd.f32 %v2070, 1e-05
  %v2077 = vadd.f32 %v2071, 1e-05
  %v2078 = vadd.f32 %v2072, 1e-05
  %v2079 = vadd.f32 %v2073, 1e-05
  %v2080 = vadd.f32 %v2074, 1e-05
  %v2081 = vrsqrt.pop %v2075
  %v2082 = vrsqrt.pop %v2076
  %v2083 = vrsqrt.pop %v2077
  %v2084 = vrsqrt.pop %v2078
  %v2085 = vrsqrt.pop %v2079
  %v2086 = vrsqrt.pop %v2080
  %v2087 = vmul.f32 %v2039, %v2081
  %v2088 = vmul.f32 %v2040, %v2082
  %v2089 = vmul.f32 %v2041, %v2083
  %v2090 = vmul.f32 %v2042, %v2084
  %v2091 = vmul.f32 %v2043, %v2085
  %v2092 = vmul.f32 %v2044, %v2086
  %v2094 = vlaneseq
  %v2095 = vshrl.u32 %v2094, 7
  %v2096 = vsub.s32 0, %v2095
  %v2097 = vrot.slane %v2013, %v2096
  %v2099 = vmul.f32 %v2087, %v2097
  %v2100 = vmul.f32 %v2088, %v2097
  %v2101 = vmul.f32 %v2089, %v2097
  %v2102 = vmul.f32 %v2090, %v2097
  %v2103 = vmul.f32 %v2091, %v2097
  %v2104 = vmul.f32 %v2092, %v2097
  %v2106 = vlaneseq
  %v2107 = vshrl.u32 %v2106, 7
  %v2108 = vsub.s32 0, %v2107
  %v2109 = vrot.slane %v2014, %v2108
  %v2111 = vadd.f32 %v2099, %v2109
  %v2112 = vadd.f32 %v2100, %v2109
  %v2113 = vadd.f32 %v2101, %v2109
  %v2114 = vadd.f32 %v2102, %v2109
  %v2115 = vadd.f32 %v2103, %v2109
  %v2116 = vadd.f32 %v2104, %v2109
  %v2117 = vld [vmem:[%s12] sm:$0xff]
  %v2118 = vld [vmem:[%s12 + $0x8] sm:$0xff]
  %v2119 = vld [vmem:[%s12 + $0x10] sm:$0xff]
  %v2120 = vld [vmem:[%s12 + $0x18] sm:$0xff]
  %v2121 = vld [vmem:[%s13] sm:$0x1]
  %v2123 = vlaneseq
  %v2124 = vshrl.u32 %v2123, 7
  %v2125 = vsub.s32 0, %v2124
  %v2126 = vrot.slane %v2121, %v2125
  %v2129 = vsel %vm201, %v2111, 0
  %v2132 = vsel %vm201, %v2112, 0
  %v2135 = vsel %vm201, %v2113, 0
  %v2138 = vsel %vm201, %v2114, 0
  %v2141 = vsel %vm201, %v2115, 0
  %v2144 = vsel %vm201, %v2116, 0
  %2146 = vmatprep.subr.mxu0 0.0
  %2147 = vmatpush1.msra.mxu0 %v2117
  %2148 = vmatprep.subr.mxu0 0.0
  %2149 = vmatpush1.msra.mxu0 %v2118
  %2150 = vmatprep.subr.mxu0 0.0
  %2151 = vmatpush1.msra.mxu0 %v2119
  %2152 = vmatprep.subr.mxu0 0.0
  %2153 = vmatpush1.msra.mxu0 %v2120
  %2154 = vmatprep.subr.mxu0 0.0
  %2155 = vmatpush1.msra.mxu0 0.0
  %2156 = vmatprep.subr.mxu0 0.0
  %2157 = vmatpush1.msra.mxu0 0.0
  %2158 = vmatprep.subr.mxu0 0.0
  %2159 = vmatpush1.msra.mxu0 0.0
  %2160 = vmatprep.subr.mxu0 0.0
  %2161 = vmatpush1.msra.mxu0 0.0
  %2162 = vmatprep.subr.mxu0 0.0
  %2163 = vmatpush1.msra.mxu0 0.0
  %2164 = vmatprep.subr.mxu0 0.0
  %2165 = vmatpush1.msra.mxu0 0.0
  %2166 = vmatprep.subr.mxu0 0.0
  %2167 = vmatpush1.msra.mxu0 0.0
  %2168 = vmatprep.subr.mxu0 0.0
  %2169 = vmatpush1.msra.mxu0 0.0
  %2170 = vmatprep.subr.mxu0 0.0
  %2171 = vmatpush1.msra.mxu0 0.0
  %2172 = vmatprep.subr.mxu0 0.0
  %2173 = vmatpush1.msra.mxu0 0.0
  %2174 = vmatprep.subr.mxu0 0.0
  %2175 = vmatpush1.msra.mxu0 0.0
  %2176 = vmatprep.subr.mxu0 0.0
  %2177 = vmatpush1.msra.mxu0 0.0
  %2178 = vmatprep.subr.mxu0 0.0
  %2179 = vmatpush1.msra.mxu0 0.0
  %2180 = vmatprep.subr.mxu0 0.0
  %2181 = vmatpush1.msra.mxu0 0.0
  %2182 = vmatprep.subr.mxu0 0.0
  %2183 = vmatpush1.msra.mxu0 0.0
  %2184 = vmatprep.subr.mxu0 0.0
  %2185 = vmatpush1.msra.mxu0 0.0
  %2186 = vmatprep.subr.mxu0 0.0
  %2187 = vmatpush1.msra.mxu0 0.0
  %2188 = vmatprep.subr.mxu0 0.0
  %2189 = vmatpush1.msra.mxu0 0.0
  %2190 = vmatprep.subr.mxu0 0.0
  %2191 = vmatpush1.msra.mxu0 0.0
  %2192 = vmatprep.subr.mxu0 0.0
  %2193 = vmatpush1.msra.mxu0 0.0
  %2194 = vmatprep.subr.mxu0 0.0
  %2195 = vmatpush1.msra.mxu0 0.0
  %2196 = vmatprep.subr.mxu0 0.0
  %2197 = vmatpush1.msra.mxu0 0.0
  %2198 = vmatprep.subr.mxu0 0.0
  %2199 = vmatpush1.msra.mxu0 0.0
  %2200 = vmatprep.subr.mxu0 0.0
  %2201 = vmatpush1.msra.mxu0 0.0
  %2202 = vmatprep.subr.mxu0 0.0
  %2203 = vmatpush1.msra.mxu0 0.0
  %2204 = vmatprep.subr.mxu0 0.0
  %2205 = vmatpush1.msra.mxu0 0.0
  %2206 = vmatprep.subr.mxu0 0.0
  %2207 = vmatpush1.msra.mxu0 0.0
  %2208 = vmatprep.subr.mxu0 0.0
  %2209 = vmatpush1.msra.mxu0 0.0
  %2210 = vmatprep.mubr.f32.mxu0 0.0
  %2211 = vmatmul.mubr.f32.gmra.mrb[0].mxu0 %v2129
  %v2212 = vpop.f32.mrb[0].mxu0
  %v2213 = vadd.f32 %v2126, %v2212
  %v2214 = vpop.f32.mrb[0].mxu0
  %2215 = vmatprep.mubr.f32.mxu0 0.0
  %2216 = vmatmul.mubr.f32.gmra.mrb[0].mxu0 %v2132
  %v2217 = vpop.f32.mrb[0].mxu0
  %v2218 = vadd.f32 %v2126, %v2217
  %v2219 = vpop.f32.mrb[0].mxu0
  %2220 = vmatprep.mubr.f32.mxu0 0.0
  %2221 = vmatmul.mubr.f32.gmra.mrb[0].mxu0 %v2135
  %v2222 = vpop.f32.mrb[0].mxu0
  %v2223 = vadd.f32 %v2126, %v2222
  %v2224 = vpop.f32.mrb[0].mxu0
  %2225 = vmatprep.mubr.f32.mxu0 0.0
  %2226 = vmatmul.mubr.f32.gmra.mrb[0].mxu0 %v2138
  %v2227 = vpop.f32.mrb[0].mxu0
  %v2228 = vadd.f32 %v2126, %v2227
  %v2229 = vpop.f32.mrb[0].mxu0
  %2230 = vmatprep.mubr.f32.mxu0 0.0
  %2231 = vmatmul.mubr.f32.gmra.mrb[0].mxu0 %v2141
  %v2232 = vpop.f32.mrb[0].mxu0
  %v2233 = vadd.f32 %v2126, %v2232
  %v2234 = vpop.f32.mrb[0].mxu0
  %2235 = vmatprep.mubr.f32.mxu0 0.0
  %2236 = vmatmul.mubr.f32.gmra.mrb[0].mxu0 %v2144
  %v2237 = vpop.f32.mrb[0].mxu0
  %v2238 = vadd.f32 %v2126, %v2237
  %v2239 = vpop.f32.mrb[0].mxu0
  %2240 = vdwg.mxu0
  %v2241 = vmul.f32 %v2213, 0.5
  %v2242 = vmul.f32 %v2218, 0.5
  %v2243 = vmul.f32 %v2223, 0.5
  %v2244 = vmul.f32 %v2228, 0.5
  %v2245 = vmul.f32 %v2233, 0.5
  %v2246 = vmul.f32 %v2238, 0.5
  %v2247 = vmul.f32 %v2213, 0.044715
  %v2248 = vmul.f32 %v2218, 0.044715
  %v2249 = vmul.f32 %v2223, 0.044715
  %v2250 = vmul.f32 %v2228, 0.044715
  %v2251 = vmul.f32 %v2233, 0.044715
  %v2252 = vmul.f32 %v2238, 0.044715
  %v2253 = vmul.f32 %v2247, %v2213
  %v2254 = vmul.f32 %v2248, %v2218
  %v2255 = vmul.f32 %v2249, %v2223
  %v2256 = vmul.f32 %v2250, %v2228
  %v2257 = vmul.f32 %v2251, %v2233
  %v2258 = vmul.f32 %v2252, %v2238
  %v2259 = vmul.f32 %v2253, %v2213
  %v2260 = vmul.f32 %v2254, %v2218
  %v2261 = vmul.f32 %v2255, %v2223
  %v2262 = vmul.f32 %v2256, %v2228
  %v2263 = vmul.f32 %v2257, %v2233
  %v2264 = vmul.f32 %v2258, %v2238
  %v2265 = vadd.f32 %v2213, %v2259
  %v2266 = vadd.f32 %v2218, %v2260
  %v2267 = vadd.f32 %v2223, %v2261
  %v2268 = vadd.f32 %v2228, %v2262
  %v2269 = vadd.f32 %v2233, %v2263
  %v2270 = vadd.f32 %v2238, %v2264
  %v2271 = vmul.f32 %v2265, 0.7978846
  %v2272 = vmul.f32 %v2266, 0.7978846
  %v2273 = vmul.f32 %v2267, 0.7978846
  %v2274 = vmul.f32 %v2268, 0.7978846
  %v2275 = vmul.f32 %v2269, 0.7978846
  %v2276 = vmul.f32 %v2270, 0.7978846
  %v2277 = vtanh.pop %v2271
  %v2278 = vtanh.pop %v2272
  %v2279 = vtanh.pop %v2273
  %v2280 = vtanh.pop %v2274
  %v2281 = vtanh.pop %v2275
  %v2282 = vtanh.pop %v2276
  %v2283 = vadd.f32 %v2277, 1.0
  %v2284 = vadd.f32 %v2278, 1.0
  %v2285 = vadd.f32 %v2279, 1.0
  %v2286 = vadd.f32 %v2280, 1.0
  %v2287 = vadd.f32 %v2281, 1.0
  %v2288 = vadd.f32 %v2282, 1.0
  %v2289 = vmul.f32 %v2241, %v2283
  %v2290 = vmul.f32 %v2242, %v2284
  %v2291 = vmul.f32 %v2243, %v2285
  %v2292 = vmul.f32 %v2244, %v2286
  %v2293 = vmul.f32 %v2245, %v2287
  %v2294 = vmul.f32 %v2246, %v2288
  %v2295 = vld [vmem:[%s14] sm:$0xff]
  %v2296 = vld [vmem:[%s14 + $0x8] sm:$0xff]
  %v2297 = vld [vmem:[%s14 + $0x10] sm:$0xff]
  %v2298 = vld [vmem:[%s14 + $0x18] sm:$0xff]
  %v2299 = vld [vmem:[%s14 + $0x20] sm:$0xff]
  %v2300 = vld [vmem:[%s14 + $0x28] sm:$0xff]
  %v2301 = vld [vmem:[%s14 + $0x30] sm:$0xff]
  %v2302 = vld [vmem:[%s14 + $0x38] sm:$0xff]
  %v2303 = vld [vmem:[%s14 + $0x40] sm:$0xff]
  %v2304 = vld [vmem:[%s14 + $0x48] sm:$0xff]
  %v2305 = vld [vmem:[%s14 + $0x50] sm:$0xff]
  %v2306 = vld [vmem:[%s14 + $0x58] sm:$0xff]
  %v2307 = vld [vmem:[%s14 + $0x60] sm:$0xff]
  %v2308 = vld [vmem:[%s14 + $0x68] sm:$0xff]
  %v2309 = vld [vmem:[%s14 + $0x70] sm:$0xff]
  %v2310 = vld [vmem:[%s14 + $0x78] sm:$0xff]
  %2311 = vmatprep.subr.mxu0 0.0
  %2312 = vmatpush1.msra.mxu0 %v2295
  %2313 = vmatprep.subr.mxu0 0.0
  %2314 = vmatpush1.msra.mxu0 %v2296
  %2315 = vmatprep.subr.mxu0 0.0
  %2316 = vmatpush1.msra.mxu0 %v2297
  %2317 = vmatprep.subr.mxu0 0.0
  %2318 = vmatpush1.msra.mxu0 %v2298
  %2319 = vmatprep.subr.mxu0 0.0
  %2320 = vmatpush1.msra.mxu0 %v2299
  %2321 = vmatprep.subr.mxu0 0.0
  %2322 = vmatpush1.msra.mxu0 %v2300
  %2323 = vmatprep.subr.mxu0 0.0
  %2324 = vmatpush1.msra.mxu0 %v2301
  %2325 = vmatprep.subr.mxu0 0.0
  %2326 = vmatpush1.msra.mxu0 %v2302
  %2327 = vmatprep.subr.mxu0 0.0
  %2328 = vmatpush1.msra.mxu0 %v2303
  %2329 = vmatprep.subr.mxu0 0.0
  %2330 = vmatpush1.msra.mxu0 %v2304
  %2331 = vmatprep.subr.mxu0 0.0
  %2332 = vmatpush1.msra.mxu0 %v2305
  %2333 = vmatprep.subr.mxu0 0.0
  %2334 = vmatpush1.msra.mxu0 %v2306
  %2335 = vmatprep.subr.mxu0 0.0
  %2336 = vmatpush1.msra.mxu0 %v2307
  %2337 = vmatprep.subr.mxu0 0.0
  %2338 = vmatpush1.msra.mxu0 %v2308
  %2339 = vmatprep.subr.mxu0 0.0
  %2340 = vmatpush1.msra.mxu0 %v2309
  %2341 = vmatprep.subr.mxu0 0.0
  %2342 = vmatpush1.msra.mxu0 %v2310
  %2343 = vmatprep.subr.mxu0 0.0
  %2344 = vmatpush1.msra.mxu0 0.0
  %2345 = vmatprep.subr.mxu0 0.0
  %2346 = vmatpush1.msra.mxu0 0.0
  %2347 = vmatprep.subr.mxu0 0.0
  %2348 = vmatpush1.msra.mxu0 0.0
  %2349 = vmatprep.subr.mxu0 0.0
  %2350 = vmatpush1.msra.mxu0 0.0
  %2351 = vmatprep.subr.mxu0 0.0
  %2352 = vmatpush1.msra.mxu0 0.0
  %2353 = vmatprep.subr.mxu0 0.0
  %2354 = vmatpush1.msra.mxu0 0.0
  %2355 = vmatprep.subr.mxu0 0.0
  %2356 = vmatpush1.msra.mxu0 0.0
  %2357 = vmatprep.subr.mxu0 0.0
  %2358 = vmatpush1.msra.mxu0 0.0
  %2359 = vmatprep.subr.mxu0 0.0
  %2360 = vmatpush1.msra.mxu0 0.0
  %2361 = vmatprep.subr.mxu0 0.0
  %2362 = vmatpush1.msra.mxu0 0.0
  %2363 = vmatprep.subr.mxu0 0.0
  %2364 = vmatpush1.msra.mxu0 0.0
  %2365 = vmatprep.subr.mxu0 0.0
  %2366 = vmatpush1.msra.mxu0 0.0
  %2367 = vmatprep.subr.mxu0 0.0
  %2368 = vmatpush1.msra.mxu0 0.0
  %2369 = vmatprep.subr.mxu0 0.0
  %2370 = vmatpush1.msra.mxu0 0.0
  %2371 = vmatprep.subr.mxu0 0.0
  %2372 = vmatpush1.msra.mxu0 0.0
  %2373 = vmatprep.subr.mxu0 0.0
  %2374 = vmatpush1.msra.mxu0 0.0
  %2375 = vmatprep.mubr.f32.mxu0 0.0
  %2376 = vmatmul.mubr.f32.gmra.mrb[0].mxu0 %v2289
  %v2377 = vpop.f32.mrb[0].mxu0
  %v2378 = vadd.f32 0.0, %v2377
  %v2379 = vpop.f32.mrb[0].mxu0
  %2380 = vmatprep.mubr.f32.mxu0 0.0
  %2381 = vmatmul.mubr.f32.gmra.mrb[0].mxu0 %v2290
  %v2382 = vpop.f32.mrb[0].mxu0
  %v2383 = vadd.f32 0.0, %v2382
  %v2384 = vpop.f32.mrb[0].mxu0
  %2385 = vmatprep.mubr.f32.mxu0 0.0
  %2386 = vmatmul.mubr.f32.gmra.mrb[0].mxu0 %v2291
  %v2387 = vpop.f32.mrb[0].mxu0
  %v2388 = vadd.f32 0.0, %v2387
  %v2389 = vpop.f32.mrb[0].mxu0
  %2390 = vmatprep.mubr.f32.mxu0 0.0
  %2391 = vmatmul.mubr.f32.gmra.mrb[0].mxu0 %v2292
  %v2392 = vpop.f32.mrb[0].mxu0
  %v2393 = vadd.f32 0.0, %v2392
  %v2394 = vpop.f32.mrb[0].mxu0
  %2395 = vmatprep.mubr.f32.mxu0 0.0
  %2396 = vmatmul.mubr.f32.gmra.mrb[0].mxu0 %v2293
  %v2397 = vpop.f32.mrb[0].mxu0
  %v2398 = vadd.f32 0.0, %v2397
  %v2399 = vpop.f32.mrb[0].mxu0
  %2400 = vmatprep.mubr.f32.mxu0 0.0
  %2401 = vmatmul.mubr.f32.gmra.mrb[0].mxu0 %v2294
  %v2402 = vpop.f32.mrb[0].mxu0
  %v2403 = vadd.f32 0.0, %v2402
  %v2404 = vpop.f32.mrb[0].mxu0
  %2405 = vdwg.mxu0
  %v2406 = vadd.f32 %v2007, %v2378
  %v2407 = vadd.f32 %v2008, %v2383
  %v2408 = vadd.f32 %v2009, %v2388
  %v2409 = vadd.f32 %v2010, %v2393
  %v2410 = vadd.f32 %v2011, %v2398
  %v2411 = vadd.f32 %v2012, %v2403
  %v2412 = vld [vmem:[%s15] sm:$0x1]
  %v2414 = vlaneseq
  %v2415 = vshrl.u32 %v2414, 7
  %v2416 = vsub.s32 0, %v2415
  %v2417 = vrot.slane %v2412, %v2416
  %v2419 = vadd.f32 %v2406, %v2417
  %v2420 = vadd.f32 %v2407, %v2417
  %v2421 = vadd.f32 %v2408, %v2417
  %v2422 = vadd.f32 %v2409, %v2417
  %v2423 = vadd.f32 %v2410, %v2417
  %v2424 = vadd.f32 %v2411, %v2417
  %s2425 = scalar_lea.vmem %s4, 1
  %v2426 = vld [vmem:[%s2425] sm:$0x1]
  %s2427 = scalar_lea.vmem %s5, 1
  %v2428 = vld [vmem:[%s2427] sm:$0x1]
  %v2429 = vsel %vm201, %v2419, 0.0
  %2430 = vadd.xlane.f32.xlu0 %v2429
  %v2431 = vpop.xlane.xlu0 %2430
  %v2432 = vsel %vm201, %v2420, 0.0
  %2433 = vadd.xlane.f32.xlu0 %v2432
  %v2434 = vpop.xlane.xlu0 %2433
  %v2435 = vsel %vm201, %v2421, 0.0
  %2436 = vadd.xlane.f32.xlu0 %v2435
  %v2437 = vpop.xlane.xlu0 %2436
  %v2438 = vsel %vm201, %v2422, 0.0
  %2439 = vadd.xlane.f32.xlu0 %v2438
  %v2440 = vpop.xlane.xlu0 %2439
  %v2441 = vsel %vm201, %v2423, 0.0
  %2442 = vadd.xlane.f32.xlu0 %v2441
  %v2443 = vpop.xlane.xlu0 %2442
  %v2444 = vsel %vm201, %v2424, 0.0
  %2445 = vadd.xlane.f32.xlu0 %v2444
  %v2446 = vpop.xlane.xlu0 %2445
  %v2447 = vmul.f32 %v2431, %v220
  %v2448 = vmul.f32 %v2434, %v220
  %v2449 = vmul.f32 %v2437, %v220
  %v2450 = vmul.f32 %v2440, %v220
  %v2451 = vmul.f32 %v2443, %v220
  %v2452 = vmul.f32 %v2446, %v220
  %v2453 = vsub.f32 %v2419, %v2447
  %v2454 = vsub.f32 %v2420, %v2448
  %v2455 = vsub.f32 %v2421, %v2449
  %v2456 = vsub.f32 %v2422, %v2450
  %v2457 = vsub.f32 %v2423, %v2451
  %v2458 = vsub.f32 %v2424, %v2452
  %v2459 = vmul.f32 %v2453, %v2453
  %v2460 = vmul.f32 %v2454, %v2454
  %v2461 = vmul.f32 %v2455, %v2455
  %v2462 = vmul.f32 %v2456, %v2456
  %v2463 = vmul.f32 %v2457, %v2457
  %v2464 = vmul.f32 %v2458, %v2458
  %v2465 = vsel %vm201, %v2459, 0.0
  %2466 = vadd.xlane.f32.xlu0 %v2465
  %v2467 = vpop.xlane.xlu0 %2466
  %v2468 = vsel %vm201, %v2460, 0.0
  %2469 = vadd.xlane.f32.xlu0 %v2468
  %v2470 = vpop.xlane.xlu0 %2469
  %v2471 = vsel %vm201, %v2461, 0.0
  %2472 = vadd.xlane.f32.xlu0 %v2471
  %v2473 = vpop.xlane.xlu0 %2472
  %v2474 = vsel %vm201, %v2462, 0.0
  %2475 = vadd.xlane.f32.xlu0 %v2474
  %v2476 = vpop.xlane.xlu0 %2475
  %v2477 = vsel %vm201, %v2463, 0.0
  %2478 = vadd.xlane.f32.xlu0 %v2477
  %v2479 = vpop.xlane.xlu0 %2478
  %v2480 = vsel %vm201, %v2464, 0.0
  %2481 = vadd.xlane.f32.xlu0 %v2480
  %v2482 = vpop.xlane.xlu0 %2481
  %v2483 = vmul.f32 %v2467, %v220
  %v2484 = vmul.f32 %v2470, %v220
  %v2485 = vmul.f32 %v2473, %v220
  %v2486 = vmul.f32 %v2476, %v220
  %v2487 = vmul.f32 %v2479, %v220
  %v2488 = vmul.f32 %v2482, %v220
  %v2489 = vadd.f32 %v2483, 1e-05
  %v2490 = vadd.f32 %v2484, 1e-05
  %v2491 = vadd.f32 %v2485, 1e-05
  %v2492 = vadd.f32 %v2486, 1e-05
  %v2493 = vadd.f32 %v2487, 1e-05
  %v2494 = vadd.f32 %v2488, 1e-05
  %v2495 = vrsqrt.pop %v2489
  %v2496 = vrsqrt.pop %v2490
  %v2497 = vrsqrt.pop %v2491
  %v2498 = vrsqrt.pop %v2492
  %v2499 = vrsqrt.pop %v2493
  %v2500 = vrsqrt.pop %v2494
  %v2501 = vmul.f32 %v2453, %v2495
  %v2502 = vmul.f32 %v2454, %v2496
  %v2503 = vmul.f32 %v2455, %v2497
  %v2504 = vmul.f32 %v2456, %v2498
  %v2505 = vmul.f32 %v2457, %v2499
  %v2506 = vmul.f32 %v2458, %v2500
  %v2508 = vlaneseq
  %v2509 = vshrl.u32 %v2508, 7
  %v2510 = vsub.s32 0, %v2509
  %v2511 = vrot.slane %v2426, %v2510
  %v2513 = vmul.f32 %v2501, %v2511
  %v2514 = vmul.f32 %v2502, %v2511
  %v2515 = vmul.f32 %v2503, %v2511
  %v2516 = vmul.f32 %v2504, %v2511
  %v2517 = vmul.f32 %v2505, %v2511
  %v2518 = vmul.f32 %v2506, %v2511
  %v2520 = vlaneseq
  %v2521 = vshrl.u32 %v2520, 7
  %v2522 = vsub.s32 0, %v2521
  %v2523 = vrot.slane %v2428, %v2522
  %v2525 = vadd.f32 %v2513, %v2523
  %v2526 = vadd.f32 %v2514, %v2523
  %v2527 = vadd.f32 %v2515, %v2523
  %v2528 = vadd.f32 %v2516, %v2523
  %v2529 = vadd.f32 %v2517, %v2523
  %v2530 = vadd.f32 %v2518, %v2523
  %s2531 = scalar_lea.vmem %s6, 32
  %v2532 = vld [vmem:[%s2531] sm:$0xff]
  %v2533 = vld [vmem:[%s2531 + $0x8] sm:$0xff]
  %v2534 = vld [vmem:[%s2531 + $0x10] sm:$0xff]
  %v2535 = vld [vmem:[%s2531 + $0x18] sm:$0xff]
  %s2536 = scalar_lea.vmem %s7, 1
  %v2537 = vld [vmem:[%s2536] sm:$0x1]
  %v2539 = vlaneseq
  %v2540 = vshrl.u32 %v2539, 7
  %v2541 = vsub.s32 0, %v2540
  %v2542 = vrot.slane %v2537, %v2541
  %v2545 = vsel %vm201, %v2525, 0
  %v2548 = vsel %vm201, %v2526, 0
  %v2551 = vsel %vm201, %v2527, 0
  %v2554 = vsel %vm201, %v2528, 0
  %v2557 = vsel %vm201, %v2529, 0
  %v2560 = vsel %vm201, %v2530, 0
  %2562 = vmatprep.subr.mxu0 0.0
  %2563 = vmatpush1.msra.mxu0 %v2532
  %2564 = vmatprep.subr.mxu0 0.0
  %2565 = vmatpush1.msra.mxu0 %v2533
  %2566 = vmatprep.subr.mxu0 0.0
  %2567 = vmatpush1.msra.mxu0 %v2534
  %2568 = vmatprep.subr.mxu0 0.0
  %2569 = vmatpush1.msra.mxu0 %v2535
  %2570 = vmatprep.subr.mxu0 0.0
  %2571 = vmatpush1.msra.mxu0 0.0
  %2572 = vmatprep.subr.mxu0 0.0
  %2573 = vmatpush1.msra.mxu0 0.0
  %2574 = vmatprep.subr.mxu0 0.0
  %2575 = vmatpush1.msra.mxu0 0.0
  %2576 = vmatprep.subr.mxu0 0.0
  %2577 = vmatpush1.msra.mxu0 0.0
  %2578 = vmatprep.subr.mxu0 0.0
  %2579 = vmatpush1.msra.mxu0 0.0
  %2580 = vmatprep.subr.mxu0 0.0
  %2581 = vmatpush1.msra.mxu0 0.0
  %2582 = vmatprep.subr.mxu0 0.0
  %2583 = vmatpush1.msra.mxu0 0.0
  %2584 = vmatprep.subr.mxu0 0.0
  %2585 = vmatpush1.msra.mxu0 0.0
  %2586 = vmatprep.subr.mxu0 0.0
  %2587 = vmatpush1.msra.mxu0 0.0
  %2588 = vmatprep.subr.mxu0 0.0
  %2589 = vmatpush1.msra.mxu0 0.0
  %2590 = vmatprep.subr.mxu0 0.0
  %2591 = vmatpush1.msra.mxu0 0.0
  %2592 = vmatprep.subr.mxu0 0.0
  %2593 = vmatpush1.msra.mxu0 0.0
  %2594 = vmatprep.subr.mxu0 0.0
  %2595 = vmatpush1.msra.mxu0 0.0
  %2596 = vmatprep.subr.mxu0 0.0
  %2597 = vmatpush1.msra.mxu0 0.0
  %2598 = vmatprep.subr.mxu0 0.0
  %2599 = vmatpush1.msra.mxu0 0.0
  %2600 = vmatprep.subr.mxu0 0.0
  %2601 = vmatpush1.msra.mxu0 0.0
  %2602 = vmatprep.subr.mxu0 0.0
  %2603 = vmatpush1.msra.mxu0 0.0
  %2604 = vmatprep.subr.mxu0 0.0
  %2605 = vmatpush1.msra.mxu0 0.0
  %2606 = vmatprep.subr.mxu0 0.0
  %2607 = vmatpush1.msra.mxu0 0.0
  %2608 = vmatprep.subr.mxu0 0.0
  %2609 = vmatpush1.msra.mxu0 0.0
  %2610 = vmatprep.subr.mxu0 0.0
  %2611 = vmatpush1.msra.mxu0 0.0
  %2612 = vmatprep.subr.mxu0 0.0
  %2613 = vmatpush1.msra.mxu0 0.0
  %2614 = vmatprep.subr.mxu0 0.0
  %2615 = vmatpush1.msra.mxu0 0.0
  %2616 = vmatprep.subr.mxu0 0.0
  %2617 = vmatpush1.msra.mxu0 0.0
  %2618 = vmatprep.subr.mxu0 0.0
  %2619 = vmatpush1.msra.mxu0 0.0
  %2620 = vmatprep.subr.mxu0 0.0
  %2621 = vmatpush1.msra.mxu0 0.0
  %2622 = vmatprep.subr.mxu0 0.0
  %2623 = vmatpush1.msra.mxu0 0.0
  %2624 = vmatprep.subr.mxu0 0.0
  %2625 = vmatpush1.msra.mxu0 0.0
  %2626 = vmatprep.mubr.f32.mxu0 0.0
  %2627 = vmatmul.mubr.f32.gmra.mrb[0].mxu0 %v2545
  %v2628 = vpop.f32.mrb[0].mxu0
  %v2629 = vadd.f32 %v2542, %v2628
  %v2630 = vpop.f32.mrb[0].mxu0
  %2631 = vmatprep.mubr.f32.mxu0 0.0
  %2632 = vmatmul.mubr.f32.gmra.mrb[0].mxu0 %v2548
  %v2633 = vpop.f32.mrb[0].mxu0
  %v2634 = vadd.f32 %v2542, %v2633
  %v2635 = vpop.f32.mrb[0].mxu0
  %2636 = vmatprep.mubr.f32.mxu0 0.0
  %2637 = vmatmul.mubr.f32.gmra.mrb[0].mxu0 %v2551
  %v2638 = vpop.f32.mrb[0].mxu0
  %v2639 = vadd.f32 %v2542, %v2638
  %v2640 = vpop.f32.mrb[0].mxu0
  %2641 = vmatprep.mubr.f32.mxu0 0.0
  %2642 = vmatmul.mubr.f32.gmra.mrb[0].mxu0 %v2554
  %v2643 = vpop.f32.mrb[0].mxu0
  %v2644 = vadd.f32 %v2542, %v2643
  %v2645 = vpop.f32.mrb[0].mxu0
  %2646 = vmatprep.mubr.f32.mxu0 0.0
  %2647 = vmatmul.mubr.f32.gmra.mrb[0].mxu0 %v2557
  %v2648 = vpop.f32.mrb[0].mxu0
  %v2649 = vadd.f32 %v2542, %v2648
  %v2650 = vpop.f32.mrb[0].mxu0
  %2651 = vmatprep.mubr.f32.mxu0 0.0
  %2652 = vmatmul.mubr.f32.gmra.mrb[0].mxu0 %v2560
  %v2653 = vpop.f32.mrb[0].mxu0
  %v2654 = vadd.f32 %v2542, %v2653
  %v2655 = vpop.f32.mrb[0].mxu0
  %2656 = vdwg.mxu0
  %2663 = vrot.lane.b32.xlu0 %v2629, 96
  %v2664 = vpop.permute.xlu0 %2663
  %2665 = vrot.lane.b32.xlu0 %v2634, 96
  %v2666 = vpop.permute.xlu0 %2665
  %2667 = vrot.lane.b32.xlu0 %v2639, 96
  %v2668 = vpop.permute.xlu0 %2667
  %2669 = vrot.lane.b32.xlu0 %v2644, 96
  %v2670 = vpop.permute.xlu0 %2669
  %2671 = vrot.lane.b32.xlu0 %v2649, 96
  %v2672 = vpop.permute.xlu0 %2671
  %2673 = vrot.lane.b32.xlu0 %v2654, 96
  %v2674 = vpop.permute.xlu0 %2673
  %v2675 = vsel %vm447, %v2629, 0
  %v2677 = vsel %vm447, %v2634, 0
  %v2679 = vsel %vm447, %v2639, 0
  %v2681 = vsel %vm447, %v2644, 0
  %v2683 = vsel %vm447, %v2649, 0
  %v2685 = vsel %vm447, %v2654, 0
  %v2687 = vsel %vm447, %v2664, 0
  %v2689 = vsel %vm447, %v2666, 0
  %v2691 = vsel %vm447, %v2668, 0
  %v2693 = vsel %vm447, %v2670, 0
  %v2695 = vsel %vm447, %v2672, 0
  %v2697 = vsel %vm447, %v2674, 0
  %2699 = vmatprep.subr.mxu0 0.0
  %2700 = vmatpush1.xpose.msra.mxu0 %v2687
  %2701 = vmatprep.subr.mxu0 0.0
  %2702 = vmatpush1.xpose.msra.mxu0 %v2689
  %2703 = vmatprep.subr.mxu0 0.0
  %2704 = vmatpush1.xpose.msra.mxu0 %v2691
  %2705 = vmatprep.subr.mxu0 0.0
  %2706 = vmatpush1.xpose.msra.mxu0 %v2693
  %2707 = vmatprep.subr.mxu0 0.0
  %2708 = vmatpush1.xpose.msra.mxu0 %v2695
  %2709 = vmatprep.subr.mxu0 0.0
  %2710 = vmatpush1.xpose.msra.mxu0 %v2697
  %2711 = vmatprep.subr.mxu0 0.0
  %2712 = vmatpush1.xpose.msra.mxu0 0.0
  %2713 = vmatprep.subr.mxu0 0.0
  %2714 = vmatpush1.xpose.msra.mxu0 0.0
  %2715 = vmatprep.subr.mxu0 0.0
  %2716 = vmatpush1.xpose.msra.mxu0 0.0
  %2717 = vmatprep.subr.mxu0 0.0
  %2718 = vmatpush1.xpose.msra.mxu0 0.0
  %2719 = vmatprep.subr.mxu0 0.0
  %2720 = vmatpush1.xpose.msra.mxu0 0.0
  %2721 = vmatprep.subr.mxu0 0.0
  %2722 = vmatpush1.xpose.msra.mxu0 0.0
  %2723 = vmatprep.subr.mxu0 0.0
  %2724 = vmatpush1.xpose.msra.mxu0 0.0
  %2725 = vmatprep.subr.mxu0 0.0
  %2726 = vmatpush1.xpose.msra.mxu0 0.0
  %2727 = vmatprep.subr.mxu0 0.0
  %2728 = vmatpush1.xpose.msra.mxu0 0.0
  %2729 = vmatprep.subr.mxu0 0.0
  %2730 = vmatpush1.xpose.msra.mxu0 0.0
  %2731 = vmatprep.subr.mxu0 0.0
  %2732 = vmatpush1.xpose.msra.mxu0 0.0
  %2733 = vmatprep.subr.mxu0 0.0
  %2734 = vmatpush1.xpose.msra.mxu0 0.0
  %2735 = vmatprep.subr.mxu0 0.0
  %2736 = vmatpush1.xpose.msra.mxu0 0.0
  %2737 = vmatprep.subr.mxu0 0.0
  %2738 = vmatpush1.xpose.msra.mxu0 0.0
  %2739 = vmatprep.subr.mxu0 0.0
  %2740 = vmatpush1.xpose.msra.mxu0 0.0
  %2741 = vmatprep.subr.mxu0 0.0
  %2742 = vmatpush1.xpose.msra.mxu0 0.0
  %2743 = vmatprep.subr.mxu0 0.0
  %2744 = vmatpush1.xpose.msra.mxu0 0.0
  %2745 = vmatprep.subr.mxu0 0.0
  %2746 = vmatpush1.xpose.msra.mxu0 0.0
  %2747 = vmatprep.subr.mxu0 0.0
  %2748 = vmatpush1.xpose.msra.mxu0 0.0
  %2749 = vmatprep.subr.mxu0 0.0
  %2750 = vmatpush1.xpose.msra.mxu0 0.0
  %2751 = vmatprep.subr.mxu0 0.0
  %2752 = vmatpush1.xpose.msra.mxu0 0.0
  %2753 = vmatprep.subr.mxu0 0.0
  %2754 = vmatpush1.xpose.msra.mxu0 0.0
  %2755 = vmatprep.subr.mxu0 0.0
  %2756 = vmatpush1.xpose.msra.mxu0 0.0
  %2757 = vmatprep.subr.mxu0 0.0
  %2758 = vmatpush1.xpose.msra.mxu0 0.0
  %2759 = vmatprep.subr.mxu0 0.0
  %2760 = vmatpush1.xpose.msra.mxu0 0.0
  %2761 = vmatprep.subr.mxu0 0.0
  %2762 = vmatpush1.xpose.msra.mxu0 0.0
  %2763 = vmatprep.mubr.f32.mxu0 0.0
  %2764 = vmatmul.mubr.f32.gmra.mrb[0].mxu0 %v2675
  %v2765 = vpop.f32.mrb[0].mxu0
  %v2766 = vadd.f32 %v193, %v2765
  %v2767 = vpop.f32.mrb[0].mxu0
  %2768 = vmatprep.mubr.f32.mxu0 0.0
  %2769 = vmatmul.mubr.f32.gmra.mrb[0].mxu0 %v2677
  %v2770 = vpop.f32.mrb[0].mxu0
  %v2771 = vadd.f32 %v194, %v2770
  %v2772 = vpop.f32.mrb[0].mxu0
  %2773 = vmatprep.mubr.f32.mxu0 0.0
  %2774 = vmatmul.mubr.f32.gmra.mrb[0].mxu0 %v2679
  %v2775 = vpop.f32.mrb[0].mxu0
  %v2776 = vadd.f32 %v195, %v2775
  %v2777 = vpop.f32.mrb[0].mxu0
  %2778 = vmatprep.mubr.f32.mxu0 0.0
  %2779 = vmatmul.mubr.f32.gmra.mrb[0].mxu0 %v2681
  %v2780 = vpop.f32.mrb[0].mxu0
  %v2781 = vadd.f32 %v196, %v2780
  %v2782 = vpop.f32.mrb[0].mxu0
  %2783 = vmatprep.mubr.f32.mxu0 0.0
  %2784 = vmatmul.mubr.f32.gmra.mrb[0].mxu0 %v2683
  %v2785 = vpop.f32.mrb[0].mxu0
  %v2786 = vadd.f32 %v197, %v2785
  %v2787 = vpop.f32.mrb[0].mxu0
  %2788 = vmatprep.mubr.f32.mxu0 0.0
  %2789 = vmatmul.mubr.f32.gmra.mrb[0].mxu0 %v2685
  %v2790 = vpop.f32.mrb[0].mxu0
  %v2791 = vadd.f32 %v198, %v2790
  %v2792 = vpop.f32.mrb[0].mxu0
  %2793 = vdwg.mxu0
  %v2794 = vsel %vm567, %v2766, -inf
  %2795 = vmax.xlane.f32.xlu0 %v2794
  %v2796 = vpop.xlane.xlu0 %2795
  %v2797 = vsel %vm567, %v2771, -inf
  %2798 = vmax.xlane.f32.xlu0 %v2797
  %v2799 = vpop.xlane.xlu0 %2798
  %v2800 = vsel %vm567, %v2776, -inf
  %2801 = vmax.xlane.f32.xlu0 %v2800
  %v2802 = vpop.xlane.xlu0 %2801
  %v2803 = vsel %vm567, %v2781, -inf
  %2804 = vmax.xlane.f32.xlu0 %v2803
  %v2805 = vpop.xlane.xlu0 %2804
  %v2806 = vsel %vm567, %v2786, -inf
  %2807 = vmax.xlane.f32.xlu0 %v2806
  %v2808 = vpop.xlane.xlu0 %2807
  %v2809 = vsel %vm567, %v2791, -inf
  %2810 = vmax.xlane.f32.xlu0 %v2809
  %v2811 = vpop.xlane.xlu0 %2810
  %v2812 = vsub.f32 %v2766, %v2796
  %v2813 = vsub.f32 %v2771, %v2799
  %v2814 = vsub.f32 %v2776, %v2802
  %v2815 = vsub.f32 %v2781, %v2805
  %v2816 = vsub.f32 %v2786, %v2808
  %v2817 = vsub.f32 %v2791, %v2811
  %v2818 = vmul.f32 %v2812, 1.442695
  %v2819 = vpow.pop %v2818
  %v2820 = vmul.f32 %v2813, 1.442695
  %v2821 = vpow.pop %v2820
  %v2822 = vmul.f32 %v2814, 1.442695
  %v2823 = vpow.pop %v2822
  %v2824 = vmul.f32 %v2815, 1.442695
  %v2825 = vpow.pop %v2824
  %v2826 = vmul.f32 %v2816, 1.442695
  %v2827 = vpow.pop %v2826
  %v2828 = vmul.f32 %v2817, 1.442695
  %v2829 = vpow.pop %v2828
  %v2830 = vsel %vm567, %v2819, 0.0
  %2831 = vadd.xlane.f32.xlu0 %v2830
  %v2832 = vpop.xlane.xlu0 %2831
  %v2833 = vsel %vm567, %v2821, 0.0
  %2834 = vadd.xlane.f32.xlu0 %v2833
  %v2835 = vpop.xlane.xlu0 %2834
  %v2836 = vsel %vm567, %v2823, 0.0
  %2837 = vadd.xlane.f32.xlu0 %v2836
  %v2838 = vpop.xlane.xlu0 %2837
  %v2839 = vsel %vm567, %v2825, 0.0
  %2840 = vadd.xlane.f32.xlu0 %v2839
  %v2841 = vpop.xlane.xlu0 %2840
  %v2842 = vsel %vm567, %v2827, 0.0
  %2843 = vadd.xlane.f32.xlu0 %v2842
  %v2844 = vpop.xlane.xlu0 %2843
  %v2845 = vsel %vm567, %v2829, 0.0
  %2846 = vadd.xlane.f32.xlu0 %v2845
  %v2847 = vpop.xlane.xlu0 %2846
  %v2848 = vrcp.pop %v2832
  %v2849 = vrcp.pop %v2835
  %v2850 = vrcp.pop %v2838
  %v2851 = vrcp.pop %v2841
  %v2852 = vrcp.pop %v2844
  %v2853 = vrcp.pop %v2847
  %v2854 = vmul.f32 %v2819, %v2848
  %v2855 = vmul.f32 %v2821, %v2849
  %v2856 = vmul.f32 %v2823, %v2850
  %v2857 = vmul.f32 %v2825, %v2851
  %v2858 = vmul.f32 %v2827, %v2852
  %v2859 = vmul.f32 %v2829, %v2853
  %2860 = vrot.lane.b32.xlu0 %v2629, 64
  %v2861 = vpop.permute.xlu0 %2860
  %2862 = vrot.lane.b32.xlu0 %v2634, 64
  %v2863 = vpop.permute.xlu0 %2862
  %2864 = vrot.lane.b32.xlu0 %v2639, 64
  %v2865 = vpop.permute.xlu0 %2864
  %2866 = vrot.lane.b32.xlu0 %v2644, 64
  %v2867 = vpop.permute.xlu0 %2866
  %2868 = vrot.lane.b32.xlu0 %v2649, 64
  %v2869 = vpop.permute.xlu0 %2868
  %2870 = vrot.lane.b32.xlu0 %v2654, 64
  %v2871 = vpop.permute.xlu0 %2870
  %v2879 = vsel %vm567, %v2854, 0
  %v2882 = vsel %vm567, %v2855, 0
  %v2885 = vsel %vm567, %v2856, 0
  %v2888 = vsel %vm567, %v2857, 0
  %v2891 = vsel %vm567, %v2858, 0
  %v2894 = vsel %vm567, %v2859, 0
  %2896 = vmatprep.subr.mxu0 0.0
  %2897 = vmatpush1.msra.mxu0 %v2861
  %2898 = vmatprep.subr.mxu0 0.0
  %2899 = vmatpush1.msra.mxu0 %v2863
  %2900 = vmatprep.subr.mxu0 0.0
  %2901 = vmatpush1.msra.mxu0 %v2865
  %2902 = vmatprep.subr.mxu0 0.0
  %2903 = vmatpush1.msra.mxu0 %v2867
  %2904 = vmatprep.subr.mxu0 0.0
  %2905 = vmatpush1.msra.mxu0 %v2869
  %2906 = vmatprep.subr.mxu0 0.0
  %2907 = vmatpush1.msra.mxu0 %v2871
  %2908 = vmatprep.subr.mxu0 0.0
  %2909 = vmatpush1.msra.mxu0 0.0
  %2910 = vmatprep.subr.mxu0 0.0
  %2911 = vmatpush1.msra.mxu0 0.0
  %2912 = vmatprep.subr.mxu0 0.0
  %2913 = vmatpush1.msra.mxu0 0.0
  %2914 = vmatprep.subr.mxu0 0.0
  %2915 = vmatpush1.msra.mxu0 0.0
  %2916 = vmatprep.subr.mxu0 0.0
  %2917 = vmatpush1.msra.mxu0 0.0
  %2918 = vmatprep.subr.mxu0 0.0
  %2919 = vmatpush1.msra.mxu0 0.0
  %2920 = vmatprep.subr.mxu0 0.0
  %2921 = vmatpush1.msra.mxu0 0.0
  %2922 = vmatprep.subr.mxu0 0.0
  %2923 = vmatpush1.msra.mxu0 0.0
  %2924 = vmatprep.subr.mxu0 0.0
  %2925 = vmatpush1.msra.mxu0 0.0
  %2926 = vmatprep.subr.mxu0 0.0
  %2927 = vmatpush1.msra.mxu0 0.0
  %2928 = vmatprep.subr.mxu0 0.0
  %2929 = vmatpush1.msra.mxu0 0.0
  %2930 = vmatprep.subr.mxu0 0.0
  %2931 = vmatpush1.msra.mxu0 0.0
  %2932 = vmatprep.subr.mxu0 0.0
  %2933 = vmatpush1.msra.mxu0 0.0
  %2934 = vmatprep.subr.mxu0 0.0
  %2935 = vmatpush1.msra.mxu0 0.0
  %2936 = vmatprep.subr.mxu0 0.0
  %2937 = vmatpush1.msra.mxu0 0.0
  %2938 = vmatprep.subr.mxu0 0.0
  %2939 = vmatpush1.msra.mxu0 0.0
  %2940 = vmatprep.subr.mxu0 0.0
  %2941 = vmatpush1.msra.mxu0 0.0
  %2942 = vmatprep.subr.mxu0 0.0
  %2943 = vmatpush1.msra.mxu0 0.0
  %2944 = vmatprep.subr.mxu0 0.0
  %2945 = vmatpush1.msra.mxu0 0.0
  %2946 = vmatprep.subr.mxu0 0.0
  %2947 = vmatpush1.msra.mxu0 0.0
  %2948 = vmatprep.subr.mxu0 0.0
  %2949 = vmatpush1.msra.mxu0 0.0
  %2950 = vmatprep.subr.mxu0 0.0
  %2951 = vmatpush1.msra.mxu0 0.0
  %2952 = vmatprep.subr.mxu0 0.0
  %2953 = vmatpush1.msra.mxu0 0.0
  %2954 = vmatprep.subr.mxu0 0.0
  %2955 = vmatpush1.msra.mxu0 0.0
  %2956 = vmatprep.subr.mxu0 0.0
  %2957 = vmatpush1.msra.mxu0 0.0
  %2958 = vmatprep.subr.mxu0 0.0
  %2959 = vmatpush1.msra.mxu0 0.0
  %2960 = vmatprep.mubr.f32.mxu0 0.0
  %2961 = vmatmul.mubr.f32.gmra.mrb[0].mxu0 %v2879
  %v2962 = vpop.f32.mrb[0].mxu0
  %v2963 = vadd.f32 0.0, %v2962
  %v2964 = vpop.f32.mrb[0].mxu0
  %2965 = vmatprep.mubr.f32.mxu0 0.0
  %2966 = vmatmul.mubr.f32.gmra.mrb[0].mxu0 %v2882
  %v2967 = vpop.f32.mrb[0].mxu0
  %v2968 = vadd.f32 0.0, %v2967
  %v2969 = vpop.f32.mrb[0].mxu0
  %2970 = vmatprep.mubr.f32.mxu0 0.0
  %2971 = vmatmul.mubr.f32.gmra.mrb[0].mxu0 %v2885
  %v2972 = vpop.f32.mrb[0].mxu0
  %v2973 = vadd.f32 0.0, %v2972
  %v2974 = vpop.f32.mrb[0].mxu0
  %2975 = vmatprep.mubr.f32.mxu0 0.0
  %2976 = vmatmul.mubr.f32.gmra.mrb[0].mxu0 %v2888
  %v2977 = vpop.f32.mrb[0].mxu0
  %v2978 = vadd.f32 0.0, %v2977
  %v2979 = vpop.f32.mrb[0].mxu0
  %2980 = vmatprep.mubr.f32.mxu0 0.0
  %2981 = vmatmul.mubr.f32.gmra.mrb[0].mxu0 %v2891
  %v2982 = vpop.f32.mrb[0].mxu0
  %v2983 = vadd.f32 0.0, %v2982
  %v2984 = vpop.f32.mrb[0].mxu0
  %2985 = vmatprep.mubr.f32.mxu0 0.0
  %2986 = vmatmul.mubr.f32.gmra.mrb[0].mxu0 %v2894
  %v2987 = vpop.f32.mrb[0].mxu0
  %v2988 = vadd.f32 0.0, %v2987
  %v2989 = vpop.f32.mrb[0].mxu0
  %2990 = vdwg.mxu0
  %2991 = vrot.lane.b32.xlu0 %v2629, 120
  %v2992 = vpop.permute.xlu0 %2991
  %2993 = vrot.lane.b32.xlu0 %v2634, 120
  %v2994 = vpop.permute.xlu0 %2993
  %2995 = vrot.lane.b32.xlu0 %v2639, 120
  %v2996 = vpop.permute.xlu0 %2995
  %2997 = vrot.lane.b32.xlu0 %v2644, 120
  %v2998 = vpop.permute.xlu0 %2997
  %2999 = vrot.lane.b32.xlu0 %v2649, 120
  %v3000 = vpop.permute.xlu0 %2999
  %3001 = vrot.lane.b32.xlu0 %v2654, 120
  %v3002 = vpop.permute.xlu0 %3001
  %3003 = vrot.lane.b32.xlu0 %v2629, 88
  %v3004 = vpop.permute.xlu0 %3003
  %3005 = vrot.lane.b32.xlu0 %v2634, 88
  %v3006 = vpop.permute.xlu0 %3005
  %3007 = vrot.lane.b32.xlu0 %v2639, 88
  %v3008 = vpop.permute.xlu0 %3007
  %3009 = vrot.lane.b32.xlu0 %v2644, 88
  %v3010 = vpop.permute.xlu0 %3009
  %3011 = vrot.lane.b32.xlu0 %v2649, 88
  %v3012 = vpop.permute.xlu0 %3011
  %3013 = vrot.lane.b32.xlu0 %v2654, 88
  %v3014 = vpop.permute.xlu0 %3013
  %v3015 = vsel %vm447, %v2992, 0
  %v3017 = vsel %vm447, %v2994, 0
  %v3019 = vsel %vm447, %v2996, 0
  %v3021 = vsel %vm447, %v2998, 0
  %v3023 = vsel %vm447, %v3000, 0
  %v3025 = vsel %vm447, %v3002, 0
  %v3027 = vsel %vm447, %v3004, 0
  %v3029 = vsel %vm447, %v3006, 0
  %v3031 = vsel %vm447, %v3008, 0
  %v3033 = vsel %vm447, %v3010, 0
  %v3035 = vsel %vm447, %v3012, 0
  %v3037 = vsel %vm447, %v3014, 0
  %3039 = vmatprep.subr.mxu0 0.0
  %3040 = vmatpush1.xpose.msra.mxu0 %v3027
  %3041 = vmatprep.subr.mxu0 0.0
  %3042 = vmatpush1.xpose.msra.mxu0 %v3029
  %3043 = vmatprep.subr.mxu0 0.0
  %3044 = vmatpush1.xpose.msra.mxu0 %v3031
  %3045 = vmatprep.subr.mxu0 0.0
  %3046 = vmatpush1.xpose.msra.mxu0 %v3033
  %3047 = vmatprep.subr.mxu0 0.0
  %3048 = vmatpush1.xpose.msra.mxu0 %v3035
  %3049 = vmatprep.subr.mxu0 0.0
  %3050 = vmatpush1.xpose.msra.mxu0 %v3037
  %3051 = vmatprep.subr.mxu0 0.0
  %3052 = vmatpush1.xpose.msra.mxu0 0.0
  %3053 = vmatprep.subr.mxu0 0.0
  %3054 = vmatpush1.xpose.msra.mxu0 0.0
  %3055 = vmatprep.subr.mxu0 0.0
  %3056 = vmatpush1.xpose.msra.mxu0 0.0
  %3057 = vmatprep.subr.mxu0 0.0
  %3058 = vmatpush1.xpose.msra.mxu0 0.0
  %3059 = vmatprep.subr.mxu0 0.0
  %3060 = vmatpush1.xpose.msra.mxu0 0.0
  %3061 = vmatprep.subr.mxu0 0.0
  %3062 = vmatpush1.xpose.msra.mxu0 0.0
  %3063 = vmatprep.subr.mxu0 0.0
  %3064 = vmatpush1.xpose.msra.mxu0 0.0
  %3065 = vmatprep.subr.mxu0 0.0
  %3066 = vmatpush1.xpose.msra.mxu0 0.0
  %3067 = vmatprep.subr.mxu0 0.0
  %3068 = vmatpush1.xpose.msra.mxu0 0.0
  %3069 = vmatprep.subr.mxu0 0.0
  %3070 = vmatpush1.xpose.msra.mxu0 0.0
  %3071 = vmatprep.subr.mxu0 0.0
  %3072 = vmatpush1.xpose.msra.mxu0 0.0
  %3073 = vmatprep.subr.mxu0 0.0
  %3074 = vmatpush1.xpose.msra.mxu0 0.0
  %3075 = vmatprep.subr.mxu0 0.0
  %3076 = vmatpush1.xpose.msra.mxu0 0.0
  %3077 = vmatprep.subr.mxu0 0.0
  %3078 = vmatpush1.xpose.msra.mxu0 0.0
  %3079 = vmatprep.subr.mxu0 0.0
  %3080 = vmatpush1.xpose.msra.mxu0 0.0
  %3081 = vmatprep.subr.mxu0 0.0
  %3082 = vmatpush1.xpose.msra.mxu0 0.0
  %3083 = vmatprep.subr.mxu0 0.0
  %3084 = vmatpush1.xpose.msra.mxu0 0.0
  %3085 = vmatprep.subr.mxu0 0.0
  %3086 = vmatpush1.xpose.msra.mxu0 0.0
  %3087 = vmatprep.subr.mxu0 0.0
  %3088 = vmatpush1.xpose.msra.mxu0 0.0
  %3089 = vmatprep.subr.mxu0 0.0
  %3090 = vmatpush1.xpose.msra.mxu0 0.0
  %3091 = vmatprep.subr.mxu0 0.0
  %3092 = vmatpush1.xpose.msra.mxu0 0.0
  %3093 = vmatprep.subr.mxu0 0.0
  %3094 = vmatpush1.xpose.msra.mxu0 0.0
  %3095 = vmatprep.subr.mxu0 0.0
  %3096 = vmatpush1.xpose.msra.mxu0 0.0
  %3097 = vmatprep.subr.mxu0 0.0
  %3098 = vmatpush1.xpose.msra.mxu0 0.0
  %3099 = vmatprep.subr.mxu0 0.0
  %3100 = vmatpush1.xpose.msra.mxu0 0.0
  %3101 = vmatprep.subr.mxu0 0.0
  %3102 = vmatpush1.xpose.msra.mxu0 0.0
  %3103 = vmatprep.mubr.f32.mxu0 0.0
  %3104 = vmatmul.mubr.f32.gmra.mrb[0].mxu0 %v3015
  %v3105 = vpop.f32.mrb[0].mxu0
  %v3106 = vadd.f32 %v193, %v3105
  %v3107 = vpop.f32.mrb[0].mxu0
  %3108 = vmatprep.mubr.f32.mxu0 0.0
  %3109 = vmatmul.mubr.f32.gmra.mrb[0].mxu0 %v3017
  %v3110 = vpop.f32.mrb[0].mxu0
  %v3111 = vadd.f32 %v194, %v3110
  %v3112 = vpop.f32.mrb[0].mxu0
  %3113 = vmatprep.mubr.f32.mxu0 0.0
  %3114 = vmatmul.mubr.f32.gmra.mrb[0].mxu0 %v3019
  %v3115 = vpop.f32.mrb[0].mxu0
  %v3116 = vadd.f32 %v195, %v3115
  %v3117 = vpop.f32.mrb[0].mxu0
  %3118 = vmatprep.mubr.f32.mxu0 0.0
  %3119 = vmatmul.mubr.f32.gmra.mrb[0].mxu0 %v3021
  %v3120 = vpop.f32.mrb[0].mxu0
  %v3121 = vadd.f32 %v196, %v3120
  %v3122 = vpop.f32.mrb[0].mxu0
  %3123 = vmatprep.mubr.f32.mxu0 0.0
  %3124 = vmatmul.mubr.f32.gmra.mrb[0].mxu0 %v3023
  %v3125 = vpop.f32.mrb[0].mxu0
  %v3126 = vadd.f32 %v197, %v3125
  %v3127 = vpop.f32.mrb[0].mxu0
  %3128 = vmatprep.mubr.f32.mxu0 0.0
  %3129 = vmatmul.mubr.f32.gmra.mrb[0].mxu0 %v3025
  %v3130 = vpop.f32.mrb[0].mxu0
  %v3131 = vadd.f32 %v198, %v3130
  %v3132 = vpop.f32.mrb[0].mxu0
  %3133 = vdwg.mxu0
  %v3134 = vsel %vm567, %v3106, -inf
  %3135 = vmax.xlane.f32.xlu0 %v3134
  %v3136 = vpop.xlane.xlu0 %3135
  %v3137 = vsel %vm567, %v3111, -inf
  %3138 = vmax.xlane.f32.xlu0 %v3137
  %v3139 = vpop.xlane.xlu0 %3138
  %v3140 = vsel %vm567, %v3116, -inf
  %3141 = vmax.xlane.f32.xlu0 %v3140
  %v3142 = vpop.xlane.xlu0 %3141
  %v3143 = vsel %vm567, %v3121, -inf
  %3144 = vmax.xlane.f32.xlu0 %v3143
  %v3145 = vpop.xlane.xlu0 %3144
  %v3146 = vsel %vm567, %v3126, -inf
  %3147 = vmax.xlane.f32.xlu0 %v3146
  %v3148 = vpop.xlane.xlu0 %3147
  %v3149 = vsel %vm567, %v3131, -inf
  %3150 = vmax.xlane.f32.xlu0 %v3149
  %v3151 = vpop.xlane.xlu0 %3150
  %v3152 = vsub.f32 %v3106, %v3136
  %v3153 = vsub.f32 %v3111, %v3139
  %v3154 = vsub.f32 %v3116, %v3142
  %v3155 = vsub.f32 %v3121, %v3145
  %v3156 = vsub.f32 %v3126, %v3148
  %v3157 = vsub.f32 %v3131, %v3151
  %v3158 = vmul.f32 %v3152, 1.442695
  %v3159 = vpow.pop %v3158
  %v3160 = vmul.f32 %v3153, 1.442695
  %v3161 = vpow.pop %v3160
  %v3162 = vmul.f32 %v3154, 1.442695
  %v3163 = vpow.pop %v3162
  %v3164 = vmul.f32 %v3155, 1.442695
  %v3165 = vpow.pop %v3164
  %v3166 = vmul.f32 %v3156, 1.442695
  %v3167 = vpow.pop %v3166
  %v3168 = vmul.f32 %v3157, 1.442695
  %v3169 = vpow.pop %v3168
  %v3170 = vsel %vm567, %v3159, 0.0
  %3171 = vadd.xlane.f32.xlu0 %v3170
  %v3172 = vpop.xlane.xlu0 %3171
  %v3173 = vsel %vm567, %v3161, 0.0
  %3174 = vadd.xlane.f32.xlu0 %v3173
  %v3175 = vpop.xlane.xlu0 %3174
  %v3176 = vsel %vm567, %v3163, 0.0
  %3177 = vadd.xlane.f32.xlu0 %v3176
  %v3178 = vpop.xlane.xlu0 %3177
  %v3179 = vsel %vm567, %v3165, 0.0
  %3180 = vadd.xlane.f32.xlu0 %v3179
  %v3181 = vpop.xlane.xlu0 %3180
  %v3182 = vsel %vm567, %v3167, 0.0
  %3183 = vadd.xlane.f32.xlu0 %v3182
  %v3184 = vpop.xlane.xlu0 %3183
  %v3185 = vsel %vm567, %v3169, 0.0
  %3186 = vadd.xlane.f32.xlu0 %v3185
  %v3187 = vpop.xlane.xlu0 %3186
  %v3188 = vrcp.pop %v3172
  %v3189 = vrcp.pop %v3175
  %v3190 = vrcp.pop %v3178
  %v3191 = vrcp.pop %v3181
  %v3192 = vrcp.pop %v3184
  %v3193 = vrcp.pop %v3187
  %v3194 = vmul.f32 %v3159, %v3188
  %v3195 = vmul.f32 %v3161, %v3189
  %v3196 = vmul.f32 %v3163, %v3190
  %v3197 = vmul.f32 %v3165, %v3191
  %v3198 = vmul.f32 %v3167, %v3192
  %v3199 = vmul.f32 %v3169, %v3193
  %3200 = vrot.lane.b32.xlu0 %v2629, 56
  %v3201 = vpop.permute.xlu0 %3200
  %3202 = vrot.lane.b32.xlu0 %v2634, 56
  %v3203 = vpop.permute.xlu0 %3202
  %3204 = vrot.lane.b32.xlu0 %v2639, 56
  %v3205 = vpop.permute.xlu0 %3204
  %3206 = vrot.lane.b32.xlu0 %v2644, 56
  %v3207 = vpop.permute.xlu0 %3206
  %3208 = vrot.lane.b32.xlu0 %v2649, 56
  %v3209 = vpop.permute.xlu0 %3208
  %3210 = vrot.lane.b32.xlu0 %v2654, 56
  %v3211 = vpop.permute.xlu0 %3210
  %v3219 = vsel %vm567, %v3194, 0
  %v3222 = vsel %vm567, %v3195, 0
  %v3225 = vsel %vm567, %v3196, 0
  %v3228 = vsel %vm567, %v3197, 0
  %v3231 = vsel %vm567, %v3198, 0
  %v3234 = vsel %vm567, %v3199, 0
  %3236 = vmatprep.subr.mxu0 0.0
  %3237 = vmatpush1.msra.mxu0 %v3201
  %3238 = vmatprep.subr.mxu0 0.0
  %3239 = vmatpush1.msra.mxu0 %v3203
  %3240 = vmatprep.subr.mxu0 0.0
  %3241 = vmatpush1.msra.mxu0 %v3205
  %3242 = vmatprep.subr.mxu0 0.0
  %3243 = vmatpush1.msra.mxu0 %v3207
  %3244 = vmatprep.subr.mxu0 0.0
  %3245 = vmatpush1.msra.mxu0 %v3209
  %3246 = vmatprep.subr.mxu0 0.0
  %3247 = vmatpush1.msra.mxu0 %v3211
  %3248 = vmatprep.subr.mxu0 0.0
  %3249 = vmatpush1.msra.mxu0 0.0
  %3250 = vmatprep.subr.mxu0 0.0
  %3251 = vmatpush1.msra.mxu0 0.0
  %3252 = vmatprep.subr.mxu0 0.0
  %3253 = vmatpush1.msra.mxu0 0.0
  %3254 = vmatprep.subr.mxu0 0.0
  %3255 = vmatpush1.msra.mxu0 0.0
  %3256 = vmatprep.subr.mxu0 0.0
  %3257 = vmatpush1.msra.mxu0 0.0
  %3258 = vmatprep.subr.mxu0 0.0
  %3259 = vmatpush1.msra.mxu0 0.0
  %3260 = vmatprep.subr.mxu0 0.0
  %3261 = vmatpush1.msra.mxu0 0.0
  %3262 = vmatprep.subr.mxu0 0.0
  %3263 = vmatpush1.msra.mxu0 0.0
  %3264 = vmatprep.subr.mxu0 0.0
  %3265 = vmatpush1.msra.mxu0 0.0
  %3266 = vmatprep.subr.mxu0 0.0
  %3267 = vmatpush1.msra.mxu0 0.0
  %3268 = vmatprep.subr.mxu0 0.0
  %3269 = vmatpush1.msra.mxu0 0.0
  %3270 = vmatprep.subr.mxu0 0.0
  %3271 = vmatpush1.msra.mxu0 0.0
  %3272 = vmatprep.subr.mxu0 0.0
  %3273 = vmatpush1.msra.mxu0 0.0
  %3274 = vmatprep.subr.mxu0 0.0
  %3275 = vmatpush1.msra.mxu0 0.0
  %3276 = vmatprep.subr.mxu0 0.0
  %3277 = vmatpush1.msra.mxu0 0.0
  %3278 = vmatprep.subr.mxu0 0.0
  %3279 = vmatpush1.msra.mxu0 0.0
  %3280 = vmatprep.subr.mxu0 0.0
  %3281 = vmatpush1.msra.mxu0 0.0
  %3282 = vmatprep.subr.mxu0 0.0
  %3283 = vmatpush1.msra.mxu0 0.0
  %3284 = vmatprep.subr.mxu0 0.0
  %3285 = vmatpush1.msra.mxu0 0.0
  %3286 = vmatprep.subr.mxu0 0.0
  %3287 = vmatpush1.msra.mxu0 0.0
  %3288 = vmatprep.subr.mxu0 0.0
  %3289 = vmatpush1.msra.mxu0 0.0
  %3290 = vmatprep.subr.mxu0 0.0
  %3291 = vmatpush1.msra.mxu0 0.0
  %3292 = vmatprep.subr.mxu0 0.0
  %3293 = vmatpush1.msra.mxu0 0.0
  %3294 = vmatprep.subr.mxu0 0.0
  %3295 = vmatpush1.msra.mxu0 0.0
  %3296 = vmatprep.subr.mxu0 0.0
  %3297 = vmatpush1.msra.mxu0 0.0
  %3298 = vmatprep.subr.mxu0 0.0
  %3299 = vmatpush1.msra.mxu0 0.0
  %3300 = vmatprep.mubr.f32.mxu0 0.0
  %3301 = vmatmul.mubr.f32.gmra.mrb[0].mxu0 %v3219
  %v3302 = vpop.f32.mrb[0].mxu0
  %v3303 = vadd.f32 0.0, %v3302
  %v3304 = vpop.f32.mrb[0].mxu0
  %3305 = vmatprep.mubr.f32.mxu0 0.0
  %3306 = vmatmul.mubr.f32.gmra.mrb[0].mxu0 %v3222
  %v3307 = vpop.f32.mrb[0].mxu0
  %v3308 = vadd.f32 0.0, %v3307
  %v3309 = vpop.f32.mrb[0].mxu0
  %3310 = vmatprep.mubr.f32.mxu0 0.0
  %3311 = vmatmul.mubr.f32.gmra.mrb[0].mxu0 %v3225
  %v3312 = vpop.f32.mrb[0].mxu0
  %v3313 = vadd.f32 0.0, %v3312
  %v3314 = vpop.f32.mrb[0].mxu0
  %3315 = vmatprep.mubr.f32.mxu0 0.0
  %3316 = vmatmul.mubr.f32.gmra.mrb[0].mxu0 %v3228
  %v3317 = vpop.f32.mrb[0].mxu0
  %v3318 = vadd.f32 0.0, %v3317
  %v3319 = vpop.f32.mrb[0].mxu0
  %3320 = vmatprep.mubr.f32.mxu0 0.0
  %3321 = vmatmul.mubr.f32.gmra.mrb[0].mxu0 %v3231
  %v3322 = vpop.f32.mrb[0].mxu0
  %v3323 = vadd.f32 0.0, %v3322
  %v3324 = vpop.f32.mrb[0].mxu0
  %3325 = vmatprep.mubr.f32.mxu0 0.0
  %3326 = vmatmul.mubr.f32.gmra.mrb[0].mxu0 %v3234
  %v3327 = vpop.f32.mrb[0].mxu0
  %v3328 = vadd.f32 0.0, %v3327
  %v3329 = vpop.f32.mrb[0].mxu0
  %3330 = vdwg.mxu0
  %3331 = vrot.lane.b32.xlu0 %v2629, 112
  %v3332 = vpop.permute.xlu0 %3331
  %3333 = vrot.lane.b32.xlu0 %v2634, 112
  %v3334 = vpop.permute.xlu0 %3333
  %3335 = vrot.lane.b32.xlu0 %v2639, 112
  %v3336 = vpop.permute.xlu0 %3335
  %3337 = vrot.lane.b32.xlu0 %v2644, 112
  %v3338 = vpop.permute.xlu0 %3337
  %3339 = vrot.lane.b32.xlu0 %v2649, 112
  %v3340 = vpop.permute.xlu0 %3339
  %3341 = vrot.lane.b32.xlu0 %v2654, 112
  %v3342 = vpop.permute.xlu0 %3341
  %3343 = vrot.lane.b32.xlu0 %v2629, 80
  %v3344 = vpop.permute.xlu0 %3343
  %3345 = vrot.lane.b32.xlu0 %v2634, 80
  %v3346 = vpop.permute.xlu0 %3345
  %3347 = vrot.lane.b32.xlu0 %v2639, 80
  %v3348 = vpop.permute.xlu0 %3347
  %3349 = vrot.lane.b32.xlu0 %v2644, 80
  %v3350 = vpop.permute.xlu0 %3349
  %3351 = vrot.lane.b32.xlu0 %v2649, 80
  %v3352 = vpop.permute.xlu0 %3351
  %3353 = vrot.lane.b32.xlu0 %v2654, 80
  %v3354 = vpop.permute.xlu0 %3353
  %v3355 = vsel %vm447, %v3332, 0
  %v3357 = vsel %vm447, %v3334, 0
  %v3359 = vsel %vm447, %v3336, 0
  %v3361 = vsel %vm447, %v3338, 0
  %v3363 = vsel %vm447, %v3340, 0
  %v3365 = vsel %vm447, %v3342, 0
  %v3367 = vsel %vm447, %v3344, 0
  %v3369 = vsel %vm447, %v3346, 0
  %v3371 = vsel %vm447, %v3348, 0
  %v3373 = vsel %vm447, %v3350, 0
  %v3375 = vsel %vm447, %v3352, 0
  %v3377 = vsel %vm447, %v3354, 0
  %3379 = vmatprep.subr.mxu0 0.0
  %3380 = vmatpush1.xpose.msra.mxu0 %v3367
  %3381 = vmatprep.subr.mxu0 0.0
  %3382 = vmatpush1.xpose.msra.mxu0 %v3369
  %3383 = vmatprep.subr.mxu0 0.0
  %3384 = vmatpush1.xpose.msra.mxu0 %v3371
  %3385 = vmatprep.subr.mxu0 0.0
  %3386 = vmatpush1.xpose.msra.mxu0 %v3373
  %3387 = vmatprep.subr.mxu0 0.0
  %3388 = vmatpush1.xpose.msra.mxu0 %v3375
  %3389 = vmatprep.subr.mxu0 0.0
  %3390 = vmatpush1.xpose.msra.mxu0 %v3377
  %3391 = vmatprep.subr.mxu0 0.0
  %3392 = vmatpush1.xpose.msra.mxu0 0.0
  %3393 = vmatprep.subr.mxu0 0.0
  %3394 = vmatpush1.xpose.msra.mxu0 0.0
  %3395 = vmatprep.subr.mxu0 0.0
  %3396 = vmatpush1.xpose.msra.mxu0 0.0
  %3397 = vmatprep.subr.mxu0 0.0
  %3398 = vmatpush1.xpose.msra.mxu0 0.0
  %3399 = vmatprep.subr.mxu0 0.0
  %3400 = vmatpush1.xpose.msra.mxu0 0.0
  %3401 = vmatprep.subr.mxu0 0.0
  %3402 = vmatpush1.xpose.msra.mxu0 0.0
  %3403 = vmatprep.subr.mxu0 0.0
  %3404 = vmatpush1.xpose.msra.mxu0 0.0
  %3405 = vmatprep.subr.mxu0 0.0
  %3406 = vmatpush1.xpose.msra.mxu0 0.0
  %3407 = vmatprep.subr.mxu0 0.0
  %3408 = vmatpush1.xpose.msra.mxu0 0.0
  %3409 = vmatprep.subr.mxu0 0.0
  %3410 = vmatpush1.xpose.msra.mxu0 0.0
  %3411 = vmatprep.subr.mxu0 0.0
  %3412 = vmatpush1.xpose.msra.mxu0 0.0
  %3413 = vmatprep.subr.mxu0 0.0
  %3414 = vmatpush1.xpose.msra.mxu0 0.0
  %3415 = vmatprep.subr.mxu0 0.0
  %3416 = vmatpush1.xpose.msra.mxu0 0.0
  %3417 = vmatprep.subr.mxu0 0.0
  %3418 = vmatpush1.xpose.msra.mxu0 0.0
  %3419 = vmatprep.subr.mxu0 0.0
  %3420 = vmatpush1.xpose.msra.mxu0 0.0
  %3421 = vmatprep.subr.mxu0 0.0
  %3422 = vmatpush1.xpose.msra.mxu0 0.0
  %3423 = vmatprep.subr.mxu0 0.0
  %3424 = vmatpush1.xpose.msra.mxu0 0.0
  %3425 = vmatprep.subr.mxu0 0.0
  %3426 = vmatpush1.xpose.msra.mxu0 0.0
  %3427 = vmatprep.subr.mxu0 0.0
  %3428 = vmatpush1.xpose.msra.mxu0 0.0
  %3429 = vmatprep.subr.mxu0 0.0
  %3430 = vmatpush1.xpose.msra.mxu0 0.0
  %3431 = vmatprep.subr.mxu0 0.0
  %3432 = vmatpush1.xpose.msra.mxu0 0.0
  %3433 = vmatprep.subr.mxu0 0.0
  %3434 = vmatpush1.xpose.msra.mxu0 0.0
  %3435 = vmatprep.subr.mxu0 0.0
  %3436 = vmatpush1.xpose.msra.mxu0 0.0
  %3437 = vmatprep.subr.mxu0 0.0
  %3438 = vmatpush1.xpose.msra.mxu0 0.0
  %3439 = vmatprep.subr.mxu0 0.0
  %3440 = vmatpush1.xpose.msra.mxu0 0.0
  %3441 = vmatprep.subr.mxu0 0.0
  %3442 = vmatpush1.xpose.msra.mxu0 0.0
  %3443 = vmatprep.mubr.f32.mxu0 0.0
  %3444 = vmatmul.mubr.f32.gmra.mrb[0].mxu0 %v3355
  %v3445 = vpop.f32.mrb[0].mxu0
  %v3446 = vadd.f32 %v193, %v3445
  %v3447 = vpop.f32.mrb[0].mxu0
  %3448 = vmatprep.mubr.f32.mxu0 0.0
  %3449 = vmatmul.mubr.f32.gmra.mrb[0].mxu0 %v3357
  %v3450 = vpop.f32.mrb[0].mxu0
  %v3451 = vadd.f32 %v194, %v3450
  %v3452 = vpop.f32.mrb[0].mxu0
  %3453 = vmatprep.mubr.f32.mxu0 0.0
  %3454 = vmatmul.mubr.f32.gmra.mrb[0].mxu0 %v3359
  %v3455 = vpop.f32.mrb[0].mxu0
  %v3456 = vadd.f32 %v195, %v3455
  %v3457 = vpop.f32.mrb[0].mxu0
  %3458 = vmatprep.mubr.f32.mxu0 0.0
  %3459 = vmatmul.mubr.f32.gmra.mrb[0].mxu0 %v3361
  %v3460 = vpop.f32.mrb[0].mxu0
  %v3461 = vadd.f32 %v196, %v3460
  %v3462 = vpop.f32.mrb[0].mxu0
  %3463 = vmatprep.mubr.f32.mxu0 0.0
  %3464 = vmatmul.mubr.f32.gmra.mrb[0].mxu0 %v3363
  %v3465 = vpop.f32.mrb[0].mxu0
  %v3466 = vadd.f32 %v197, %v3465
  %v3467 = vpop.f32.mrb[0].mxu0
  %3468 = vmatprep.mubr.f32.mxu0 0.0
  %3469 = vmatmul.mubr.f32.gmra.mrb[0].mxu0 %v3365
  %v3470 = vpop.f32.mrb[0].mxu0
  %v3471 = vadd.f32 %v198, %v3470
  %v3472 = vpop.f32.mrb[0].mxu0
  %3473 = vdwg.mxu0
  %v3474 = vsel %vm567, %v3446, -inf
  %3475 = vmax.xlane.f32.xlu0 %v3474
  %v3476 = vpop.xlane.xlu0 %3475
  %v3477 = vsel %vm567, %v3451, -inf
  %3478 = vmax.xlane.f32.xlu0 %v3477
  %v3479 = vpop.xlane.xlu0 %3478
  %v3480 = vsel %vm567, %v3456, -inf
  %3481 = vmax.xlane.f32.xlu0 %v3480
  %v3482 = vpop.xlane.xlu0 %3481
  %v3483 = vsel %vm567, %v3461, -inf
  %3484 = vmax.xlane.f32.xlu0 %v3483
  %v3485 = vpop.xlane.xlu0 %3484
  %v3486 = vsel %vm567, %v3466, -inf
  %3487 = vmax.xlane.f32.xlu0 %v3486
  %v3488 = vpop.xlane.xlu0 %3487
  %v3489 = vsel %vm567, %v3471, -inf
  %3490 = vmax.xlane.f32.xlu0 %v3489
  %v3491 = vpop.xlane.xlu0 %3490
  %v3492 = vsub.f32 %v3446, %v3476
  %v3493 = vsub.f32 %v3451, %v3479
  %v3494 = vsub.f32 %v3456, %v3482
  %v3495 = vsub.f32 %v3461, %v3485
  %v3496 = vsub.f32 %v3466, %v3488
  %v3497 = vsub.f32 %v3471, %v3491
  %v3498 = vmul.f32 %v3492, 1.442695
  %v3499 = vpow.pop %v3498
  %v3500 = vmul.f32 %v3493, 1.442695
  %v3501 = vpow.pop %v3500
  %v3502 = vmul.f32 %v3494, 1.442695
  %v3503 = vpow.pop %v3502
  %v3504 = vmul.f32 %v3495, 1.442695
  %v3505 = vpow.pop %v3504
  %v3506 = vmul.f32 %v3496, 1.442695
  %v3507 = vpow.pop %v3506
  %v3508 = vmul.f32 %v3497, 1.442695
  %v3509 = vpow.pop %v3508
  %v3510 = vsel %vm567, %v3499, 0.0
  %3511 = vadd.xlane.f32.xlu0 %v3510
  %v3512 = vpop.xlane.xlu0 %3511
  %v3513 = vsel %vm567, %v3501, 0.0
  %3514 = vadd.xlane.f32.xlu0 %v3513
  %v3515 = vpop.xlane.xlu0 %3514
  %v3516 = vsel %vm567, %v3503, 0.0
  %3517 = vadd.xlane.f32.xlu0 %v3516
  %v3518 = vpop.xlane.xlu0 %3517
  %v3519 = vsel %vm567, %v3505, 0.0
  %3520 = vadd.xlane.f32.xlu0 %v3519
  %v3521 = vpop.xlane.xlu0 %3520
  %v3522 = vsel %vm567, %v3507, 0.0
  %3523 = vadd.xlane.f32.xlu0 %v3522
  %v3524 = vpop.xlane.xlu0 %3523
  %v3525 = vsel %vm567, %v3509, 0.0
  %3526 = vadd.xlane.f32.xlu0 %v3525
  %v3527 = vpop.xlane.xlu0 %3526
  %v3528 = vrcp.pop %v3512
  %v3529 = vrcp.pop %v3515
  %v3530 = vrcp.pop %v3518
  %v3531 = vrcp.pop %v3521
  %v3532 = vrcp.pop %v3524
  %v3533 = vrcp.pop %v3527
  %v3534 = vmul.f32 %v3499, %v3528
  %v3535 = vmul.f32 %v3501, %v3529
  %v3536 = vmul.f32 %v3503, %v3530
  %v3537 = vmul.f32 %v3505, %v3531
  %v3538 = vmul.f32 %v3507, %v3532
  %v3539 = vmul.f32 %v3509, %v3533
  %3540 = vrot.lane.b32.xlu0 %v2629, 48
  %v3541 = vpop.permute.xlu0 %3540
  %3542 = vrot.lane.b32.xlu0 %v2634, 48
  %v3543 = vpop.permute.xlu0 %3542
  %3544 = vrot.lane.b32.xlu0 %v2639, 48
  %v3545 = vpop.permute.xlu0 %3544
  %3546 = vrot.lane.b32.xlu0 %v2644, 48
  %v3547 = vpop.permute.xlu0 %3546
  %3548 = vrot.lane.b32.xlu0 %v2649, 48
  %v3549 = vpop.permute.xlu0 %3548
  %3550 = vrot.lane.b32.xlu0 %v2654, 48
  %v3551 = vpop.permute.xlu0 %3550
  %v3559 = vsel %vm567, %v3534, 0
  %v3562 = vsel %vm567, %v3535, 0
  %v3565 = vsel %vm567, %v3536, 0
  %v3568 = vsel %vm567, %v3537, 0
  %v3571 = vsel %vm567, %v3538, 0
  %v3574 = vsel %vm567, %v3539, 0
  %3576 = vmatprep.subr.mxu0 0.0
  %3577 = vmatpush1.msra.mxu0 %v3541
  %3578 = vmatprep.subr.mxu0 0.0
  %3579 = vmatpush1.msra.mxu0 %v3543
  %3580 = vmatprep.subr.mxu0 0.0
  %3581 = vmatpush1.msra.mxu0 %v3545
  %3582 = vmatprep.subr.mxu0 0.0
  %3583 = vmatpush1.msra.mxu0 %v3547
  %3584 = vmatprep.subr.mxu0 0.0
  %3585 = vmatpush1.msra.mxu0 %v3549
  %3586 = vmatprep.subr.mxu0 0.0
  %3587 = vmatpush1.msra.mxu0 %v3551
  %3588 = vmatprep.subr.mxu0 0.0
  %3589 = vmatpush1.msra.mxu0 0.0
  %3590 = vmatprep.subr.mxu0 0.0
  %3591 = vmatpush1.msra.mxu0 0.0
  %3592 = vmatprep.subr.mxu0 0.0
  %3593 = vmatpush1.msra.mxu0 0.0
  %3594 = vmatprep.subr.mxu0 0.0
  %3595 = vmatpush1.msra.mxu0 0.0
  %3596 = vmatprep.subr.mxu0 0.0
  %3597 = vmatpush1.msra.mxu0 0.0
  %3598 = vmatprep.subr.mxu0 0.0
  %3599 = vmatpush1.msra.mxu0 0.0
  %3600 = vmatprep.subr.mxu0 0.0
  %3601 = vmatpush1.msra.mxu0 0.0
  %3602 = vmatprep.subr.mxu0 0.0
  %3603 = vmatpush1.msra.mxu0 0.0
  %3604 = vmatprep.subr.mxu0 0.0
  %3605 = vmatpush1.msra.mxu0 0.0
  %3606 = vmatprep.subr.mxu0 0.0
  %3607 = vmatpush1.msra.mxu0 0.0
  %3608 = vmatprep.subr.mxu0 0.0
  %3609 = vmatpush1.msra.mxu0 0.0
  %3610 = vmatprep.subr.mxu0 0.0
  %3611 = vmatpush1.msra.mxu0 0.0
  %3612 = vmatprep.subr.mxu0 0.0
  %3613 = vmatpush1.msra.mxu0 0.0
  %3614 = vmatprep.subr.mxu0 0.0
  %3615 = vmatpush1.msra.mxu0 0.0
  %3616 = vmatprep.subr.mxu0 0.0
  %3617 = vmatpush1.msra.mxu0 0.0
  %3618 = vmatprep.subr.mxu0 0.0
  %3619 = vmatpush1.msra.mxu0 0.0
  %3620 = vmatprep.subr.mxu0 0.0
  %3621 = vmatpush1.msra.mxu0 0.0
  %3622 = vmatprep.subr.mxu0 0.0
  %3623 = vmatpush1.msra.mxu0 0.0
  %3624 = vmatprep.subr.mxu0 0.0
  %3625 = vmatpush1.msra.mxu0 0.0
  %3626 = vmatprep.subr.mxu0 0.0
  %3627 = vmatpush1.msra.mxu0 0.0
  %3628 = vmatprep.subr.mxu0 0.0
  %3629 = vmatpush1.msra.mxu0 0.0
  %3630 = vmatprep.subr.mxu0 0.0
  %3631 = vmatpush1.msra.mxu0 0.0
  %3632 = vmatprep.subr.mxu0 0.0
  %3633 = vmatpush1.msra.mxu0 0.0
  %3634 = vmatprep.subr.mxu0 0.0
  %3635 = vmatpush1.msra.mxu0 0.0
  %3636 = vmatprep.subr.mxu0 0.0
  %3637 = vmatpush1.msra.mxu0 0.0
  %3638 = vmatprep.subr.mxu0 0.0
  %3639 = vmatpush1.msra.mxu0 0.0
  %3640 = vmatprep.mubr.f32.mxu0 0.0
  %3641 = vmatmul.mubr.f32.gmra.mrb[0].mxu0 %v3559
  %v3642 = vpop.f32.mrb[0].mxu0
  %v3643 = vadd.f32 0.0, %v3642
  %v3644 = vpop.f32.mrb[0].mxu0
  %3645 = vmatprep.mubr.f32.mxu0 0.0
  %3646 = vmatmul.mubr.f32.gmra.mrb[0].mxu0 %v3562
  %v3647 = vpop.f32.mrb[0].mxu0
  %v3648 = vadd.f32 0.0, %v3647
  %v3649 = vpop.f32.mrb[0].mxu0
  %3650 = vmatprep.mubr.f32.mxu0 0.0
  %3651 = vmatmul.mubr.f32.gmra.mrb[0].mxu0 %v3565
  %v3652 = vpop.f32.mrb[0].mxu0
  %v3653 = vadd.f32 0.0, %v3652
  %v3654 = vpop.f32.mrb[0].mxu0
  %3655 = vmatprep.mubr.f32.mxu0 0.0
  %3656 = vmatmul.mubr.f32.gmra.mrb[0].mxu0 %v3568
  %v3657 = vpop.f32.mrb[0].mxu0
  %v3658 = vadd.f32 0.0, %v3657
  %v3659 = vpop.f32.mrb[0].mxu0
  %3660 = vmatprep.mubr.f32.mxu0 0.0
  %3661 = vmatmul.mubr.f32.gmra.mrb[0].mxu0 %v3571
  %v3662 = vpop.f32.mrb[0].mxu0
  %v3663 = vadd.f32 0.0, %v3662
  %v3664 = vpop.f32.mrb[0].mxu0
  %3665 = vmatprep.mubr.f32.mxu0 0.0
  %3666 = vmatmul.mubr.f32.gmra.mrb[0].mxu0 %v3574
  %v3667 = vpop.f32.mrb[0].mxu0
  %v3668 = vadd.f32 0.0, %v3667
  %v3669 = vpop.f32.mrb[0].mxu0
  %3670 = vdwg.mxu0
  %3671 = vrot.lane.b32.xlu0 %v2629, 104
  %v3672 = vpop.permute.xlu0 %3671
  %3673 = vrot.lane.b32.xlu0 %v2634, 104
  %v3674 = vpop.permute.xlu0 %3673
  %3675 = vrot.lane.b32.xlu0 %v2639, 104
  %v3676 = vpop.permute.xlu0 %3675
  %3677 = vrot.lane.b32.xlu0 %v2644, 104
  %v3678 = vpop.permute.xlu0 %3677
  %3679 = vrot.lane.b32.xlu0 %v2649, 104
  %v3680 = vpop.permute.xlu0 %3679
  %3681 = vrot.lane.b32.xlu0 %v2654, 104
  %v3682 = vpop.permute.xlu0 %3681
  %3683 = vrot.lane.b32.xlu0 %v2629, 72
  %v3684 = vpop.permute.xlu0 %3683
  %3685 = vrot.lane.b32.xlu0 %v2634, 72
  %v3686 = vpop.permute.xlu0 %3685
  %3687 = vrot.lane.b32.xlu0 %v2639, 72
  %v3688 = vpop.permute.xlu0 %3687
  %3689 = vrot.lane.b32.xlu0 %v2644, 72
  %v3690 = vpop.permute.xlu0 %3689
  %3691 = vrot.lane.b32.xlu0 %v2649, 72
  %v3692 = vpop.permute.xlu0 %3691
  %3693 = vrot.lane.b32.xlu0 %v2654, 72
  %v3694 = vpop.permute.xlu0 %3693
  %v3695 = vsel %vm447, %v3672, 0
  %v3697 = vsel %vm447, %v3674, 0
  %v3699 = vsel %vm447, %v3676, 0
  %v3701 = vsel %vm447, %v3678, 0
  %v3703 = vsel %vm447, %v3680, 0
  %v3705 = vsel %vm447, %v3682, 0
  %v3707 = vsel %vm447, %v3684, 0
  %v3709 = vsel %vm447, %v3686, 0
  %v3711 = vsel %vm447, %v3688, 0
  %v3713 = vsel %vm447, %v3690, 0
  %v3715 = vsel %vm447, %v3692, 0
  %v3717 = vsel %vm447, %v3694, 0
  %3719 = vmatprep.subr.mxu0 0.0
  %3720 = vmatpush1.xpose.msra.mxu0 %v3707
  %3721 = vmatprep.subr.mxu0 0.0
  %3722 = vmatpush1.xpose.msra.mxu0 %v3709
  %3723 = vmatprep.subr.mxu0 0.0
  %3724 = vmatpush1.xpose.msra.mxu0 %v3711
  %3725 = vmatprep.subr.mxu0 0.0
  %3726 = vmatpush1.xpose.msra.mxu0 %v3713
  %3727 = vmatprep.subr.mxu0 0.0
  %3728 = vmatpush1.xpose.msra.mxu0 %v3715
  %3729 = vmatprep.subr.mxu0 0.0
  %3730 = vmatpush1.xpose.msra.mxu0 %v3717
  %3731 = vmatprep.subr.mxu0 0.0
  %3732 = vmatpush1.xpose.msra.mxu0 0.0
  %3733 = vmatprep.subr.mxu0 0.0
  %3734 = vmatpush1.xpose.msra.mxu0 0.0
  %3735 = vmatprep.subr.mxu0 0.0
  %3736 = vmatpush1.xpose.msra.mxu0 0.0
  %3737 = vmatprep.subr.mxu0 0.0
  %3738 = vmatpush1.xpose.msra.mxu0 0.0
  %3739 = vmatprep.subr.mxu0 0.0
  %3740 = vmatpush1.xpose.msra.mxu0 0.0
  %3741 = vmatprep.subr.mxu0 0.0
  %3742 = vmatpush1.xpose.msra.mxu0 0.0
  %3743 = vmatprep.subr.mxu0 0.0
  %3744 = vmatpush1.xpose.msra.mxu0 0.0
  %3745 = vmatprep.subr.mxu0 0.0
  %3746 = vmatpush1.xpose.msra.mxu0 0.0
  %3747 = vmatprep.subr.mxu0 0.0
  %3748 = vmatpush1.xpose.msra.mxu0 0.0
  %3749 = vmatprep.subr.mxu0 0.0
  %3750 = vmatpush1.xpose.msra.mxu0 0.0
  %3751 = vmatprep.subr.mxu0 0.0
  %3752 = vmatpush1.xpose.msra.mxu0 0.0
  %3753 = vmatprep.subr.mxu0 0.0
  %3754 = vmatpush1.xpose.msra.mxu0 0.0
  %3755 = vmatprep.subr.mxu0 0.0
  %3756 = vmatpush1.xpose.msra.mxu0 0.0
  %3757 = vmatprep.subr.mxu0 0.0
  %3758 = vmatpush1.xpose.msra.mxu0 0.0
  %3759 = vmatprep.subr.mxu0 0.0
  %3760 = vmatpush1.xpose.msra.mxu0 0.0
  %3761 = vmatprep.subr.mxu0 0.0
  %3762 = vmatpush1.xpose.msra.mxu0 0.0
  %3763 = vmatprep.subr.mxu0 0.0
  %3764 = vmatpush1.xpose.msra.mxu0 0.0
  %3765 = vmatprep.subr.mxu0 0.0
  %3766 = vmatpush1.xpose.msra.mxu0 0.0
  %3767 = vmatprep.subr.mxu0 0.0
  %3768 = vmatpush1.xpose.msra.mxu0 0.0
  %3769 = vmatprep.subr.mxu0 0.0
  %3770 = vmatpush1.xpose.msra.mxu0 0.0
  %3771 = vmatprep.subr.mxu0 0.0
  %3772 = vmatpush1.xpose.msra.mxu0 0.0
  %3773 = vmatprep.subr.mxu0 0.0
  %3774 = vmatpush1.xpose.msra.mxu0 0.0
  %3775 = vmatprep.subr.mxu0 0.0
  %3776 = vmatpush1.xpose.msra.mxu0 0.0
  %3777 = vmatprep.subr.mxu0 0.0
  %3778 = vmatpush1.xpose.msra.mxu0 0.0
  %3779 = vmatprep.subr.mxu0 0.0
  %3780 = vmatpush1.xpose.msra.mxu0 0.0
  %3781 = vmatprep.subr.mxu0 0.0
  %3782 = vmatpush1.xpose.msra.mxu0 0.0
  %3783 = vmatprep.mubr.f32.mxu0 0.0
  %3784 = vmatmul.mubr.f32.gmra.mrb[0].mxu0 %v3695
  %v3785 = vpop.f32.mrb[0].mxu0
  %v3786 = vadd.f32 %v193, %v3785
  %v3787 = vpop.f32.mrb[0].mxu0
  %3788 = vmatprep.mubr.f32.mxu0 0.0
  %3789 = vmatmul.mubr.f32.gmra.mrb[0].mxu0 %v3697
  %v3790 = vpop.f32.mrb[0].mxu0
  %v3791 = vadd.f32 %v194, %v3790
  %v3792 = vpop.f32.mrb[0].mxu0
  %3793 = vmatprep.mubr.f32.mxu0 0.0
  %3794 = vmatmul.mubr.f32.gmra.mrb[0].mxu0 %v3699
  %v3795 = vpop.f32.mrb[0].mxu0
  %v3796 = vadd.f32 %v195, %v3795
  %v3797 = vpop.f32.mrb[0].mxu0
  %3798 = vmatprep.mubr.f32.mxu0 0.0
  %3799 = vmatmul.mubr.f32.gmra.mrb[0].mxu0 %v3701
  %v3800 = vpop.f32.mrb[0].mxu0
  %v3801 = vadd.f32 %v196, %v3800
  %v3802 = vpop.f32.mrb[0].mxu0
  %3803 = vmatprep.mubr.f32.mxu0 0.0
  %3804 = vmatmul.mubr.f32.gmra.mrb[0].mxu0 %v3703
  %v3805 = vpop.f32.mrb[0].mxu0
  %v3806 = vadd.f32 %v197, %v3805
  %v3807 = vpop.f32.mrb[0].mxu0
  %3808 = vmatprep.mubr.f32.mxu0 0.0
  %3809 = vmatmul.mubr.f32.gmra.mrb[0].mxu0 %v3705
  %v3810 = vpop.f32.mrb[0].mxu0
  %v3811 = vadd.f32 %v198, %v3810
  %v3812 = vpop.f32.mrb[0].mxu0
  %3813 = vdwg.mxu0
  %v3814 = vsel %vm567, %v3786, -inf
  %3815 = vmax.xlane.f32.xlu0 %v3814
  %v3816 = vpop.xlane.xlu0 %3815
  %v3817 = vsel %vm567, %v3791, -inf
  %3818 = vmax.xlane.f32.xlu0 %v3817
  %v3819 = vpop.xlane.xlu0 %3818
  %v3820 = vsel %vm567, %v3796, -inf
  %3821 = vmax.xlane.f32.xlu0 %v3820
  %v3822 = vpop.xlane.xlu0 %3821
  %v3823 = vsel %vm567, %v3801, -inf
  %3824 = vmax.xlane.f32.xlu0 %v3823
  %v3825 = vpop.xlane.xlu0 %3824
  %v3826 = vsel %vm567, %v3806, -inf
  %3827 = vmax.xlane.f32.xlu0 %v3826
  %v3828 = vpop.xlane.xlu0 %3827
  %v3829 = vsel %vm567, %v3811, -inf
  %3830 = vmax.xlane.f32.xlu0 %v3829
  %v3831 = vpop.xlane.xlu0 %3830
  %v3832 = vsub.f32 %v3786, %v3816
  %v3833 = vsub.f32 %v3791, %v3819
  %v3834 = vsub.f32 %v3796, %v3822
  %v3835 = vsub.f32 %v3801, %v3825
  %v3836 = vsub.f32 %v3806, %v3828
  %v3837 = vsub.f32 %v3811, %v3831
  %v3838 = vmul.f32 %v3832, 1.442695
  %v3839 = vpow.pop %v3838
  %v3840 = vmul.f32 %v3833, 1.442695
  %v3841 = vpow.pop %v3840
  %v3842 = vmul.f32 %v3834, 1.442695
  %v3843 = vpow.pop %v3842
  %v3844 = vmul.f32 %v3835, 1.442695
  %v3845 = vpow.pop %v3844
  %v3846 = vmul.f32 %v3836, 1.442695
  %v3847 = vpow.pop %v3846
  %v3848 = vmul.f32 %v3837, 1.442695
  %v3849 = vpow.pop %v3848
  %v3850 = vsel %vm567, %v3839, 0.0
  %3851 = vadd.xlane.f32.xlu0 %v3850
  %v3852 = vpop.xlane.xlu0 %3851
  %v3853 = vsel %vm567, %v3841, 0.0
  %3854 = vadd.xlane.f32.xlu0 %v3853
  %v3855 = vpop.xlane.xlu0 %3854
  %v3856 = vsel %vm567, %v3843, 0.0
  %3857 = vadd.xlane.f32.xlu0 %v3856
  %v3858 = vpop.xlane.xlu0 %3857
  %v3859 = vsel %vm567, %v3845, 0.0
  %3860 = vadd.xlane.f32.xlu0 %v3859
  %v3861 = vpop.xlane.xlu0 %3860
  %v3862 = vsel %vm567, %v3847, 0.0
  %3863 = vadd.xlane.f32.xlu0 %v3862
  %v3864 = vpop.xlane.xlu0 %3863
  %v3865 = vsel %vm567, %v3849, 0.0
  %3866 = vadd.xlane.f32.xlu0 %v3865
  %v3867 = vpop.xlane.xlu0 %3866
  %v3868 = vrcp.pop %v3852
  %v3869 = vrcp.pop %v3855
  %v3870 = vrcp.pop %v3858
  %v3871 = vrcp.pop %v3861
  %v3872 = vrcp.pop %v3864
  %v3873 = vrcp.pop %v3867
  %v3874 = vmul.f32 %v3839, %v3868
  %v3875 = vmul.f32 %v3841, %v3869
  %v3876 = vmul.f32 %v3843, %v3870
  %v3877 = vmul.f32 %v3845, %v3871
  %v3878 = vmul.f32 %v3847, %v3872
  %v3879 = vmul.f32 %v3849, %v3873
  %3880 = vrot.lane.b32.xlu0 %v2629, 40
  %v3881 = vpop.permute.xlu0 %3880
  %3882 = vrot.lane.b32.xlu0 %v2634, 40
  %v3883 = vpop.permute.xlu0 %3882
  %3884 = vrot.lane.b32.xlu0 %v2639, 40
  %v3885 = vpop.permute.xlu0 %3884
  %3886 = vrot.lane.b32.xlu0 %v2644, 40
  %v3887 = vpop.permute.xlu0 %3886
  %3888 = vrot.lane.b32.xlu0 %v2649, 40
  %v3889 = vpop.permute.xlu0 %3888
  %3890 = vrot.lane.b32.xlu0 %v2654, 40
  %v3891 = vpop.permute.xlu0 %3890
  %v3899 = vsel %vm567, %v3874, 0
  %v3902 = vsel %vm567, %v3875, 0
  %v3905 = vsel %vm567, %v3876, 0
  %v3908 = vsel %vm567, %v3877, 0
  %v3911 = vsel %vm567, %v3878, 0
  %v3914 = vsel %vm567, %v3879, 0
  %3916 = vmatprep.subr.mxu0 0.0
  %3917 = vmatpush1.msra.mxu0 %v3881
  %3918 = vmatprep.subr.mxu0 0.0
  %3919 = vmatpush1.msra.mxu0 %v3883
  %3920 = vmatprep.subr.mxu0 0.0
  %3921 = vmatpush1.msra.mxu0 %v3885
  %3922 = vmatprep.subr.mxu0 0.0
  %3923 = vmatpush1.msra.mxu0 %v3887
  %3924 = vmatprep.subr.mxu0 0.0
  %3925 = vmatpush1.msra.mxu0 %v3889
  %3926 = vmatprep.subr.mxu0 0.0
  %3927 = vmatpush1.msra.mxu0 %v3891
  %3928 = vmatprep.subr.mxu0 0.0
  %3929 = vmatpush1.msra.mxu0 0.0
  %3930 = vmatprep.subr.mxu0 0.0
  %3931 = vmatpush1.msra.mxu0 0.0
  %3932 = vmatprep.subr.mxu0 0.0
  %3933 = vmatpush1.msra.mxu0 0.0
  %3934 = vmatprep.subr.mxu0 0.0
  %3935 = vmatpush1.msra.mxu0 0.0
  %3936 = vmatprep.subr.mxu0 0.0
  %3937 = vmatpush1.msra.mxu0 0.0
  %3938 = vmatprep.subr.mxu0 0.0
  %3939 = vmatpush1.msra.mxu0 0.0
  %3940 = vmatprep.subr.mxu0 0.0
  %3941 = vmatpush1.msra.mxu0 0.0
  %3942 = vmatprep.subr.mxu0 0.0
  %3943 = vmatpush1.msra.mxu0 0.0
  %3944 = vmatprep.subr.mxu0 0.0
  %3945 = vmatpush1.msra.mxu0 0.0
  %3946 = vmatprep.subr.mxu0 0.0
  %3947 = vmatpush1.msra.mxu0 0.0
  %3948 = vmatprep.subr.mxu0 0.0
  %3949 = vmatpush1.msra.mxu0 0.0
  %3950 = vmatprep.subr.mxu0 0.0
  %3951 = vmatpush1.msra.mxu0 0.0
  %3952 = vmatprep.subr.mxu0 0.0
  %3953 = vmatpush1.msra.mxu0 0.0
  %3954 = vmatprep.subr.mxu0 0.0
  %3955 = vmatpush1.msra.mxu0 0.0
  %3956 = vmatprep.subr.mxu0 0.0
  %3957 = vmatpush1.msra.mxu0 0.0
  %3958 = vmatprep.subr.mxu0 0.0
  %3959 = vmatpush1.msra.mxu0 0.0
  %3960 = vmatprep.subr.mxu0 0.0
  %3961 = vmatpush1.msra.mxu0 0.0
  %3962 = vmatprep.subr.mxu0 0.0
  %3963 = vmatpush1.msra.mxu0 0.0
  %3964 = vmatprep.subr.mxu0 0.0
  %3965 = vmatpush1.msra.mxu0 0.0
  %3966 = vmatprep.subr.mxu0 0.0
  %3967 = vmatpush1.msra.mxu0 0.0
  %3968 = vmatprep.subr.mxu0 0.0
  %3969 = vmatpush1.msra.mxu0 0.0
  %3970 = vmatprep.subr.mxu0 0.0
  %3971 = vmatpush1.msra.mxu0 0.0
  %3972 = vmatprep.subr.mxu0 0.0
  %3973 = vmatpush1.msra.mxu0 0.0
  %3974 = vmatprep.subr.mxu0 0.0
  %3975 = vmatpush1.msra.mxu0 0.0
  %3976 = vmatprep.subr.mxu0 0.0
  %3977 = vmatpush1.msra.mxu0 0.0
  %3978 = vmatprep.subr.mxu0 0.0
  %3979 = vmatpush1.msra.mxu0 0.0
  %3980 = vmatprep.mubr.f32.mxu0 0.0
  %3981 = vmatmul.mubr.f32.gmra.mrb[0].mxu0 %v3899
  %v3982 = vpop.f32.mrb[0].mxu0
  %v3983 = vadd.f32 0.0, %v3982
  %v3984 = vpop.f32.mrb[0].mxu0
  %3985 = vmatprep.mubr.f32.mxu0 0.0
  %3986 = vmatmul.mubr.f32.gmra.mrb[0].mxu0 %v3902
  %v3987 = vpop.f32.mrb[0].mxu0
  %v3988 = vadd.f32 0.0, %v3987
  %v3989 = vpop.f32.mrb[0].mxu0
  %3990 = vmatprep.mubr.f32.mxu0 0.0
  %3991 = vmatmul.mubr.f32.gmra.mrb[0].mxu0 %v3905
  %v3992 = vpop.f32.mrb[0].mxu0
  %v3993 = vadd.f32 0.0, %v3992
  %v3994 = vpop.f32.mrb[0].mxu0
  %3995 = vmatprep.mubr.f32.mxu0 0.0
  %3996 = vmatmul.mubr.f32.gmra.mrb[0].mxu0 %v3908
  %v3997 = vpop.f32.mrb[0].mxu0
  %v3998 = vadd.f32 0.0, %v3997
  %v3999 = vpop.f32.mrb[0].mxu0
  %4000 = vmatprep.mubr.f32.mxu0 0.0
  %4001 = vmatmul.mubr.f32.gmra.mrb[0].mxu0 %v3911
  %v4002 = vpop.f32.mrb[0].mxu0
  %v4003 = vadd.f32 0.0, %v4002
  %v4004 = vpop.f32.mrb[0].mxu0
  %4005 = vmatprep.mubr.f32.mxu0 0.0
  %4006 = vmatmul.mubr.f32.gmra.mrb[0].mxu0 %v3914
  %v4007 = vpop.f32.mrb[0].mxu0
  %v4008 = vadd.f32 0.0, %v4007
  %v4009 = vpop.f32.mrb[0].mxu0
  %4010 = vdwg.mxu0
  %4017 = vrot.lane.b32.xlu0 %v3303, 8
  %v4018 = vpop.permute.xlu0 %4017
  %4019 = vrot.lane.b32.xlu0 %v3308, 8
  %v4020 = vpop.permute.xlu0 %4019
  %4021 = vrot.lane.b32.xlu0 %v3313, 8
  %v4022 = vpop.permute.xlu0 %4021
  %4023 = vrot.lane.b32.xlu0 %v3318, 8
  %v4024 = vpop.permute.xlu0 %4023
  %4025 = vrot.lane.b32.xlu0 %v3323, 8
  %v4026 = vpop.permute.xlu0 %4025
  %4027 = vrot.lane.b32.xlu0 %v3328, 8
  %v4028 = vpop.permute.xlu0 %4027
  %4041 = vrot.lane.b32.xlu0 %v3643, 16
  %v4042 = vpop.permute.xlu0 %4041
  %4043 = vrot.lane.b32.xlu0 %v3648, 16
  %v4044 = vpop.permute.xlu0 %4043
  %4045 = vrot.lane.b32.xlu0 %v3653, 16
  %v4046 = vpop.permute.xlu0 %4045
  %4047 = vrot.lane.b32.xlu0 %v3658, 16
  %v4048 = vpop.permute.xlu0 %4047
  %4049 = vrot.lane.b32.xlu0 %v3663, 16
  %v4050 = vpop.permute.xlu0 %4049
  %4051 = vrot.lane.b32.xlu0 %v3668, 16
  %v4052 = vpop.permute.xlu0 %4051
  %4065 = vrot.lane.b32.xlu0 %v3983, 24
  %v4066 = vpop.permute.xlu0 %4065
  %4067 = vrot.lane.b32.xlu0 %v3988, 24
  %v4068 = vpop.permute.xlu0 %4067
  %4069 = vrot.lane.b32.xlu0 %v3993, 24
  %v4070 = vpop.permute.xlu0 %4069
  %4071 = vrot.lane.b32.xlu0 %v3998, 24
  %v4072 = vpop.permute.xlu0 %4071
  %4073 = vrot.lane.b32.xlu0 %v4003, 24
  %v4074 = vpop.permute.xlu0 %4073
  %4075 = vrot.lane.b32.xlu0 %v4008, 24
  %v4076 = vpop.permute.xlu0 %4075
  %v4083 = vsel %vm447, %v2963, %v4018
  %v4084 = vsel %vm447, %v2968, %v4020
  %v4085 = vsel %vm447, %v2973, %v4022
  %v4086 = vsel %vm447, %v2978, %v4024
  %v4087 = vsel %vm447, %v2983, %v4026
  %v4088 = vsel %vm447, %v2988, %v4028
  %v4089 = vsel %vm1863, %v4083, %v4042
  %v4090 = vsel %vm1863, %v4084, %v4044
  %v4091 = vsel %vm1863, %v4085, %v4046
  %v4092 = vsel %vm1863, %v4086, %v4048
  %v4093 = vsel %vm1863, %v4087, %v4050
  %v4094 = vsel %vm1863, %v4088, %v4052
  %v4095 = vsel %vm1870, %v4089, %v4066
  %v4096 = vsel %vm1870, %v4090, %v4068
  %v4097 = vsel %vm1870, %v4091, %v4070
  %v4098 = vsel %vm1870, %v4092, %v4072
  %v4099 = vsel %vm1870, %v4093, %v4074
  %v4100 = vsel %vm1870, %v4094, %v4076
  %s4101 = scalar_lea.vmem %s8, 32
  %v4102 = vld [vmem:[%s4101] sm:$0xff]
  %v4103 = vld [vmem:[%s4101 + $0x8] sm:$0xff]
  %v4104 = vld [vmem:[%s4101 + $0x10] sm:$0xff]
  %v4105 = vld [vmem:[%s4101 + $0x18] sm:$0xff]
  %v4107 = vsel %vm201, %v4095, 0
  %v4110 = vsel %vm201, %v4096, 0
  %v4113 = vsel %vm201, %v4097, 0
  %v4116 = vsel %vm201, %v4098, 0
  %v4119 = vsel %vm201, %v4099, 0
  %v4122 = vsel %vm201, %v4100, 0
  %4124 = vmatprep.subr.mxu0 0.0
  %4125 = vmatpush1.msra.mxu0 %v4102
  %4126 = vmatprep.subr.mxu0 0.0
  %4127 = vmatpush1.msra.mxu0 %v4103
  %4128 = vmatprep.subr.mxu0 0.0
  %4129 = vmatpush1.msra.mxu0 %v4104
  %4130 = vmatprep.subr.mxu0 0.0
  %4131 = vmatpush1.msra.mxu0 %v4105
  %4132 = vmatprep.subr.mxu0 0.0
  %4133 = vmatpush1.msra.mxu0 0.0
  %4134 = vmatprep.subr.mxu0 0.0
  %4135 = vmatpush1.msra.mxu0 0.0
  %4136 = vmatprep.subr.mxu0 0.0
  %4137 = vmatpush1.msra.mxu0 0.0
  %4138 = vmatprep.subr.mxu0 0.0
  %4139 = vmatpush1.msra.mxu0 0.0
  %4140 = vmatprep.subr.mxu0 0.0
  %4141 = vmatpush1.msra.mxu0 0.0
  %4142 = vmatprep.subr.mxu0 0.0
  %4143 = vmatpush1.msra.mxu0 0.0
  %4144 = vmatprep.subr.mxu0 0.0
  %4145 = vmatpush1.msra.mxu0 0.0
  %4146 = vmatprep.subr.mxu0 0.0
  %4147 = vmatpush1.msra.mxu0 0.0
  %4148 = vmatprep.subr.mxu0 0.0
  %4149 = vmatpush1.msra.mxu0 0.0
  %4150 = vmatprep.subr.mxu0 0.0
  %4151 = vmatpush1.msra.mxu0 0.0
  %4152 = vmatprep.subr.mxu0 0.0
  %4153 = vmatpush1.msra.mxu0 0.0
  %4154 = vmatprep.subr.mxu0 0.0
  %4155 = vmatpush1.msra.mxu0 0.0
  %4156 = vmatprep.subr.mxu0 0.0
  %4157 = vmatpush1.msra.mxu0 0.0
  %4158 = vmatprep.subr.mxu0 0.0
  %4159 = vmatpush1.msra.mxu0 0.0
  %4160 = vmatprep.subr.mxu0 0.0
  %4161 = vmatpush1.msra.mxu0 0.0
  %4162 = vmatprep.subr.mxu0 0.0
  %4163 = vmatpush1.msra.mxu0 0.0
  %4164 = vmatprep.subr.mxu0 0.0
  %4165 = vmatpush1.msra.mxu0 0.0
  %4166 = vmatprep.subr.mxu0 0.0
  %4167 = vmatpush1.msra.mxu0 0.0
  %4168 = vmatprep.subr.mxu0 0.0
  %4169 = vmatpush1.msra.mxu0 0.0
  %4170 = vmatprep.subr.mxu0 0.0
  %4171 = vmatpush1.msra.mxu0 0.0
  %4172 = vmatprep.subr.mxu0 0.0
  %4173 = vmatpush1.msra.mxu0 0.0
  %4174 = vmatprep.subr.mxu0 0.0
  %4175 = vmatpush1.msra.mxu0 0.0
  %4176 = vmatprep.subr.mxu0 0.0
  %4177 = vmatpush1.msra.mxu0 0.0
  %4178 = vmatprep.subr.mxu0 0.0
  %4179 = vmatpush1.msra.mxu0 0.0
  %4180 = vmatprep.subr.mxu0 0.0
  %4181 = vmatpush1.msra.mxu0 0.0
  %4182 = vmatprep.subr.mxu0 0.0
  %4183 = vmatpush1.msra.mxu0 0.0
  %4184 = vmatprep.subr.mxu0 0.0
  %4185 = vmatpush1.msra.mxu0 0.0
  %4186 = vmatprep.subr.mxu0 0.0
  %4187 = vmatpush1.msra.mxu0 0.0
  %4188 = vmatprep.mubr.f32.mxu0 0.0
  %4189 = vmatmul.mubr.f32.gmra.mrb[0].mxu0 %v4107
  %v4190 = vpop.f32.mrb[0].mxu0
  %v4191 = vadd.f32 0.0, %v4190
  %v4192 = vpop.f32.mrb[0].mxu0
  %4193 = vmatprep.mubr.f32.mxu0 0.0
  %4194 = vmatmul.mubr.f32.gmra.mrb[0].mxu0 %v4110
  %v4195 = vpop.f32.mrb[0].mxu0
  %v4196 = vadd.f32 0.0, %v4195
  %v4197 = vpop.f32.mrb[0].mxu0
  %4198 = vmatprep.mubr.f32.mxu0 0.0
  %4199 = vmatmul.mubr.f32.gmra.mrb[0].mxu0 %v4113
  %v4200 = vpop.f32.mrb[0].mxu0
  %v4201 = vadd.f32 0.0, %v4200
  %v4202 = vpop.f32.mrb[0].mxu0
  %4203 = vmatprep.mubr.f32.mxu0 0.0
  %4204 = vmatmul.mubr.f32.gmra.mrb[0].mxu0 %v4116
  %v4205 = vpop.f32.mrb[0].mxu0
  %v4206 = vadd.f32 0.0, %v4205
  %v4207 = vpop.f32.mrb[0].mxu0
  %4208 = vmatprep.mubr.f32.mxu0 0.0
  %4209 = vmatmul.mubr.f32.gmra.mrb[0].mxu0 %v4119
  %v4210 = vpop.f32.mrb[0].mxu0
  %v4211 = vadd.f32 0.0, %v4210
  %v4212 = vpop.f32.mrb[0].mxu0
  %4213 = vmatprep.mubr.f32.mxu0 0.0
  %4214 = vmatmul.mubr.f32.gmra.mrb[0].mxu0 %v4122
  %v4215 = vpop.f32.mrb[0].mxu0
  %v4216 = vadd.f32 0.0, %v4215
  %v4217 = vpop.f32.mrb[0].mxu0
  %4218 = vdwg.mxu0
  %v4219 = vadd.f32 %v2419, %v4191
  %v4220 = vadd.f32 %v2420, %v4196
  %v4221 = vadd.f32 %v2421, %v4201
  %v4222 = vadd.f32 %v2422, %v4206
  %v4223 = vadd.f32 %v2423, %v4211
  %v4224 = vadd.f32 %v2424, %v4216
  %s4225 = scalar_lea.vmem %s9, 1
  %v4226 = vld [vmem:[%s4225] sm:$0x1]
  %v4228 = vlaneseq
  %v4229 = vshrl.u32 %v4228, 7
  %v4230 = vsub.s32 0, %v4229
  %v4231 = vrot.slane %v4226, %v4230
  %v4233 = vadd.f32 %v4219, %v4231
  %v4234 = vadd.f32 %v4220, %v4231
  %v4235 = vadd.f32 %v4221, %v4231
  %v4236 = vadd.f32 %v4222, %v4231
  %v4237 = vadd.f32 %v4223, %v4231
  %v4238 = vadd.f32 %v4224, %v4231
  %s4239 = scalar_lea.vmem %s10, 1
  %v4240 = vld [vmem:[%s4239] sm:$0x1]
  %s4241 = scalar_lea.vmem %s11, 1
  %v4242 = vld [vmem:[%s4241] sm:$0x1]
  %v4243 = vsel %vm201, %v4233, 0.0
  %4244 = vadd.xlane.f32.xlu0 %v4243
  %v4245 = vpop.xlane.xlu0 %4244
  %v4246 = vsel %vm201, %v4234, 0.0
  %4247 = vadd.xlane.f32.xlu0 %v4246
  %v4248 = vpop.xlane.xlu0 %4247
  %v4249 = vsel %vm201, %v4235, 0.0
  %4250 = vadd.xlane.f32.xlu0 %v4249
  %v4251 = vpop.xlane.xlu0 %4250
  %v4252 = vsel %vm201, %v4236, 0.0
  %4253 = vadd.xlane.f32.xlu0 %v4252
  %v4254 = vpop.xlane.xlu0 %4253
  %v4255 = vsel %vm201, %v4237, 0.0
  %4256 = vadd.xlane.f32.xlu0 %v4255
  %v4257 = vpop.xlane.xlu0 %4256
  %v4258 = vsel %vm201, %v4238, 0.0
  %4259 = vadd.xlane.f32.xlu0 %v4258
  %v4260 = vpop.xlane.xlu0 %4259
  %v4261 = vmul.f32 %v4245, %v220
  %v4262 = vmul.f32 %v4248, %v220
  %v4263 = vmul.f32 %v4251, %v220
  %v4264 = vmul.f32 %v4254, %v220
  %v4265 = vmul.f32 %v4257, %v220
  %v4266 = vmul.f32 %v4260, %v220
  %v4267 = vsub.f32 %v4233, %v4261
  %v4268 = vsub.f32 %v4234, %v4262
  %v4269 = vsub.f32 %v4235, %v4263
  %v4270 = vsub.f32 %v4236, %v4264
  %v4271 = vsub.f32 %v4237, %v4265
  %v4272 = vsub.f32 %v4238, %v4266
  %v4273 = vmul.f32 %v4267, %v4267
  %v4274 = vmul.f32 %v4268, %v4268
  %v4275 = vmul.f32 %v4269, %v4269
  %v4276 = vmul.f32 %v4270, %v4270
  %v4277 = vmul.f32 %v4271, %v4271
  %v4278 = vmul.f32 %v4272, %v4272
  %v4279 = vsel %vm201, %v4273, 0.0
  %4280 = vadd.xlane.f32.xlu0 %v4279
  %v4281 = vpop.xlane.xlu0 %4280
  %v4282 = vsel %vm201, %v4274, 0.0
  %4283 = vadd.xlane.f32.xlu0 %v4282
  %v4284 = vpop.xlane.xlu0 %4283
  %v4285 = vsel %vm201, %v4275, 0.0
  %4286 = vadd.xlane.f32.xlu0 %v4285
  %v4287 = vpop.xlane.xlu0 %4286
  %v4288 = vsel %vm201, %v4276, 0.0
  %4289 = vadd.xlane.f32.xlu0 %v4288
  %v4290 = vpop.xlane.xlu0 %4289
  %v4291 = vsel %vm201, %v4277, 0.0
  %4292 = vadd.xlane.f32.xlu0 %v4291
  %v4293 = vpop.xlane.xlu0 %4292
  %v4294 = vsel %vm201, %v4278, 0.0
  %4295 = vadd.xlane.f32.xlu0 %v4294
  %v4296 = vpop.xlane.xlu0 %4295
  %v4297 = vmul.f32 %v4281, %v220
  %v4298 = vmul.f32 %v4284, %v220
  %v4299 = vmul.f32 %v4287, %v220
  %v4300 = vmul.f32 %v4290, %v220
  %v4301 = vmul.f32 %v4293, %v220
  %v4302 = vmul.f32 %v4296, %v220
  %v4303 = vadd.f32 %v4297, 1e-05
  %v4304 = vadd.f32 %v4298, 1e-05
  %v4305 = vadd.f32 %v4299, 1e-05
  %v4306 = vadd.f32 %v4300, 1e-05
  %v4307 = vadd.f32 %v4301, 1e-05
  %v4308 = vadd.f32 %v4302, 1e-05
  %v4309 = vrsqrt.pop %v4303
  %v4310 = vrsqrt.pop %v4304
  %v4311 = vrsqrt.pop %v4305
  %v4312 = vrsqrt.pop %v4306
  %v4313 = vrsqrt.pop %v4307
  %v4314 = vrsqrt.pop %v4308
  %v4315 = vmul.f32 %v4267, %v4309
  %v4316 = vmul.f32 %v4268, %v4310
  %v4317 = vmul.f32 %v4269, %v4311
  %v4318 = vmul.f32 %v4270, %v4312
  %v4319 = vmul.f32 %v4271, %v4313
  %v4320 = vmul.f32 %v4272, %v4314
  %v4322 = vlaneseq
  %v4323 = vshrl.u32 %v4322, 7
  %v4324 = vsub.s32 0, %v4323
  %v4325 = vrot.slane %v4240, %v4324
  %v4327 = vmul.f32 %v4315, %v4325
  %v4328 = vmul.f32 %v4316, %v4325
  %v4329 = vmul.f32 %v4317, %v4325
  %v4330 = vmul.f32 %v4318, %v4325
  %v4331 = vmul.f32 %v4319, %v4325
  %v4332 = vmul.f32 %v4320, %v4325
  %v4334 = vlaneseq
  %v4335 = vshrl.u32 %v4334, 7
  %v4336 = vsub.s32 0, %v4335
  %v4337 = vrot.slane %v4242, %v4336
  %v4339 = vadd.f32 %v4327, %v4337
  %v4340 = vadd.f32 %v4328, %v4337
  %v4341 = vadd.f32 %v4329, %v4337
  %v4342 = vadd.f32 %v4330, %v4337
  %v4343 = vadd.f32 %v4331, %v4337
  %v4344 = vadd.f32 %v4332, %v4337
  %s4345 = scalar_lea.vmem %s12, 32
  %v4346 = vld [vmem:[%s4345] sm:$0xff]
  %v4347 = vld [vmem:[%s4345 + $0x8] sm:$0xff]
  %v4348 = vld [vmem:[%s4345 + $0x10] sm:$0xff]
  %v4349 = vld [vmem:[%s4345 + $0x18] sm:$0xff]
  %s4350 = scalar_lea.vmem %s13, 1
  %v4351 = vld [vmem:[%s4350] sm:$0x1]
  %v4353 = vlaneseq
  %v4354 = vshrl.u32 %v4353, 7
  %v4355 = vsub.s32 0, %v4354
  %v4356 = vrot.slane %v4351, %v4355
  %v4359 = vsel %vm201, %v4339, 0
  %v4362 = vsel %vm201, %v4340, 0
  %v4365 = vsel %vm201, %v4341, 0
  %v4368 = vsel %vm201, %v4342, 0
  %v4371 = vsel %vm201, %v4343, 0
  %v4374 = vsel %vm201, %v4344, 0
  %4376 = vmatprep.subr.mxu0 0.0
  %4377 = vmatpush1.msra.mxu0 %v4346
  %4378 = vmatprep.subr.mxu0 0.0
  %4379 = vmatpush1.msra.mxu0 %v4347
  %4380 = vmatprep.subr.mxu0 0.0
  %4381 = vmatpush1.msra.mxu0 %v4348
  %4382 = vmatprep.subr.mxu0 0.0
  %4383 = vmatpush1.msra.mxu0 %v4349
  %4384 = vmatprep.subr.mxu0 0.0
  %4385 = vmatpush1.msra.mxu0 0.0
  %4386 = vmatprep.subr.mxu0 0.0
  %4387 = vmatpush1.msra.mxu0 0.0
  %4388 = vmatprep.subr.mxu0 0.0
  %4389 = vmatpush1.msra.mxu0 0.0
  %4390 = vmatprep.subr.mxu0 0.0
  %4391 = vmatpush1.msra.mxu0 0.0
  %4392 = vmatprep.subr.mxu0 0.0
  %4393 = vmatpush1.msra.mxu0 0.0
  %4394 = vmatprep.subr.mxu0 0.0
  %4395 = vmatpush1.msra.mxu0 0.0
  %4396 = vmatprep.subr.mxu0 0.0
  %4397 = vmatpush1.msra.mxu0 0.0
  %4398 = vmatprep.subr.mxu0 0.0
  %4399 = vmatpush1.msra.mxu0 0.0
  %4400 = vmatprep.subr.mxu0 0.0
  %4401 = vmatpush1.msra.mxu0 0.0
  %4402 = vmatprep.subr.mxu0 0.0
  %4403 = vmatpush1.msra.mxu0 0.0
  %4404 = vmatprep.subr.mxu0 0.0
  %4405 = vmatpush1.msra.mxu0 0.0
  %4406 = vmatprep.subr.mxu0 0.0
  %4407 = vmatpush1.msra.mxu0 0.0
  %4408 = vmatprep.subr.mxu0 0.0
  %4409 = vmatpush1.msra.mxu0 0.0
  %4410 = vmatprep.subr.mxu0 0.0
  %4411 = vmatpush1.msra.mxu0 0.0
  %4412 = vmatprep.subr.mxu0 0.0
  %4413 = vmatpush1.msra.mxu0 0.0
  %4414 = vmatprep.subr.mxu0 0.0
  %4415 = vmatpush1.msra.mxu0 0.0
  %4416 = vmatprep.subr.mxu0 0.0
  %4417 = vmatpush1.msra.mxu0 0.0
  %4418 = vmatprep.subr.mxu0 0.0
  %4419 = vmatpush1.msra.mxu0 0.0
  %4420 = vmatprep.subr.mxu0 0.0
  %4421 = vmatpush1.msra.mxu0 0.0
  %4422 = vmatprep.subr.mxu0 0.0
  %4423 = vmatpush1.msra.mxu0 0.0
  %4424 = vmatprep.subr.mxu0 0.0
  %4425 = vmatpush1.msra.mxu0 0.0
  %4426 = vmatprep.subr.mxu0 0.0
  %4427 = vmatpush1.msra.mxu0 0.0
  %4428 = vmatprep.subr.mxu0 0.0
  %4429 = vmatpush1.msra.mxu0 0.0
  %4430 = vmatprep.subr.mxu0 0.0
  %4431 = vmatpush1.msra.mxu0 0.0
  %4432 = vmatprep.subr.mxu0 0.0
  %4433 = vmatpush1.msra.mxu0 0.0
  %4434 = vmatprep.subr.mxu0 0.0
  %4435 = vmatpush1.msra.mxu0 0.0
  %4436 = vmatprep.subr.mxu0 0.0
  %4437 = vmatpush1.msra.mxu0 0.0
  %4438 = vmatprep.subr.mxu0 0.0
  %4439 = vmatpush1.msra.mxu0 0.0
  %4440 = vmatprep.mubr.f32.mxu0 0.0
  %4441 = vmatmul.mubr.f32.gmra.mrb[0].mxu0 %v4359
  %v4442 = vpop.f32.mrb[0].mxu0
  %v4443 = vadd.f32 %v4356, %v4442
  %v4444 = vpop.f32.mrb[0].mxu0
  %4445 = vmatprep.mubr.f32.mxu0 0.0
  %4446 = vmatmul.mubr.f32.gmra.mrb[0].mxu0 %v4362
  %v4447 = vpop.f32.mrb[0].mxu0
  %v4448 = vadd.f32 %v4356, %v4447
  %v4449 = vpop.f32.mrb[0].mxu0
  %4450 = vmatprep.mubr.f32.mxu0 0.0
  %4451 = vmatmul.mubr.f32.gmra.mrb[0].mxu0 %v4365
  %v4452 = vpop.f32.mrb[0].mxu0
  %v4453 = vadd.f32 %v4356, %v4452
  %v4454 = vpop.f32.mrb[0].mxu0
  %4455 = vmatprep.mubr.f32.mxu0 0.0
  %4456 = vmatmul.mubr.f32.gmra.mrb[0].mxu0 %v4368
  %v4457 = vpop.f32.mrb[0].mxu0
  %v4458 = vadd.f32 %v4356, %v4457
  %v4459 = vpop.f32.mrb[0].mxu0
  %4460 = vmatprep.mubr.f32.mxu0 0.0
  %4461 = vmatmul.mubr.f32.gmra.mrb[0].mxu0 %v4371
  %v4462 = vpop.f32.mrb[0].mxu0
  %v4463 = vadd.f32 %v4356, %v4462
  %v4464 = vpop.f32.mrb[0].mxu0
  %4465 = vmatprep.mubr.f32.mxu0 0.0
  %4466 = vmatmul.mubr.f32.gmra.mrb[0].mxu0 %v4374
  %v4467 = vpop.f32.mrb[0].mxu0
  %v4468 = vadd.f32 %v4356, %v4467
  %v4469 = vpop.f32.mrb[0].mxu0
  %4470 = vdwg.mxu0
  %v4471 = vmul.f32 %v4443, 0.5
  %v4472 = vmul.f32 %v4448, 0.5
  %v4473 = vmul.f32 %v4453, 0.5
  %v4474 = vmul.f32 %v4458, 0.5
  %v4475 = vmul.f32 %v4463, 0.5
  %v4476 = vmul.f32 %v4468, 0.5
  %v4477 = vmul.f32 %v4443, 0.044715
  %v4478 = vmul.f32 %v4448, 0.044715
  %v4479 = vmul.f32 %v4453, 0.044715
  %v4480 = vmul.f32 %v4458, 0.044715
  %v4481 = vmul.f32 %v4463, 0.044715
  %v4482 = vmul.f32 %v4468, 0.044715
  %v4483 = vmul.f32 %v4477, %v4443
  %v4484 = vmul.f32 %v4478, %v4448
  %v4485 = vmul.f32 %v4479, %v4453
  %v4486 = vmul.f32 %v4480, %v4458
  %v4487 = vmul.f32 %v4481, %v4463
  %v4488 = vmul.f32 %v4482, %v4468
  %v4489 = vmul.f32 %v4483, %v4443
  %v4490 = vmul.f32 %v4484, %v4448
  %v4491 = vmul.f32 %v4485, %v4453
  %v4492 = vmul.f32 %v4486, %v4458
  %v4493 = vmul.f32 %v4487, %v4463
  %v4494 = vmul.f32 %v4488, %v4468
  %v4495 = vadd.f32 %v4443, %v4489
  %v4496 = vadd.f32 %v4448, %v4490
  %v4497 = vadd.f32 %v4453, %v4491
  %v4498 = vadd.f32 %v4458, %v4492
  %v4499 = vadd.f32 %v4463, %v4493
  %v4500 = vadd.f32 %v4468, %v4494
  %v4501 = vmul.f32 %v4495, 0.7978846
  %v4502 = vmul.f32 %v4496, 0.7978846
  %v4503 = vmul.f32 %v4497, 0.7978846
  %v4504 = vmul.f32 %v4498, 0.7978846
  %v4505 = vmul.f32 %v4499, 0.7978846
  %v4506 = vmul.f32 %v4500, 0.7978846
  %v4507 = vtanh.pop %v4501
  %v4508 = vtanh.pop %v4502
  %v4509 = vtanh.pop %v4503
  %v4510 = vtanh.pop %v4504
  %v4511 = vtanh.pop %v4505
  %v4512 = vtanh.pop %v4506
  %v4513 = vadd.f32 %v4507, 1.0
  %v4514 = vadd.f32 %v4508, 1.0
  %v4515 = vadd.f32 %v4509, 1.0
  %v4516 = vadd.f32 %v4510, 1.0
  %v4517 = vadd.f32 %v4511, 1.0
  %v4518 = vadd.f32 %v4512, 1.0
  %v4519 = vmul.f32 %v4471, %v4513
  %v4520 = vmul.f32 %v4472, %v4514
  %v4521 = vmul.f32 %v4473, %v4515
  %v4522 = vmul.f32 %v4474, %v4516
  %v4523 = vmul.f32 %v4475, %v4517
  %v4524 = vmul.f32 %v4476, %v4518
  %s4525 = scalar_lea.vmem %s14, 128
  %v4526 = vld [vmem:[%s4525] sm:$0xff]
  %v4527 = vld [vmem:[%s4525 + $0x8] sm:$0xff]
  %v4528 = vld [vmem:[%s4525 + $0x10] sm:$0xff]
  %v4529 = vld [vmem:[%s4525 + $0x18] sm:$0xff]
  %v4530 = vld [vmem:[%s4525 + $0x20] sm:$0xff]
  %v4531 = vld [vmem:[%s4525 + $0x28] sm:$0xff]
  %v4532 = vld [vmem:[%s4525 + $0x30] sm:$0xff]
  %v4533 = vld [vmem:[%s4525 + $0x38] sm:$0xff]
  %v4534 = vld [vmem:[%s4525 + $0x40] sm:$0xff]
  %v4535 = vld [vmem:[%s4525 + $0x48] sm:$0xff]
  %v4536 = vld [vmem:[%s4525 + $0x50] sm:$0xff]
  %v4537 = vld [vmem:[%s4525 + $0x58] sm:$0xff]
  %v4538 = vld [vmem:[%s4525 + $0x60] sm:$0xff]
  %v4539 = vld [vmem:[%s4525 + $0x68] sm:$0xff]
  %v4540 = vld [vmem:[%s4525 + $0x70] sm:$0xff]
  %v4541 = vld [vmem:[%s4525 + $0x78] sm:$0xff]
  %4542 = vmatprep.subr.mxu0 0.0
  %4543 = vmatpush1.msra.mxu0 %v4526
  %4544 = vmatprep.subr.mxu0 0.0
  %4545 = vmatpush1.msra.mxu0 %v4527
  %4546 = vmatprep.subr.mxu0 0.0
  %4547 = vmatpush1.msra.mxu0 %v4528
  %4548 = vmatprep.subr.mxu0 0.0
  %4549 = vmatpush1.msra.mxu0 %v4529
  %4550 = vmatprep.subr.mxu0 0.0
  %4551 = vmatpush1.msra.mxu0 %v4530
  %4552 = vmatprep.subr.mxu0 0.0
  %4553 = vmatpush1.msra.mxu0 %v4531
  %4554 = vmatprep.subr.mxu0 0.0
  %4555 = vmatpush1.msra.mxu0 %v4532
  %4556 = vmatprep.subr.mxu0 0.0
  %4557 = vmatpush1.msra.mxu0 %v4533
  %4558 = vmatprep.subr.mxu0 0.0
  %4559 = vmatpush1.msra.mxu0 %v4534
  %4560 = vmatprep.subr.mxu0 0.0
  %4561 = vmatpush1.msra.mxu0 %v4535
  %4562 = vmatprep.subr.mxu0 0.0
  %4563 = vmatpush1.msra.mxu0 %v4536
  %4564 = vmatprep.subr.mxu0 0.0
  %4565 = vmatpush1.msra.mxu0 %v4537
  %4566 = vmatprep.subr.mxu0 0.0
  %4567 = vmatpush1.msra.mxu0 %v4538
  %4568 = vmatprep.subr.mxu0 0.0
  %4569 = vmatpush1.msra.mxu0 %v4539
  %4570 = vmatprep.subr.mxu0 0.0
  %4571 = vmatpush1.msra.mxu0 %v4540
  %4572 = vmatprep.subr.mxu0 0.0
  %4573 = vmatpush1.msra.mxu0 %v4541
  %4574 = vmatprep.subr.mxu0 0.0
  %4575 = vmatpush1.msra.mxu0 0.0
  %4576 = vmatprep.subr.mxu0 0.0
  %4577 = vmatpush1.msra.mxu0 0.0
  %4578 = vmatprep.subr.mxu0 0.0
  %4579 = vmatpush1.msra.mxu0 0.0
  %4580 = vmatprep.subr.mxu0 0.0
  %4581 = vmatpush1.msra.mxu0 0.0
  %4582 = vmatprep.subr.mxu0 0.0
  %4583 = vmatpush1.msra.mxu0 0.0
  %4584 = vmatprep.subr.mxu0 0.0
  %4585 = vmatpush1.msra.mxu0 0.0
  %4586 = vmatprep.subr.mxu0 0.0
  %4587 = vmatpush1.msra.mxu0 0.0
  %4588 = vmatprep.subr.mxu0 0.0
  %4589 = vmatpush1.msra.mxu0 0.0
  %4590 = vmatprep.subr.mxu0 0.0
  %4591 = vmatpush1.msra.mxu0 0.0
  %4592 = vmatprep.subr.mxu0 0.0
  %4593 = vmatpush1.msra.mxu0 0.0
  %4594 = vmatprep.subr.mxu0 0.0
  %4595 = vmatpush1.msra.mxu0 0.0
  %4596 = vmatprep.subr.mxu0 0.0
  %4597 = vmatpush1.msra.mxu0 0.0
  %4598 = vmatprep.subr.mxu0 0.0
  %4599 = vmatpush1.msra.mxu0 0.0
  %4600 = vmatprep.subr.mxu0 0.0
  %4601 = vmatpush1.msra.mxu0 0.0
  %4602 = vmatprep.subr.mxu0 0.0
  %4603 = vmatpush1.msra.mxu0 0.0
  %4604 = vmatprep.subr.mxu0 0.0
  %4605 = vmatpush1.msra.mxu0 0.0
  %4606 = vmatprep.mubr.f32.mxu0 0.0
  %4607 = vmatmul.mubr.f32.gmra.mrb[0].mxu0 %v4519
  %v4608 = vpop.f32.mrb[0].mxu0
  %v4609 = vadd.f32 0.0, %v4608
  %v4610 = vpop.f32.mrb[0].mxu0
  %4611 = vmatprep.mubr.f32.mxu0 0.0
  %4612 = vmatmul.mubr.f32.gmra.mrb[0].mxu0 %v4520
  %v4613 = vpop.f32.mrb[0].mxu0
  %v4614 = vadd.f32 0.0, %v4613
  %v4615 = vpop.f32.mrb[0].mxu0
  %4616 = vmatprep.mubr.f32.mxu0 0.0
  %4617 = vmatmul.mubr.f32.gmra.mrb[0].mxu0 %v4521
  %v4618 = vpop.f32.mrb[0].mxu0
  %v4619 = vadd.f32 0.0, %v4618
  %v4620 = vpop.f32.mrb[0].mxu0
  %4621 = vmatprep.mubr.f32.mxu0 0.0
  %4622 = vmatmul.mubr.f32.gmra.mrb[0].mxu0 %v4522
  %v4623 = vpop.f32.mrb[0].mxu0
  %v4624 = vadd.f32 0.0, %v4623
  %v4625 = vpop.f32.mrb[0].mxu0
  %4626 = vmatprep.mubr.f32.mxu0 0.0
  %4627 = vmatmul.mubr.f32.gmra.mrb[0].mxu0 %v4523
  %v4628 = vpop.f32.mrb[0].mxu0
  %v4629 = vadd.f32 0.0, %v4628
  %v4630 = vpop.f32.mrb[0].mxu0
  %4631 = vmatprep.mubr.f32.mxu0 0.0
  %4632 = vmatmul.mubr.f32.gmra.mrb[0].mxu0 %v4524
  %v4633 = vpop.f32.mrb[0].mxu0
  %v4634 = vadd.f32 0.0, %v4633
  %v4635 = vpop.f32.mrb[0].mxu0
  %4636 = vdwg.mxu0
  %v4637 = vadd.f32 %v4233, %v4609
  %v4638 = vadd.f32 %v4234, %v4614
  %v4639 = vadd.f32 %v4235, %v4619
  %v4640 = vadd.f32 %v4236, %v4624
  %v4641 = vadd.f32 %v4237, %v4629
  %v4642 = vadd.f32 %v4238, %v4634
  %s4643 = scalar_lea.vmem %s15, 1
  %v4644 = vld [vmem:[%s4643] sm:$0x1]
  %v4646 = vlaneseq
  %v4647 = vshrl.u32 %v4646, 7
  %v4648 = vsub.s32 0, %v4647
  %v4649 = vrot.slane %v4644, %v4648
  %v4651 = vadd.f32 %v4637, %v4649
  %v4652 = vadd.f32 %v4638, %v4649
  %v4653 = vadd.f32 %v4639, %v4649
  %v4654 = vadd.f32 %v4640, %v4649
  %v4655 = vadd.f32 %v4641, %v4649
  %v4656 = vadd.f32 %v4642, %v4649
  %v4657 = vld [vmem:[%s16] sm:$0x1]
  %v4658 = vld [vmem:[%s17] sm:$0x1]
  %v4659 = vsel %vm201, %v4651, 0.0
  %4660 = vadd.xlane.f32.xlu0 %v4659
  %v4661 = vpop.xlane.xlu0 %4660
  %v4662 = vsel %vm201, %v4652, 0.0
  %4663 = vadd.xlane.f32.xlu0 %v4662
  %v4664 = vpop.xlane.xlu0 %4663
  %v4665 = vsel %vm201, %v4653, 0.0
  %4666 = vadd.xlane.f32.xlu0 %v4665
  %v4667 = vpop.xlane.xlu0 %4666
  %v4668 = vsel %vm201, %v4654, 0.0
  %4669 = vadd.xlane.f32.xlu0 %v4668
  %v4670 = vpop.xlane.xlu0 %4669
  %v4671 = vsel %vm201, %v4655, 0.0
  %4672 = vadd.xlane.f32.xlu0 %v4671
  %v4673 = vpop.xlane.xlu0 %4672
  %v4674 = vsel %vm201, %v4656, 0.0
  %4675 = vadd.xlane.f32.xlu0 %v4674
  %v4676 = vpop.xlane.xlu0 %4675
  %v4677 = vmul.f32 %v4661, %v220
  %v4678 = vmul.f32 %v4664, %v220
  %v4679 = vmul.f32 %v4667, %v220
  %v4680 = vmul.f32 %v4670, %v220
  %v4681 = vmul.f32 %v4673, %v220
  %v4682 = vmul.f32 %v4676, %v220
  %v4683 = vsub.f32 %v4651, %v4677
  %v4684 = vsub.f32 %v4652, %v4678
  %v4685 = vsub.f32 %v4653, %v4679
  %v4686 = vsub.f32 %v4654, %v4680
  %v4687 = vsub.f32 %v4655, %v4681
  %v4688 = vsub.f32 %v4656, %v4682
  %v4689 = vmul.f32 %v4683, %v4683
  %v4690 = vmul.f32 %v4684, %v4684
  %v4691 = vmul.f32 %v4685, %v4685
  %v4692 = vmul.f32 %v4686, %v4686
  %v4693 = vmul.f32 %v4687, %v4687
  %v4694 = vmul.f32 %v4688, %v4688
  %v4695 = vsel %vm201, %v4689, 0.0
  %4696 = vadd.xlane.f32.xlu0 %v4695
  %v4697 = vpop.xlane.xlu0 %4696
  %v4698 = vsel %vm201, %v4690, 0.0
  %4699 = vadd.xlane.f32.xlu0 %v4698
  %v4700 = vpop.xlane.xlu0 %4699
  %v4701 = vsel %vm201, %v4691, 0.0
  %4702 = vadd.xlane.f32.xlu0 %v4701
  %v4703 = vpop.xlane.xlu0 %4702
  %v4704 = vsel %vm201, %v4692, 0.0
  %4705 = vadd.xlane.f32.xlu0 %v4704
  %v4706 = vpop.xlane.xlu0 %4705
  %v4707 = vsel %vm201, %v4693, 0.0
  %4708 = vadd.xlane.f32.xlu0 %v4707
  %v4709 = vpop.xlane.xlu0 %4708
  %v4710 = vsel %vm201, %v4694, 0.0
  %4711 = vadd.xlane.f32.xlu0 %v4710
  %v4712 = vpop.xlane.xlu0 %4711
  %v4713 = vmul.f32 %v4697, %v220
  %v4714 = vmul.f32 %v4700, %v220
  %v4715 = vmul.f32 %v4703, %v220
  %v4716 = vmul.f32 %v4706, %v220
  %v4717 = vmul.f32 %v4709, %v220
  %v4718 = vmul.f32 %v4712, %v220
  %v4719 = vadd.f32 %v4713, 1e-05
  %v4720 = vadd.f32 %v4714, 1e-05
  %v4721 = vadd.f32 %v4715, 1e-05
  %v4722 = vadd.f32 %v4716, 1e-05
  %v4723 = vadd.f32 %v4717, 1e-05
  %v4724 = vadd.f32 %v4718, 1e-05
  %v4725 = vrsqrt.pop %v4719
  %v4726 = vrsqrt.pop %v4720
  %v4727 = vrsqrt.pop %v4721
  %v4728 = vrsqrt.pop %v4722
  %v4729 = vrsqrt.pop %v4723
  %v4730 = vrsqrt.pop %v4724
  %v4731 = vmul.f32 %v4683, %v4725
  %v4732 = vmul.f32 %v4684, %v4726
  %v4733 = vmul.f32 %v4685, %v4727
  %v4734 = vmul.f32 %v4686, %v4728
  %v4735 = vmul.f32 %v4687, %v4729
  %v4736 = vmul.f32 %v4688, %v4730
  %v4738 = vlaneseq
  %v4739 = vshrl.u32 %v4738, 7
  %v4740 = vsub.s32 0, %v4739
  %v4741 = vrot.slane %v4657, %v4740
  %v4743 = vmul.f32 %v4731, %v4741
  %v4744 = vmul.f32 %v4732, %v4741
  %v4745 = vmul.f32 %v4733, %v4741
  %v4746 = vmul.f32 %v4734, %v4741
  %v4747 = vmul.f32 %v4735, %v4741
  %v4748 = vmul.f32 %v4736, %v4741
  %v4750 = vlaneseq
  %v4751 = vshrl.u32 %v4750, 7
  %v4752 = vsub.s32 0, %v4751
  %v4753 = vrot.slane %v4658, %v4752
  %v4755 = vadd.f32 %v4743, %v4753
  %v4756 = vadd.f32 %v4744, %v4753
  %v4757 = vadd.f32 %v4745, %v4753
  %v4758 = vadd.f32 %v4746, %v4753
  %v4759 = vadd.f32 %v4747, %v4753
  %v4760 = vadd.f32 %v4748, %v4753
  %4761 = vst.msk [vmem:[%s18] sm:$0xff] %vm201, %v4755
  %4762 = vst.msk [vmem:[%s18 + $0x8] sm:$0xff] %vm201, %v4756
  %vm4763 = vcmask 253952
  %4764 = vst.msk [vmem:[%s18 + $0x10] sm:$0x1] %vm4763, %v4757
  %s4765 = scalar_lea.vmem %s18, 24
  %4766 = vst.msk [vmem:[%s4765] sm:$0xff] %vm201, %v4758
  %4767 = vst.msk [vmem:[%s4765 + $0x8] sm:$0xff] %vm201, %v4759
  %4768 = vst.msk [vmem:[%s4765 + $0x10] sm:$0x1] %vm4763, %v4760
  // Predicated region
  $region74: #{vit_forward.1} parent=0 // pred_check
    _
  $region75: #{vit_forward.1} parent=0 // pred_check_branch
    %4770 = sbr.rel (0) target = $region77
  $region76: #{vit_forward.1} parent=0 // pred_region
    _
  $region77: #{vit_forward.1} parent=0 // pred_fallthru
    _
  // Predicated region
  $region78: #{vit_forward.1} parent=0 // pred_check
    _
  $region79: #{vit_forward.1} parent=0 // pred_check_branch
    %4772 = sbr.rel (0) target = $region81
  $region80: #{vit_forward.1} parent=0 // pred_region
    _
  $region81: #{vit_forward.1} parent=0 // pred_fallthru
    _

</llo_original>
